<compile_context>
chip_gen: v7x
topology: tpu7x:2x2x1
jax: 0.10.0
libtpu: 0.0.40
codegen_flags: <defaults>
</compile_context>

<pallas_src>
import jax
import jax.numpy as jnp
from jax.experimental import pallas as pl
from jax.experimental.pallas import tpu as pltpu

POOL_W = 100      # MaxPool2d((1, 100)) is hard-coded in the PyTorch module
BN_EPS = 1e-5     # nn.BatchNorm2d default eps


def _make_fused_kernel(N, Cout, H, W, Wq):
    """Fused conv(matmul) + BN(batch stats) + MaxPool + flatten + outer product."""
    K = H * Wq

    def kernel(w_ref, bnp_ref, pat1_ref, pat2_ref, out_ref, f1_sc, f2_sc):
        wm = w_ref[...]                              # (Cout, Ppad) f32, VMEM
        bias = bnp_ref[:, 0:1]                       # (Cout, 1)
        gamma = bnp_ref[:, 1:2]                      # (Cout, 1)
        beta = bnp_ref[:, 2:3]                       # (Cout, 1)

        def branch(pat_ref, f_ref):
            # --- conv1: a single MXU matmul covering all output channels -----
            conv = jnp.dot(wm, pat_ref[...],
                           preferred_element_type=jnp.float32)   # (Cout, N*H*W)
            conv = conv + bias                                    # conv bias

            # --- bn1: training-mode batch statistics per channel -------------
            mean = jnp.mean(conv, axis=-1, keepdims=True)         # (Cout, 1)
            cen = conv - mean
            var = jnp.mean(cen * cen, axis=-1, keepdims=True)     # biased var
            scale = gamma * jax.lax.rsqrt(var + BN_EPS)
            y = cen * scale + beta                                # (Cout, N*H*W)

            # --- MaxPool2d((1, POOL_W)) + Flatten(2, -1) ----------------------
            # window (n, h, q) occupies columns [(n*H+h)*W + q*POOL_W, +POOL_W)
            for n in range(N):
                for h in range(H):
                    for q in range(Wq):
                        start = (n * H + h) * W + q * POOL_W
                        col = n * K + h * Wq + q
                        f_ref[:, col:col + 1] = jnp.max(
                            y[:, start:start + POOL_W], axis=-1, keepdims=True)

        branch(pat1_ref, f1_sc)
        branch(pat2_ref, f2_sc)

        # --- fused outer-product epilogue: out[n,c,i,j] = f1[c,n,i]*f2[c,n,j] --
        for n in range(N):
            a = f1_sc[:, n * K:(n + 1) * K]          # (Cout, K)
            c = f2_sc[:, n * K:(n + 1) * K]          # (Cout, K)
            out_ref[n] = a[:, :, None] * c[:, None, :]            # (Cout, K, K)

    return kernel


def _im2col(xp, H, W, KH, KW, Ppad):
    """(N, Cin, H+KH-1, W+KW-1) -> (Ppad, N*H*W) patch matrix.

    Rows ordered (ci, ky, kx) to match w.reshape(Cout, Cin*KH*KW); columns
    ordered (n, h, w).  Pure layout glue executed by XLA in the wrapper.
    """
    N, Cin = xp.shape[0], xp.shape[1]
    taps = [xp[:, :, ky:ky + H, kx:kx + W]
            for ky in range(KH) for kx in range(KW)]
    pat = jnp.stack(taps, axis=2)                       # (N, Cin, KH*KW, H, W)
    P = Cin * KH * KW
    pat = pat.reshape(N, P, H * W)
    pat = pat.transpose(1, 0, 2).reshape(P, N * H * W)  # (P, M)
    return jnp.pad(pat, ((0, Ppad - P), (0, 0)))        # zero-pad contraction dim


@jax.jit
def input_conv_forward(x1, x2, w, b, gamma, beta):
    N, Cin, H, W = x1.shape
    Cout, _, KH, KW = w.shape
    ph, pw = (KH - 1) // 2, (KW - 1) // 2     # matches PyTorch for odd kernels
    Wq = W // POOL_W                          # MaxPool floor behaviour
    K = H * Wq
    M = N * H * W
    P = Cin * KH * KW
    Ppad = ((P + 127) // 128) * 128           # MXU-aligned, zero-padded K dim

    pad = ((0, 0), (0, 0), (ph, ph), (pw, pw))
    pat1 = _im2col(jnp.pad(x1.astype(jnp.float32), pad), H, W, KH, KW, Ppad)
    pat2 = _im2col(jnp.pad(x2.astype(jnp.float32), pad), H, W, KH, KW, Ppad)

    wm = jnp.pad(w.astype(jnp.float32).reshape(Cout, P),
                 ((0, 0), (0, Ppad - P)))                         # (Cout, Ppad)
    bnp = jnp.stack([b, gamma, beta], axis=1).astype(jnp.float32)  # (Cout, 3)

    kernel = _make_fused_kernel(N, Cout, H, W, Wq)
    # VMEM footprint at these shapes: 2 x (Ppad x M) f32 patches ~ 3.3 MB plus
    # small weights/scratch/output -> comfortably inside every generation's
    # default scoped-VMEM limit (incl. v7x's 32 MiB).
    return pl.pallas_call(
        kernel,
        grid=(1,),
        in_specs=[
            pl.BlockSpec((Cout, Ppad), lambda i: (0, 0)),   # conv weights
            pl.BlockSpec((Cout, 3), lambda i: (0, 0)),      # bias / gamma / beta
            pl.BlockSpec((Ppad, M), lambda i: (0, 0)),      # im2col(x1)
            pl.BlockSpec((Ppad, M), lambda i: (0, 0)),      # im2col(x2)
        ],
        out_specs=pl.BlockSpec((N, Cout, K, K), lambda i: (0, 0, 0, 0)),
        out_shape=jax.ShapeDtypeStruct((N, Cout, K, K), jnp.float32),
        scratch_shapes=[
            pltpu.VMEM((Cout, N * K), jnp.float32),   # pooled features, branch 1
            pltpu.VMEM((Cout, N * K), jnp.float32),   # pooled features, branch 2
        ],
        compiler_params=pltpu.CompilerParams(
            dimension_semantics=("arbitrary",)),
    )(wm, bnp, pat1, pat2)


def reference_forward(x1, x2, w, b, gamma, beta):
    """Pure-JAX reference mirroring the PyTorch forward (training-mode BN)."""
    Cout, Cin, KH, KW = w.shape
    ph, pw = (KH - 1) // 2, (KW - 1) // 2

    def branch(x):
        conv = jax.lax.conv_general_dilated(
            x.astype(jnp.float32), w.astype(jnp.float32),
            window_strides=(1, 1), padding=((ph, ph), (pw, pw)),
            dimension_numbers=("NCHW", "OIHW", "NCHW"),
            precision=jax.lax.Precision.HIGHEST,
        ) + b[None, :, None, None]
        mean = conv.mean(axis=(0, 2, 3), keepdims=True)
        var = jnp.mean(jnp.square(conv - mean), axis=(0, 2, 3), keepdims=True)
        y = (conv - mean) * jax.lax.rsqrt(var + BN_EPS) * gamma[None, :, None, None] \
            + beta[None, :, None, None]
        n, c, h, wdt = y.shape
        wq = wdt // POOL_W
        pooled = jnp.max(y[..., :wq * POOL_W].reshape(n, c, h, wq, POOL_W), axis=-1)
        return pooled.reshape(n, c, h * wq)

    f1, f2 = branch(x1), branch(x2)
    return f1[..., :, None] * f2[..., None, :]


if __name__ == "__main__":
    key = jax.random.PRNGKey(0)
    k1, k2, k3, k4, k5, k6 = jax.random.split(key, 6)

    # Small shapes consistent with the module: W must be >= 100 for MaxPool2d((1,100)).
    N, Cin, Cout, H, W = 2, 3, 8, 4, 200
    KH, KW = 3, 25                     # ks_y=3, ks_x=25 defaults

    x1 = jax.random.normal(k1, (N, Cin, H, W), jnp.float32)
    x2 = jax.random.normal(k2, (N, Cin, H, W), jnp.float32)

    # Deterministic synthetic parameters (shapes from nn.Conv2d / nn.BatchNorm2d).
    w = 0.1 * jax.random.normal(k3, (Cout, Cin, KH, KW), jnp.float32)
    b = 0.1 * jax.random.normal(k4, (Cout,), jnp.float32)
    gamma = 1.0 + 0.1 * jax.random.normal(k5, (Cout,), jnp.float32)
    beta = 0.1 * jax.random.normal(k6, (Cout,), jnp.float32)

    out = jax.block_until_ready(input_conv_forward(x1, x2, w, b, gamma, beta))

    K = H * (W // POOL_W)
    assert out.shape == (N, Cout, K, K), out.shape

    ref = reference_forward(x1, x2, w, b, gamma, beta)
    err = float(jnp.max(jnp.abs(out - ref)))
    # Tolerance covers the MXU's reduced-precision f32 passes vs. the HIGHEST-
    # precision XLA reference; a real indexing/semantics bug would be O(1) off.
    if not err < 5e-2:
        raise SystemExit(f"mismatch vs reference: max abs err = {err}")

    print("KERNEL_OK")
</pallas_src>

<mosaic_0001>
module attributes {stable_mosaic.version = 11 : i64} {
  func.func @kernel(%arg0: i32, %arg1: memref<8x256xf32, #tpu.memory_space<vmem>>, %arg2: memref<8x3xf32, #tpu.memory_space<vmem>>, %arg3: memref<256x1600xf32, #tpu.memory_space<vmem>>, %arg4: memref<256x1600xf32, #tpu.memory_space<vmem>>, %arg5: memref<2x8x8x8xf32, #tpu.memory_space<vmem>>, %arg6: memref<8x16xf32, #tpu.memory_space<vmem>>, %arg7: memref<8x16xf32, #tpu.memory_space<vmem>>) attributes {dimension_semantics = [#tpu.dimension_semantics<arbitrary>], iteration_bounds = array<i64: 1>, scalar_prefetch = 0 : i64, scratch_operands = 2 : i64, tpu.core_type = #tpu.core_type<tc>, window_params = [{pipeline_mode = #tpu.pipeline_mode<synchronous>, transform_indices = @transform_0, window_bounds = array<i64: 8, 256>}, {pipeline_mode = #tpu.pipeline_mode<synchronous>, transform_indices = @transform_1, window_bounds = array<i64: 8, 3>}, {pipeline_mode = #tpu.pipeline_mode<synchronous>, transform_indices = @transform_2, window_bounds = array<i64: 256, 1600>}, {pipeline_mode = #tpu.pipeline_mode<synchronous>, transform_indices = @transform_3, window_bounds = array<i64: 256, 1600>}, {pipeline_mode = #tpu.pipeline_mode<synchronous>, transform_indices = @transform_4, window_bounds = array<i64: 2, 8, 8, 8>}]} {
    %c0 = arith.constant 0 : index
    %c0_0 = arith.constant 0 : index
    %0 = vector.load %arg1[%c0, %c0_0] : memref<8x256xf32, #tpu.memory_space<vmem>>, vector<8x256xf32>
    %c0_1 = arith.constant 0 : index
    %c0_2 = arith.constant 0 : index
    %1 = vector.load %arg2[%c0_1, %c0_2] : memref<8x3xf32, #tpu.memory_space<vmem>>, vector<8x1xf32>
    %c0_3 = arith.constant 0 : index
    %c1 = arith.constant 1 : index
    %2 = vector.load %arg2[%c0_3, %c1] : memref<8x3xf32, #tpu.memory_space<vmem>>, vector<8x1xf32>
    %c0_4 = arith.constant 0 : index
    %c2 = arith.constant 2 : index
    %3 = vector.load %arg2[%c0_4, %c2] : memref<8x3xf32, #tpu.memory_space<vmem>>, vector<8x1xf32>
    %c0_5 = arith.constant 0 : index
    %c0_6 = arith.constant 0 : index
    %4 = vector.load %arg3[%c0_5, %c0_6] : memref<256x1600xf32, #tpu.memory_space<vmem>>, vector<256x1600xf32>
    %cst = arith.constant dense<0.000000e+00> : vector<8x1600xf32>
    %5 = tpu.matmul %0, %4, %cst {dimension_numbers = #tpu.dot_dimension_numbers<[1], [0], [0], [1], [0, 0, 1, 1], [], []>} : vector<8x256xf32>, vector<256x1600xf32>, vector<8x1600xf32> -> vector<8x1600xf32>
    %6 = vector.broadcast %1 : vector<8x1xf32> to vector<8x1600xf32>
    %7 = arith.addf %5, %6 : vector<8x1600xf32>
    %cst_7 = arith.constant dense<0.000000e+00> : vector<8xf32>
    %8 = vector.multi_reduction <add>, %7, %cst_7 [1] : vector<8x1600xf32> to vector<8xf32>
    %9 = vector.shape_cast %8 : vector<8xf32> to vector<8x1xf32>
    %cst_8 = arith.constant 1.600000e+03 : f32
    %10 = vector.broadcast %cst_8 : f32 to vector<8x1xf32>
    %11 = arith.divf %9, %10 : vector<8x1xf32>
    %12 = vector.broadcast %11 : vector<8x1xf32> to vector<8x1600xf32>
    %13 = arith.subf %7, %12 : vector<8x1600xf32>
    %14 = arith.mulf %13, %13 : vector<8x1600xf32>
    %cst_9 = arith.constant dense<0.000000e+00> : vector<8xf32>
    %15 = vector.multi_reduction <add>, %14, %cst_9 [1] : vector<8x1600xf32> to vector<8xf32>
    %16 = vector.shape_cast %15 : vector<8xf32> to vector<8x1xf32>
    %cst_10 = arith.constant 1.600000e+03 : f32
    %17 = vector.broadcast %cst_10 : f32 to vector<8x1xf32>
    %18 = arith.divf %16, %17 : vector<8x1xf32>
    %cst_11 = arith.constant 9.99999974E-6 : f32
    %19 = vector.broadcast %cst_11 : f32 to vector<8x1xf32>
    %20 = arith.addf %18, %19 : vector<8x1xf32>
    %21 = math.rsqrt %20 : vector<8x1xf32>
    %22 = arith.mulf %2, %21 : vector<8x1xf32>
    %23 = vector.broadcast %22 : vector<8x1xf32> to vector<8x1600xf32>
    %24 = arith.mulf %13, %23 : vector<8x1600xf32>
    %25 = vector.broadcast %3 : vector<8x1xf32> to vector<8x1600xf32>
    %26 = arith.addf %24, %25 : vector<8x1600xf32>
    %27 = vector.extract_strided_slice %26 {offsets = [0, 0], sizes = [8, 100], strides = [1, 1]} : vector<8x1600xf32> to vector<8x100xf32>
    %cst_12 = arith.constant dense<0xFF800000> : vector<8xf32>
    %28 = vector.multi_reduction <maximumf>, %27, %cst_12 [1] : vector<8x100xf32> to vector<8xf32>
    %29 = vector.shape_cast %28 : vector<8xf32> to vector<8x1xf32>
    %c0_13 = arith.constant 0 : index
    %c0_14 = arith.constant 0 : index
    %30 = vector.load %arg6[%c0_13, %c0_14] : memref<8x16xf32, #tpu.memory_space<vmem>>, vector<8x1xf32>
    tpu.vector_store %arg6[%c0_13, %c0_14], %29 {strides = array<i32>} : memref<8x16xf32, #tpu.memory_space<vmem>>, vector<8x1xf32>,
    %31 = vector.extract_strided_slice %26 {offsets = [0, 100], sizes = [8, 100], strides = [1, 1]} : vector<8x1600xf32> to vector<8x100xf32>
    %cst_15 = arith.constant dense<0xFF800000> : vector<8xf32>
    %32 = vector.multi_reduction <maximumf>, %31, %cst_15 [1] : vector<8x100xf32> to vector<8xf32>
    %33 = vector.shape_cast %32 : vector<8xf32> to vector<8x1xf32>
    %c0_16 = arith.constant 0 : index
    %c1_17 = arith.constant 1 : index
    %34 = vector.load %arg6[%c0_16, %c1_17] : memref<8x16xf32, #tpu.memory_space<vmem>>, vector<8x1xf32>
    tpu.vector_store %arg6[%c0_16, %c1_17], %33 {strides = array<i32>} : memref<8x16xf32, #tpu.memory_space<vmem>>, vector<8x1xf32>,
    %35 = vector.extract_strided_slice %26 {offsets = [0, 200], sizes = [8, 100], strides = [1, 1]} : vector<8x1600xf32> to vector<8x100xf32>
    %cst_18 = arith.constant dense<0xFF800000> : vector<8xf32>
    %36 = vector.multi_reduction <maximumf>, %35, %cst_18 [1] : vector<8x100xf32> to vector<8xf32>
    %37 = vector.shape_cast %36 : vector<8xf32> to vector<8x1xf32>
    %c0_19 = arith.constant 0 : index
    %c2_20 = arith.constant 2 : index
    %38 = vector.load %arg6[%c0_19, %c2_20] : memref<8x16xf32, #tpu.memory_space<vmem>>, vector<8x1xf32>
    tpu.vector_store %arg6[%c0_19, %c2_20], %37 {strides = array<i32>} : memref<8x16xf32, #tpu.memory_space<vmem>>, vector<8x1xf32>,
    %39 = vector.extract_strided_slice %26 {offsets = [0, 300], sizes = [8, 100], strides = [1, 1]} : vector<8x1600xf32> to vector<8x100xf32>
    %cst_21 = arith.constant dense<0xFF800000> : vector<8xf32>
    %40 = vector.multi_reduction <maximumf>, %39, %cst_21 [1] : vector<8x100xf32> to vector<8xf32>
    %41 = vector.shape_cast %40 : vector<8xf32> to vector<8x1xf32>
    %c0_22 = arith.constant 0 : index
    %c3 = arith.constant 3 : index
    %42 = vector.load %arg6[%c0_22, %c3] : memref<8x16xf32, #tpu.memory_space<vmem>>, vector<8x1xf32>
    tpu.vector_store %arg6[%c0_22, %c3], %41 {strides = array<i32>} : memref<8x16xf32, #tpu.memory_space<vmem>>, vector<8x1xf32>,
    %43 = vector.extract_strided_slice %26 {offsets = [0, 400], sizes = [8, 100], strides = [1, 1]} : vector<8x1600xf32> to vector<8x100xf32>
    %cst_23 = arith.constant dense<0xFF800000> : vector<8xf32>
    %44 = vector.multi_reduction <maximumf>, %43, %cst_23 [1] : vector<8x100xf32> to vector<8xf32>
    %45 = vector.shape_cast %44 : vector<8xf32> to vector<8x1xf32>
    %c0_24 = arith.constant 0 : index
    %c4 = arith.constant 4 : index
    %46 = vector.load %arg6[%c0_24, %c4] : memref<8x16xf32, #tpu.memory_space<vmem>>, vector<8x1xf32>
    tpu.vector_store %arg6[%c0_24, %c4], %45 {strides = array<i32>} : memref<8x16xf32, #tpu.memory_space<vmem>>, vector<8x1xf32>,
    %47 = vector.extract_strided_slice %26 {offsets = [0, 500], sizes = [8, 100], strides = [1, 1]} : vector<8x1600xf32> to vector<8x100xf32>
    %cst_25 = arith.constant dense<0xFF800000> : vector<8xf32>
    %48 = vector.multi_reduction <maximumf>, %47, %cst_25 [1] : vector<8x100xf32> to vector<8xf32>
    %49 = vector.shape_cast %48 : vector<8xf32> to vector<8x1xf32>
    %c0_26 = arith.constant 0 : index
    %c5 = arith.constant 5 : index
    %50 = vector.load %arg6[%c0_26, %c5] : memref<8x16xf32, #tpu.memory_space<vmem>>, vector<8x1xf32>
    tpu.vector_store %arg6[%c0_26, %c5], %49 {strides = array<i32>} : memref<8x16xf32, #tpu.memory_space<vmem>>, vector<8x1xf32>,
    %51 = vector.extract_strided_slice %26 {offsets = [0, 600], sizes = [8, 100], strides = [1, 1]} : vector<8x1600xf32> to vector<8x100xf32>
    %cst_27 = arith.constant dense<0xFF800000> : vector<8xf32>
    %52 = vector.multi_reduction <maximumf>, %51, %cst_27 [1] : vector<8x100xf32> to vector<8xf32>
    %53 = vector.shape_cast %52 : vector<8xf32> to vector<8x1xf32>
    %c0_28 = arith.constant 0 : index
    %c6 = arith.constant 6 : index
    %54 = vector.load %arg6[%c0_28, %c6] : memref<8x16xf32, #tpu.memory_space<vmem>>, vector<8x1xf32>
    tpu.vector_store %arg6[%c0_28, %c6], %53 {strides = array<i32>} : memref<8x16xf32, #tpu.memory_space<vmem>>, vector<8x1xf32>,
    %55 = vector.extract_strided_slice %26 {offsets = [0, 700], sizes = [8, 100], strides = [1, 1]} : vector<8x1600xf32> to vector<8x100xf32>
    %cst_29 = arith.constant dense<0xFF800000> : vector<8xf32>
    %56 = vector.multi_reduction <maximumf>, %55, %cst_29 [1] : vector<8x100xf32> to vector<8xf32>
    %57 = vector.shape_cast %56 : vector<8xf32> to vector<8x1xf32>
    %c0_30 = arith.constant 0 : index
    %c7 = arith.constant 7 : index
    %58 = vector.load %arg6[%c0_30, %c7] : memref<8x16xf32, #tpu.memory_space<vmem>>, vector<8x1xf32>
    tpu.vector_store %arg6[%c0_30, %c7], %57 {strides = array<i32>} : memref<8x16xf32, #tpu.memory_space<vmem>>, vector<8x1xf32>,
    %59 = vector.extract_strided_slice %26 {offsets = [0, 800], sizes = [8, 100], strides = [1, 1]} : vector<8x1600xf32> to vector<8x100xf32>
    %cst_31 = arith.constant dense<0xFF800000> : vector<8xf32>
    %60 = vector.multi_reduction <maximumf>, %59, %cst_31 [1] : vector<8x100xf32> to vector<8xf32>
    %61 = vector.shape_cast %60 : vector<8xf32> to vector<8x1xf32>
    %c0_32 = arith.constant 0 : index
    %c8 = arith.constant 8 : index
    %62 = vector.load %arg6[%c0_32, %c8] : memref<8x16xf32, #tpu.memory_space<vmem>>, vector<8x1xf32>
    tpu.vector_store %arg6[%c0_32, %c8], %61 {strides = array<i32>} : memref<8x16xf32, #tpu.memory_space<vmem>>, vector<8x1xf32>,
    %63 = vector.extract_strided_slice %26 {offsets = [0, 900], sizes = [8, 100], strides = [1, 1]} : vector<8x1600xf32> to vector<8x100xf32>
    %cst_33 = arith.constant dense<0xFF800000> : vector<8xf32>
    %64 = vector.multi_reduction <maximumf>, %63, %cst_33 [1] : vector<8x100xf32> to vector<8xf32>
    %65 = vector.shape_cast %64 : vector<8xf32> to vector<8x1xf32>
    %c0_34 = arith.constant 0 : index
    %c9 = arith.constant 9 : index
    %66 = vector.load %arg6[%c0_34, %c9] : memref<8x16xf32, #tpu.memory_space<vmem>>, vector<8x1xf32>
    tpu.vector_store %arg6[%c0_34, %c9], %65 {strides = array<i32>} : memref<8x16xf32, #tpu.memory_space<vmem>>, vector<8x1xf32>,
    %67 = vector.extract_strided_slice %26 {offsets = [0, 1000], sizes = [8, 100], strides = [1, 1]} : vector<8x1600xf32> to vector<8x100xf32>
    %cst_35 = arith.constant dense<0xFF800000> : vector<8xf32>
    %68 = vector.multi_reduction <maximumf>, %67, %cst_35 [1] : vector<8x100xf32> to vector<8xf32>
    %69 = vector.shape_cast %68 : vector<8xf32> to vector<8x1xf32>
    %c0_36 = arith.constant 0 : index
    %c10 = arith.constant 10 : index
    %70 = vector.load %arg6[%c0_36, %c10] : memref<8x16xf32, #tpu.memory_space<vmem>>, vector<8x1xf32>
    tpu.vector_store %arg6[%c0_36, %c10], %69 {strides = array<i32>} : memref<8x16xf32, #tpu.memory_space<vmem>>, vector<8x1xf32>,
    %71 = vector.extract_strided_slice %26 {offsets = [0, 1100], sizes = [8, 100], strides = [1, 1]} : vector<8x1600xf32> to vector<8x100xf32>
    %cst_37 = arith.constant dense<0xFF800000> : vector<8xf32>
    %72 = vector.multi_reduction <maximumf>, %71, %cst_37 [1] : vector<8x100xf32> to vector<8xf32>
    %73 = vector.shape_cast %72 : vector<8xf32> to vector<8x1xf32>
    %c0_38 = arith.constant 0 : index
    %c11 = arith.constant 11 : index
    %74 = vector.load %arg6[%c0_38, %c11] : memref<8x16xf32, #tpu.memory_space<vmem>>, vector<8x1xf32>
    tpu.vector_store %arg6[%c0_38, %c11], %73 {strides = array<i32>} : memref<8x16xf32, #tpu.memory_space<vmem>>, vector<8x1xf32>,
    %75 = vector.extract_strided_slice %26 {offsets = [0, 1200], sizes = [8, 100], strides = [1, 1]} : vector<8x1600xf32> to vector<8x100xf32>
    %cst_39 = arith.constant dense<0xFF800000> : vector<8xf32>
    %76 = vector.multi_reduction <maximumf>, %75, %cst_39 [1] : vector<8x100xf32> to vector<8xf32>
    %77 = vector.shape_cast %76 : vector<8xf32> to vector<8x1xf32>
    %c0_40 = arith.constant 0 : index
    %c12 = arith.constant 12 : index
    %78 = vector.load %arg6[%c0_40, %c12] : memref<8x16xf32, #tpu.memory_space<vmem>>, vector<8x1xf32>
    tpu.vector_store %arg6[%c0_40, %c12], %77 {strides = array<i32>} : memref<8x16xf32, #tpu.memory_space<vmem>>, vector<8x1xf32>,
    %79 = vector.extract_strided_slice %26 {offsets = [0, 1300], sizes = [8, 100], strides = [1, 1]} : vector<8x1600xf32> to vector<8x100xf32>
    %cst_41 = arith.constant dense<0xFF800000> : vector<8xf32>
    %80 = vector.multi_reduction <maximumf>, %79, %cst_41 [1] : vector<8x100xf32> to vector<8xf32>
    %81 = vector.shape_cast %80 : vector<8xf32> to vector<8x1xf32>
    %c0_42 = arith.constant 0 : index
    %c13 = arith.constant 13 : index
    %82 = vector.load %arg6[%c0_42, %c13] : memref<8x16xf32, #tpu.memory_space<vmem>>, vector<8x1xf32>
    tpu.vector_store %arg6[%c0_42, %c13], %81 {strides = array<i32>} : memref<8x16xf32, #tpu.memory_space<vmem>>, vector<8x1xf32>,
    %83 = vector.extract_strided_slice %26 {offsets = [0, 1400], sizes = [8, 100], strides = [1, 1]} : vector<8x1600xf32> to vector<8x100xf32>
    %cst_43 = arith.constant dense<0xFF800000> : vector<8xf32>
    %84 = vector.multi_reduction <maximumf>, %83, %cst_43 [1] : vector<8x100xf32> to vector<8xf32>
    %85 = vector.shape_cast %84 : vector<8xf32> to vector<8x1xf32>
    %c0_44 = arith.constant 0 : index
    %c14 = arith.constant 14 : index
    %86 = vector.load %arg6[%c0_44, %c14] : memref<8x16xf32, #tpu.memory_space<vmem>>, vector<8x1xf32>
    tpu.vector_store %arg6[%c0_44, %c14], %85 {strides = array<i32>} : memref<8x16xf32, #tpu.memory_space<vmem>>, vector<8x1xf32>,
    %87 = vector.extract_strided_slice %26 {offsets = [0, 1500], sizes = [8, 100], strides = [1, 1]} : vector<8x1600xf32> to vector<8x100xf32>
    %cst_45 = arith.constant dense<0xFF800000> : vector<8xf32>
    %88 = vector.multi_reduction <maximumf>, %87, %cst_45 [1] : vector<8x100xf32> to vector<8xf32>
    %89 = vector.shape_cast %88 : vector<8xf32> to vector<8x1xf32>
    %c0_46 = arith.constant 0 : index
    %c15 = arith.constant 15 : index
    %90 = vector.load %arg6[%c0_46, %c15] : memref<8x16xf32, #tpu.memory_space<vmem>>, vector<8x1xf32>
    tpu.vector_store %arg6[%c0_46, %c15], %89 {strides = array<i32>} : memref<8x16xf32, #tpu.memory_space<vmem>>, vector<8x1xf32>,
    %c0_47 = arith.constant 0 : index
    %c0_48 = arith.constant 0 : index
    %91 = vector.load %arg4[%c0_47, %c0_48] : memref<256x1600xf32, #tpu.memory_space<vmem>>, vector<256x1600xf32>
    %cst_49 = arith.constant dense<0.000000e+00> : vector<8x1600xf32>
    %92 = tpu.matmul %0, %91, %cst_49 {dimension_numbers = #tpu.dot_dimension_numbers<[1], [0], [0], [1], [0, 0, 1, 1], [], []>} : vector<8x256xf32>, vector<256x1600xf32>, vector<8x1600xf32> -> vector<8x1600xf32>
    %93 = vector.broadcast %1 : vector<8x1xf32> to vector<8x1600xf32>
    %94 = arith.addf %92, %93 : vector<8x1600xf32>
    %cst_50 = arith.constant dense<0.000000e+00> : vector<8xf32>
    %95 = vector.multi_reduction <add>, %94, %cst_50 [1] : vector<8x1600xf32> to vector<8xf32>
    %96 = vector.shape_cast %95 : vector<8xf32> to vector<8x1xf32>
    %cst_51 = arith.constant 1.600000e+03 : f32
    %97 = vector.broadcast %cst_51 : f32 to vector<8x1xf32>
    %98 = arith.divf %96, %97 : vector<8x1xf32>
    %99 = vector.broadcast %98 : vector<8x1xf32> to vector<8x1600xf32>
    %100 = arith.subf %94, %99 : vector<8x1600xf32>
    %101 = arith.mulf %100, %100 : vector<8x1600xf32>
    %cst_52 = arith.constant dense<0.000000e+00> : vector<8xf32>
    %102 = vector.multi_reduction <add>, %101, %cst_52 [1] : vector<8x1600xf32> to vector<8xf32>
    %103 = vector.shape_cast %102 : vector<8xf32> to vector<8x1xf32>
    %cst_53 = arith.constant 1.600000e+03 : f32
    %104 = vector.broadcast %cst_53 : f32 to vector<8x1xf32>
    %105 = arith.divf %103, %104 : vector<8x1xf32>
    %cst_54 = arith.constant 9.99999974E-6 : f32
    %106 = vector.broadcast %cst_54 : f32 to vector<8x1xf32>
    %107 = arith.addf %105, %106 : vector<8x1xf32>
    %108 = math.rsqrt %107 : vector<8x1xf32>
    %109 = arith.mulf %2, %108 : vector<8x1xf32>
    %110 = vector.broadcast %109 : vector<8x1xf32> to vector<8x1600xf32>
    %111 = arith.mulf %100, %110 : vector<8x1600xf32>
    %112 = vector.broadcast %3 : vector<8x1xf32> to vector<8x1600xf32>
    %113 = arith.addf %111, %112 : vector<8x1600xf32>
    %114 = vector.extract_strided_slice %113 {offsets = [0, 0], sizes = [8, 100], strides = [1, 1]} : vector<8x1600xf32> to vector<8x100xf32>
    %cst_55 = arith.constant dense<0xFF800000> : vector<8xf32>
    %115 = vector.multi_reduction <maximumf>, %114, %cst_55 [1] : vector<8x100xf32> to vector<8xf32>
    %116 = vector.shape_cast %115 : vector<8xf32> to vector<8x1xf32>
    %c0_56 = arith.constant 0 : index
    %c0_57 = arith.constant 0 : index
    %117 = vector.load %arg7[%c0_56, %c0_57] : memref<8x16xf32, #tpu.memory_space<vmem>>, vector<8x1xf32>
    tpu.vector_store %arg7[%c0_56, %c0_57], %116 {strides = array<i32>} : memref<8x16xf32, #tpu.memory_space<vmem>>, vector<8x1xf32>,
    %118 = vector.extract_strided_slice %113 {offsets = [0, 100], sizes = [8, 100], strides = [1, 1]} : vector<8x1600xf32> to vector<8x100xf32>
    %cst_58 = arith.constant dense<0xFF800000> : vector<8xf32>
    %119 = vector.multi_reduction <maximumf>, %118, %cst_58 [1] : vector<8x100xf32> to vector<8xf32>
    %120 = vector.shape_cast %119 : vector<8xf32> to vector<8x1xf32>
    %c0_59 = arith.constant 0 : index
    %c1_60 = arith.constant 1 : index
    %121 = vector.load %arg7[%c0_59, %c1_60] : memref<8x16xf32, #tpu.memory_space<vmem>>, vector<8x1xf32>
    tpu.vector_store %arg7[%c0_59, %c1_60], %120 {strides = array<i32>} : memref<8x16xf32, #tpu.memory_space<vmem>>, vector<8x1xf32>,
    %122 = vector.extract_strided_slice %113 {offsets = [0, 200], sizes = [8, 100], strides = [1, 1]} : vector<8x1600xf32> to vector<8x100xf32>
    %cst_61 = arith.constant dense<0xFF800000> : vector<8xf32>
    %123 = vector.multi_reduction <maximumf>, %122, %cst_61 [1] : vector<8x100xf32> to vector<8xf32>
    %124 = vector.shape_cast %123 : vector<8xf32> to vector<8x1xf32>
    %c0_62 = arith.constant 0 : index
    %c2_63 = arith.constant 2 : index
    %125 = vector.load %arg7[%c0_62, %c2_63] : memref<8x16xf32, #tpu.memory_space<vmem>>, vector<8x1xf32>
    tpu.vector_store %arg7[%c0_62, %c2_63], %124 {strides = array<i32>} : memref<8x16xf32, #tpu.memory_space<vmem>>, vector<8x1xf32>,
    %126 = vector.extract_strided_slice %113 {offsets = [0, 300], sizes = [8, 100], strides = [1, 1]} : vector<8x1600xf32> to vector<8x100xf32>
    %cst_64 = arith.constant dense<0xFF800000> : vector<8xf32>
    %127 = vector.multi_reduction <maximumf>, %126, %cst_64 [1] : vector<8x100xf32> to vector<8xf32>
    %128 = vector.shape_cast %127 : vector<8xf32> to vector<8x1xf32>
    %c0_65 = arith.constant 0 : index
    %c3_66 = arith.constant 3 : index
    %129 = vector.load %arg7[%c0_65, %c3_66] : memref<8x16xf32, #tpu.memory_space<vmem>>, vector<8x1xf32>
    tpu.vector_store %arg7[%c0_65, %c3_66], %128 {strides = array<i32>} : memref<8x16xf32, #tpu.memory_space<vmem>>, vector<8x1xf32>,
    %130 = vector.extract_strided_slice %113 {offsets = [0, 400], sizes = [8, 100], strides = [1, 1]} : vector<8x1600xf32> to vector<8x100xf32>
    %cst_67 = arith.constant dense<0xFF800000> : vector<8xf32>
    %131 = vector.multi_reduction <maximumf>, %130, %cst_67 [1] : vector<8x100xf32> to vector<8xf32>
    %132 = vector.shape_cast %131 : vector<8xf32> to vector<8x1xf32>
    %c0_68 = arith.constant 0 : index
    %c4_69 = arith.constant 4 : index
    %133 = vector.load %arg7[%c0_68, %c4_69] : memref<8x16xf32, #tpu.memory_space<vmem>>, vector<8x1xf32>
    tpu.vector_store %arg7[%c0_68, %c4_69], %132 {strides = array<i32>} : memref<8x16xf32, #tpu.memory_space<vmem>>, vector<8x1xf32>,
    %134 = vector.extract_strided_slice %113 {offsets = [0, 500], sizes = [8, 100], strides = [1, 1]} : vector<8x1600xf32> to vector<8x100xf32>
    %cst_70 = arith.constant dense<0xFF800000> : vector<8xf32>
    %135 = vector.multi_reduction <maximumf>, %134, %cst_70 [1] : vector<8x100xf32> to vector<8xf32>
    %136 = vector.shape_cast %135 : vector<8xf32> to vector<8x1xf32>
    %c0_71 = arith.constant 0 : index
    %c5_72 = arith.constant 5 : index
    %137 = vector.load %arg7[%c0_71, %c5_72] : memref<8x16xf32, #tpu.memory_space<vmem>>, vector<8x1xf32>
    tpu.vector_store %arg7[%c0_71, %c5_72], %136 {strides = array<i32>} : memref<8x16xf32, #tpu.memory_space<vmem>>, vector<8x1xf32>,
    %138 = vector.extract_strided_slice %113 {offsets = [0, 600], sizes = [8, 100], strides = [1, 1]} : vector<8x1600xf32> to vector<8x100xf32>
    %cst_73 = arith.constant dense<0xFF800000> : vector<8xf32>
    %139 = vector.multi_reduction <maximumf>, %138, %cst_73 [1] : vector<8x100xf32> to vector<8xf32>
    %140 = vector.shape_cast %139 : vector<8xf32> to vector<8x1xf32>
    %c0_74 = arith.constant 0 : index
    %c6_75 = arith.constant 6 : index
    %141 = vector.load %arg7[%c0_74, %c6_75] : memref<8x16xf32, #tpu.memory_space<vmem>>, vector<8x1xf32>
    tpu.vector_store %arg7[%c0_74, %c6_75], %140 {strides = array<i32>} : memref<8x16xf32, #tpu.memory_space<vmem>>, vector<8x1xf32>,
    %142 = vector.extract_strided_slice %113 {offsets = [0, 700], sizes = [8, 100], strides = [1, 1]} : vector<8x1600xf32> to vector<8x100xf32>
    %cst_76 = arith.constant dense<0xFF800000> : vector<8xf32>
    %143 = vector.multi_reduction <maximumf>, %142, %cst_76 [1] : vector<8x100xf32> to vector<8xf32>
    %144 = vector.shape_cast %143 : vector<8xf32> to vector<8x1xf32>
    %c0_77 = arith.constant 0 : index
    %c7_78 = arith.constant 7 : index
    %145 = vector.load %arg7[%c0_77, %c7_78] : memref<8x16xf32, #tpu.memory_space<vmem>>, vector<8x1xf32>
    tpu.vector_store %arg7[%c0_77, %c7_78], %144 {strides = array<i32>} : memref<8x16xf32, #tpu.memory_space<vmem>>, vector<8x1xf32>,
    %146 = vector.extract_strided_slice %113 {offsets = [0, 800], sizes = [8, 100], strides = [1, 1]} : vector<8x1600xf32> to vector<8x100xf32>
    %cst_79 = arith.constant dense<0xFF800000> : vector<8xf32>
    %147 = vector.multi_reduction <maximumf>, %146, %cst_79 [1] : vector<8x100xf32> to vector<8xf32>
    %148 = vector.shape_cast %147 : vector<8xf32> to vector<8x1xf32>
    %c0_80 = arith.constant 0 : index
    %c8_81 = arith.constant 8 : index
    %149 = vector.load %arg7[%c0_80, %c8_81] : memref<8x16xf32, #tpu.memory_space<vmem>>, vector<8x1xf32>
    tpu.vector_store %arg7[%c0_80, %c8_81], %148 {strides = array<i32>} : memref<8x16xf32, #tpu.memory_space<vmem>>, vector<8x1xf32>,
    %150 = vector.extract_strided_slice %113 {offsets = [0, 900], sizes = [8, 100], strides = [1, 1]} : vector<8x1600xf32> to vector<8x100xf32>
    %cst_82 = arith.constant dense<0xFF800000> : vector<8xf32>
    %151 = vector.multi_reduction <maximumf>, %150, %cst_82 [1] : vector<8x100xf32> to vector<8xf32>
    %152 = vector.shape_cast %151 : vector<8xf32> to vector<8x1xf32>
    %c0_83 = arith.constant 0 : index
    %c9_84 = arith.constant 9 : index
    %153 = vector.load %arg7[%c0_83, %c9_84] : memref<8x16xf32, #tpu.memory_space<vmem>>, vector<8x1xf32>
    tpu.vector_store %arg7[%c0_83, %c9_84], %152 {strides = array<i32>} : memref<8x16xf32, #tpu.memory_space<vmem>>, vector<8x1xf32>,
    %154 = vector.extract_strided_slice %113 {offsets = [0, 1000], sizes = [8, 100], strides = [1, 1]} : vector<8x1600xf32> to vector<8x100xf32>
    %cst_85 = arith.constant dense<0xFF800000> : vector<8xf32>
    %155 = vector.multi_reduction <maximumf>, %154, %cst_85 [1] : vector<8x100xf32> to vector<8xf32>
    %156 = vector.shape_cast %155 : vector<8xf32> to vector<8x1xf32>
    %c0_86 = arith.constant 0 : index
    %c10_87 = arith.constant 10 : index
    %157 = vector.load %arg7[%c0_86, %c10_87] : memref<8x16xf32, #tpu.memory_space<vmem>>, vector<8x1xf32>
    tpu.vector_store %arg7[%c0_86, %c10_87], %156 {strides = array<i32>} : memref<8x16xf32, #tpu.memory_space<vmem>>, vector<8x1xf32>,
    %158 = vector.extract_strided_slice %113 {offsets = [0, 1100], sizes = [8, 100], strides = [1, 1]} : vector<8x1600xf32> to vector<8x100xf32>
    %cst_88 = arith.constant dense<0xFF800000> : vector<8xf32>
    %159 = vector.multi_reduction <maximumf>, %158, %cst_88 [1] : vector<8x100xf32> to vector<8xf32>
    %160 = vector.shape_cast %159 : vector<8xf32> to vector<8x1xf32>
    %c0_89 = arith.constant 0 : index
    %c11_90 = arith.constant 11 : index
    %161 = vector.load %arg7[%c0_89, %c11_90] : memref<8x16xf32, #tpu.memory_space<vmem>>, vector<8x1xf32>
    tpu.vector_store %arg7[%c0_89, %c11_90], %160 {strides = array<i32>} : memref<8x16xf32, #tpu.memory_space<vmem>>, vector<8x1xf32>,
    %162 = vector.extract_strided_slice %113 {offsets = [0, 1200], sizes = [8, 100], strides = [1, 1]} : vector<8x1600xf32> to vector<8x100xf32>
    %cst_91 = arith.constant dense<0xFF800000> : vector<8xf32>
    %163 = vector.multi_reduction <maximumf>, %162, %cst_91 [1] : vector<8x100xf32> to vector<8xf32>
    %164 = vector.shape_cast %163 : vector<8xf32> to vector<8x1xf32>
    %c0_92 = arith.constant 0 : index
    %c12_93 = arith.constant 12 : index
    %165 = vector.load %arg7[%c0_92, %c12_93] : memref<8x16xf32, #tpu.memory_space<vmem>>, vector<8x1xf32>
    tpu.vector_store %arg7[%c0_92, %c12_93], %164 {strides = array<i32>} : memref<8x16xf32, #tpu.memory_space<vmem>>, vector<8x1xf32>,
    %166 = vector.extract_strided_slice %113 {offsets = [0, 1300], sizes = [8, 100], strides = [1, 1]} : vector<8x1600xf32> to vector<8x100xf32>
    %cst_94 = arith.constant dense<0xFF800000> : vector<8xf32>
    %167 = vector.multi_reduction <maximumf>, %166, %cst_94 [1] : vector<8x100xf32> to vector<8xf32>
    %168 = vector.shape_cast %167 : vector<8xf32> to vector<8x1xf32>
    %c0_95 = arith.constant 0 : index
    %c13_96 = arith.constant 13 : index
    %169 = vector.load %arg7[%c0_95, %c13_96] : memref<8x16xf32, #tpu.memory_space<vmem>>, vector<8x1xf32>
    tpu.vector_store %arg7[%c0_95, %c13_96], %168 {strides = array<i32>} : memref<8x16xf32, #tpu.memory_space<vmem>>, vector<8x1xf32>,
    %170 = vector.extract_strided_slice %113 {offsets = [0, 1400], sizes = [8, 100], strides = [1, 1]} : vector<8x1600xf32> to vector<8x100xf32>
    %cst_97 = arith.constant dense<0xFF800000> : vector<8xf32>
    %171 = vector.multi_reduction <maximumf>, %170, %cst_97 [1] : vector<8x100xf32> to vector<8xf32>
    %172 = vector.shape_cast %171 : vector<8xf32> to vector<8x1xf32>
    %c0_98 = arith.constant 0 : index
    %c14_99 = arith.constant 14 : index
    %173 = vector.load %arg7[%c0_98, %c14_99] : memref<8x16xf32, #tpu.memory_space<vmem>>, vector<8x1xf32>
    tpu.vector_store %arg7[%c0_98, %c14_99], %172 {strides = array<i32>} : memref<8x16xf32, #tpu.memory_space<vmem>>, vector<8x1xf32>,
    %174 = vector.extract_strided_slice %113 {offsets = [0, 1500], sizes = [8, 100], strides = [1, 1]} : vector<8x1600xf32> to vector<8x100xf32>
    %cst_100 = arith.constant dense<0xFF800000> : vector<8xf32>
    %175 = vector.multi_reduction <maximumf>, %174, %cst_100 [1] : vector<8x100xf32> to vector<8xf32>
    %176 = vector.shape_cast %175 : vector<8xf32> to vector<8x1xf32>
    %c0_101 = arith.constant 0 : index
    %c15_102 = arith.constant 15 : index
    %177 = vector.load %arg7[%c0_101, %c15_102] : memref<8x16xf32, #tpu.memory_space<vmem>>, vector<8x1xf32>
    tpu.vector_store %arg7[%c0_101, %c15_102], %176 {strides = array<i32>} : memref<8x16xf32, #tpu.memory_space<vmem>>, vector<8x1xf32>,
    %c0_103 = arith.constant 0 : index
    %c0_104 = arith.constant 0 : index
    %178 = vector.load %arg6[%c0_103, %c0_104] : memref<8x16xf32, #tpu.memory_space<vmem>>, vector<8x8xf32>
    %c0_105 = arith.constant 0 : index
    %c0_106 = arith.constant 0 : index
    %179 = vector.load %arg7[%c0_105, %c0_106] : memref<8x16xf32, #tpu.memory_space<vmem>>, vector<8x8xf32>
    %180 = vector.shape_cast %178 : vector<8x8xf32> to vector<8x8x1xf32>
    %181 = vector.shape_cast %179 : vector<8x8xf32> to vector<8x1x8xf32>
    %182 = vector.broadcast %180 : vector<8x8x1xf32> to vector<8x8x8xf32>
    %183 = vector.broadcast %181 : vector<8x1x8xf32> to vector<8x8x8xf32>
    %184 = arith.mulf %182, %183 : vector<8x8x8xf32>
    %c0_107 = arith.constant 0 : index
    %c0_108 = arith.constant 0 : index
    %c0_109 = arith.constant 0 : index
    %c0_110 = arith.constant 0 : index
    %185 = vector.load %arg5[%c0_107, %c0_108, %c0_109, %c0_110] : memref<2x8x8x8xf32, #tpu.memory_space<vmem>>, vector<1x8x8x8xf32>
    %186 = vector.shape_cast %185 : vector<1x8x8x8xf32> to vector<8x8x8xf32>
    %187 = vector.shape_cast %184 : vector<8x8x8xf32> to vector<1x8x8x8xf32>
    tpu.vector_store %arg5[%c0_107, %c0_108, %c0_109, %c0_110], %187 {strides = array<i32>} : memref<2x8x8x8xf32, #tpu.memory_space<vmem>>, vector<1x8x8x8xf32>,
    %c0_111 = arith.constant 0 : index
    %c8_112 = arith.constant 8 : index
    %188 = vector.load %arg6[%c0_111, %c8_112] : memref<8x16xf32, #tpu.memory_space<vmem>>, vector<8x8xf32>
    %c0_113 = arith.constant 0 : index
    %c8_114 = arith.constant 8 : index
    %189 = vector.load %arg7[%c0_113, %c8_114] : memref<8x16xf32, #tpu.memory_space<vmem>>, vector<8x8xf32>
    %190 = vector.shape_cast %188 : vector<8x8xf32> to vector<8x8x1xf32>
    %191 = vector.shape_cast %189 : vector<8x8xf32> to vector<8x1x8xf32>
    %192 = vector.broadcast %190 : vector<8x8x1xf32> to vector<8x8x8xf32>
    %193 = vector.broadcast %191 : vector<8x1x8xf32> to vector<8x8x8xf32>
    %194 = arith.mulf %192, %193 : vector<8x8x8xf32>
    %c1_115 = arith.constant 1 : index
    %c0_116 = arith.constant 0 : index
    %c0_117 = arith.constant 0 : index
    %c0_118 = arith.constant 0 : index
    %195 = vector.load %arg5[%c1_115, %c0_116, %c0_117, %c0_118] : memref<2x8x8x8xf32, #tpu.memory_space<vmem>>, vector<1x8x8x8xf32>
    %196 = vector.shape_cast %195 : vector<1x8x8x8xf32> to vector<8x8x8xf32>
    %197 = vector.shape_cast %194 : vector<8x8x8xf32> to vector<1x8x8x8xf32>
    tpu.vector_store %arg5[%c1_115, %c0_116, %c0_117, %c0_118], %197 {strides = array<i32>} : memref<2x8x8x8xf32, #tpu.memory_space<vmem>>, vector<1x8x8x8xf32>,
    return
  }
  func.func @transform_0(%arg0: i32) -> (i32, i32) {
    %c0_i32 = arith.constant 0 : i32
    %c0_i32_0 = arith.constant 0 : i32
    %c0_i32_1 = arith.constant 0 : i32
    return %c0_i32, %c0_i32_0 : i32, i32
  }
  func.func @transform_1(%arg0: i32) -> (i32, i32) {
    %c0_i32 = arith.constant 0 : i32
    %c0_i32_0 = arith.constant 0 : i32
    %c0_i32_1 = arith.constant 0 : i32
    return %c0_i32, %c0_i32_0 : i32, i32
  }
  func.func @transform_2(%arg0: i32) -> (i32, i32) {
    %c0_i32 = arith.constant 0 : i32
    %c0_i32_0 = arith.constant 0 : i32
    %c0_i32_1 = arith.constant 0 : i32
    return %c0_i32, %c0_i32_0 : i32, i32
  }
  func.func @transform_3(%arg0: i32) -> (i32, i32) {
    %c0_i32 = arith.constant 0 : i32
    %c0_i32_0 = arith.constant 0 : i32
    %c0_i32_1 = arith.constant 0 : i32
    return %c0_i32, %c0_i32_0 : i32, i32
  }
  func.func @transform_4(%arg0: i32) -> (i32, i32, i32, i32) {
    %c0_i32 = arith.constant 0 : i32
    %c0_i32_0 = arith.constant 0 : i32
    %c0_i32_1 = arith.constant 0 : i32
    %c0_i32_2 = arith.constant 0 : i32
    %c0_i32_3 = arith.constant 0 : i32
    return %c0_i32, %c0_i32_0, %c0_i32_1, %c0_i32_2 : i32, i32, i32, i32
  }
}

</mosaic_0001>

<llo_original>
// kernel: input_conv_forward.1
$region0: #{input_conv_forward.1}
  #allocation0 [shape = 'u32[]', space=smem, size = 0x4, offset = 0x4, fixed_abs, tag = 'smem constant byte address 0x4 - core index']
  #allocation1 [shape = 'u32[144,128]{1,0:T(1,128)}', space=vmem, size = 0x12000, scoped, tag = 'internal scratch']
  #allocation2 [shape = 'f32[8,16]{1,0:T(8,128)}', space=vmem, size = 0x1000, scoped, tag = 'scratch operand']
  #allocation3 [shape = 'f32[8,16]{1,0:T(8,128)}', space=vmem, size = 0x1000, scoped, tag = 'scratch operand']
  %s0 = inlined_call_operand.vmem [shape: f32[8,256], index: 0, kind: input, shape index: {}]
  %s1 = inlined_call_operand.vmem [shape: f32[8,3], index: 1, kind: input, shape index: {}]
  %s2 = inlined_call_operand.vmem [shape: f32[256,1600], index: 2, kind: input, shape index: {}]
  %s3 = inlined_call_operand.vmem [shape: f32[256,1600], index: 3, kind: input, shape index: {}]
  %s4 = inlined_call_operand.hbm [shape: f32[2,8,8,8], index: 4, kind: output, shape index: {}]
  %s5 = sld [smem:[#allocation0]]
  $region26: #{input_conv_forward.1} parent=0
    _
  %s7 = ssub.s32 1, %s5
  %s8 = scalar_select 0, %s7, %s5
  $region1: #{input_conv_forward.1} parent=0
    #allocation4 [shape = 'u8[65536]{0}', space=vmem, size = 0x10000, scoped, tag = 'output window, operand 0, single buffered']
    #allocation5 [shape = 's32[1]{0}', space=sflag, size = 0x4, scoped, tag = 'scoped memory for input_conv_forward.1']
    %9 = vsyncpa [#allocation5], 0
    // Predicated region
    $region2: #{input_conv_forward.1} parent=1 // pred_check
      _
    $region3: #{input_conv_forward.1} parent=1 // pred_check_branch
      %11 = sbr.rel (0) target = $region5
    $region4: #{input_conv_forward.1} parent=1 // pred_region
      _
    $region5: #{input_conv_forward.1} parent=1 // pred_fallthru
      _
    // Predicated region
    $region6: #{input_conv_forward.1} parent=1 // pred_check
      _
    $region7: #{input_conv_forward.1} parent=1 // pred_check_branch
      %13 = sbr.rel (0) target = $region9
    $region8: #{input_conv_forward.1} parent=1 // pred_region
      _
    $region9: #{input_conv_forward.1} parent=1 // pred_fallthru
      _
    // Predicated region
    $region10: #{input_conv_forward.1} parent=1 // pred_check
      _
    $region11: #{input_conv_forward.1} parent=1 // pred_check_branch
      %15 = sbr.rel (0) target = $region13
    $region12: #{input_conv_forward.1} parent=1 // pred_region
      _
    $region13: #{input_conv_forward.1} parent=1 // pred_fallthru
      _
    // Predicated region
    $region14: #{input_conv_forward.1} parent=1 // pred_check
      _
    $region15: #{input_conv_forward.1} parent=1 // pred_check_branch
      %17 = sbr.rel (0) target = $region17
    $region16: #{input_conv_forward.1} parent=1 // pred_region
      _
    $region17: #{input_conv_forward.1} parent=1 // pred_fallthru
      _
    %v18 = vld [vmem:[%s0] sm:$0xff]
    %v19 = vld [vmem:[%s0 + $0x8] sm:$0xff]
    %v20 = vld [vmem:[%s1] sm:$0xff]
    %v21 = vld [vmem:[%s2] sm:$0xff]
    %v22 = vld [vmem:[%s2 + $0x8] sm:$0xff]
    %v23 = vld [vmem:[%s2 + $0x10] sm:$0xff]
    %v24 = vld [vmem:[%s2 + $0x18] sm:$0xff]
    %v25 = vld [vmem:[%s2 + $0x20] sm:$0xff]
    %v26 = vld [vmem:[%s2 + $0x28] sm:$0xff]
    %v27 = vld [vmem:[%s2 + $0x30] sm:$0xff]
    %v28 = vld [vmem:[%s2 + $0x38] sm:$0xff]
    %v29 = vld [vmem:[%s2 + $0x40] sm:$0xff]
    %v30 = vld [vmem:[%s2 + $0x48] sm:$0xff]
    %v31 = vld [vmem:[%s2 + $0x50] sm:$0xff]
    %v32 = vld [vmem:[%s2 + $0x58] sm:$0xff]
    %v33 = vld [vmem:[%s2 + $0x60] sm:$0xff]
    %v34 = vld [vmem:[%s2 + $0x68] sm:$0xff]
    %v35 = vld [vmem:[%s2 + $0x70] sm:$0xff]
    %v36 = vld [vmem:[%s2 + $0x78] sm:$0xff]
    %v37 = vld [vmem:[%s2 + $0x80] sm:$0xff]
    %v38 = vld [vmem:[%s2 + $0x88] sm:$0xff]
    %v39 = vld [vmem:[%s2 + $0x90] sm:$0xff]
    %v40 = vld [vmem:[%s2 + $0x98] sm:$0xff]
    %v41 = vld [vmem:[%s2 + $0xa0] sm:$0xff]
    %v42 = vld [vmem:[%s2 + $0xa8] sm:$0xff]
    %v43 = vld [vmem:[%s2 + $0xb0] sm:$0xff]
    %v44 = vld [vmem:[%s2 + $0xb8] sm:$0xff]
    %v45 = vld [vmem:[%s2 + $0xc0] sm:$0xff]
    %v46 = vld [vmem:[%s2 + $0xc8] sm:$0xff]
    %v47 = vld [vmem:[%s2 + $0xd0] sm:$0xff]
    %v48 = vld [vmem:[%s2 + $0xd8] sm:$0xff]
    %v49 = vld [vmem:[%s2 + $0xe0] sm:$0xff]
    %v50 = vld [vmem:[%s2 + $0xe8] sm:$0xff]
    %v51 = vld [vmem:[%s2 + $0xf0] sm:$0xff]
    %v52 = vld [vmem:[%s2 + $0xf8] sm:$0xff]
    %v53 = vld [vmem:[%s2 + $0x100] sm:$0xff]
    %v54 = vld [vmem:[%s2 + $0x108] sm:$0xff]
    %v55 = vld [vmem:[%s2 + $0x110] sm:$0xff]
    %v56 = vld [vmem:[%s2 + $0x118] sm:$0xff]
    %v57 = vld [vmem:[%s2 + $0x120] sm:$0xff]
    %v58 = vld [vmem:[%s2 + $0x128] sm:$0xff]
    %v59 = vld [vmem:[%s2 + $0x130] sm:$0xff]
    %v60 = vld [vmem:[%s2 + $0x138] sm:$0xff]
    %v61 = vld [vmem:[%s2 + $0x140] sm:$0xff]
    %v62 = vld [vmem:[%s2 + $0x148] sm:$0xff]
    %v63 = vld [vmem:[%s2 + $0x150] sm:$0xff]
    %v64 = vld [vmem:[%s2 + $0x158] sm:$0xff]
    %v65 = vld [vmem:[%s2 + $0x160] sm:$0xff]
    %v66 = vld [vmem:[%s2 + $0x168] sm:$0xff]
    %v67 = vld [vmem:[%s2 + $0x170] sm:$0xff]
    %v68 = vld [vmem:[%s2 + $0x178] sm:$0xff]
    %v69 = vld [vmem:[%s2 + $0x180] sm:$0xff]
    %v70 = vld [vmem:[%s2 + $0x188] sm:$0xff]
    %v71 = vld [vmem:[%s2 + $0x190] sm:$0xff]
    %v72 = vld [vmem:[%s2 + $0x198] sm:$0xff]
    %v73 = vld [vmem:[%s2 + $0x1a0] sm:$0xff]
    %v74 = vld [vmem:[%s2 + $0x1a8] sm:$0xff]
    %v75 = vld [vmem:[%s2 + $0x1b0] sm:$0xff]
    %v76 = vld [vmem:[%s2 + $0x1b8] sm:$0xff]
    %v77 = vld [vmem:[%s2 + $0x1c0] sm:$0xff]
    %v78 = vld [vmem:[%s2 + $0x1c8] sm:$0xff]
    %v79 = vld [vmem:[%s2 + $0x1d0] sm:$0xff]
    %v80 = vld [vmem:[%s2 + $0x1d8] sm:$0xff]
    %v81 = vld [vmem:[%s2 + $0x1e0] sm:$0xff]
    %v82 = vld [vmem:[%s2 + $0x1e8] sm:$0xff]
    %v83 = vld [vmem:[%s2 + $0x1f0] sm:$0xff]
    %v84 = vld [vmem:[%s2 + $0x1f8] sm:$0xff]
    %v85 = vld [vmem:[%s2 + $0x200] sm:$0xff]
    %v86 = vld [vmem:[%s2 + $0x208] sm:$0xff]
    %v87 = vld [vmem:[%s2 + $0x210] sm:$0xff]
    %v88 = vld [vmem:[%s2 + $0x218] sm:$0xff]
    %v89 = vld [vmem:[%s2 + $0x220] sm:$0xff]
    %v90 = vld [vmem:[%s2 + $0x228] sm:$0xff]
    %v91 = vld [vmem:[%s2 + $0x230] sm:$0xff]
    %v92 = vld [vmem:[%s2 + $0x238] sm:$0xff]
    %v93 = vld [vmem:[%s2 + $0x240] sm:$0xff]
    %v94 = vld [vmem:[%s2 + $0x248] sm:$0xff]
    %v95 = vld [vmem:[%s2 + $0x250] sm:$0xff]
    %v96 = vld [vmem:[%s2 + $0x258] sm:$0xff]
    %v97 = vld [vmem:[%s2 + $0x260] sm:$0xff]
    %v98 = vld [vmem:[%s2 + $0x268] sm:$0xff]
    %v99 = vld [vmem:[%s2 + $0x270] sm:$0xff]
    %v100 = vld [vmem:[%s2 + $0x278] sm:$0xff]
    %v101 = vld [vmem:[%s2 + $0x280] sm:$0xff]
    %v102 = vld [vmem:[%s2 + $0x288] sm:$0xff]
    %v103 = vld [vmem:[%s2 + $0x290] sm:$0xff]
    %v104 = vld [vmem:[%s2 + $0x298] sm:$0xff]
    %v105 = vld [vmem:[%s2 + $0x2a0] sm:$0xff]
    %v106 = vld [vmem:[%s2 + $0x2a8] sm:$0xff]
    %v107 = vld [vmem:[%s2 + $0x2b0] sm:$0xff]
    %v108 = vld [vmem:[%s2 + $0x2b8] sm:$0xff]
    %v109 = vld [vmem:[%s2 + $0x2c0] sm:$0xff]
    %v110 = vld [vmem:[%s2 + $0x2c8] sm:$0xff]
    %v111 = vld [vmem:[%s2 + $0x2d0] sm:$0xff]
    %v112 = vld [vmem:[%s2 + $0x2d8] sm:$0xff]
    %v113 = vld [vmem:[%s2 + $0x2e0] sm:$0xff]
    %v114 = vld [vmem:[%s2 + $0x2e8] sm:$0xff]
    %v115 = vld [vmem:[%s2 + $0x2f0] sm:$0xff]
    %v116 = vld [vmem:[%s2 + $0x2f8] sm:$0xff]
    %v117 = vld [vmem:[%s2 + $0x300] sm:$0xff]
    %v118 = vld [vmem:[%s2 + $0x308] sm:$0xff]
    %v119 = vld [vmem:[%s2 + $0x310] sm:$0xff]
    %v120 = vld [vmem:[%s2 + $0x318] sm:$0xff]
    %v121 = vld [vmem:[%s2 + $0x320] sm:$0xff]
    %v122 = vld [vmem:[%s2 + $0x328] sm:$0xff]
    %v123 = vld [vmem:[%s2 + $0x330] sm:$0xff]
    %v124 = vld [vmem:[%s2 + $0x338] sm:$0xff]
    %v125 = vld [vmem:[%s2 + $0x340] sm:$0xff]
    %v126 = vld [vmem:[%s2 + $0x348] sm:$0xff]
    %v127 = vld [vmem:[%s2 + $0x350] sm:$0xff]
    %v128 = vld [vmem:[%s2 + $0x358] sm:$0xff]
    %v129 = vld [vmem:[%s2 + $0x360] sm:$0xff]
    %v130 = vld [vmem:[%s2 + $0x368] sm:$0xff]
    %v131 = vld [vmem:[%s2 + $0x370] sm:$0xff]
    %v132 = vld [vmem:[%s2 + $0x378] sm:$0xff]
    %v133 = vld [vmem:[%s2 + $0x380] sm:$0xff]
    %v134 = vld [vmem:[%s2 + $0x388] sm:$0xff]
    %v135 = vld [vmem:[%s2 + $0x390] sm:$0xff]
    %v136 = vld [vmem:[%s2 + $0x398] sm:$0xff]
    %v137 = vld [vmem:[%s2 + $0x3a0] sm:$0xff]
    %v138 = vld [vmem:[%s2 + $0x3a8] sm:$0xff]
    %v139 = vld [vmem:[%s2 + $0x3b0] sm:$0xff]
    %v140 = vld [vmem:[%s2 + $0x3b8] sm:$0xff]
    %v141 = vld [vmem:[%s2 + $0x3c0] sm:$0xff]
    %v142 = vld [vmem:[%s2 + $0x3c8] sm:$0xff]
    %v143 = vld [vmem:[%s2 + $0x3d0] sm:$0xff]
    %v144 = vld [vmem:[%s2 + $0x3d8] sm:$0xff]
    %v145 = vld [vmem:[%s2 + $0x3e0] sm:$0xff]
    %v146 = vld [vmem:[%s2 + $0x3e8] sm:$0xff]
    %v147 = vld [vmem:[%s2 + $0x3f0] sm:$0xff]
    %v148 = vld [vmem:[%s2 + $0x3f8] sm:$0xff]
    %v149 = vld [vmem:[%s2 + $0x400] sm:$0xff]
    %v150 = vld [vmem:[%s2 + $0x408] sm:$0xff]
    %v151 = vld [vmem:[%s2 + $0x410] sm:$0xff]
    %v152 = vld [vmem:[%s2 + $0x418] sm:$0xff]
    %v153 = vld [vmem:[%s2 + $0x420] sm:$0xff]
    %v154 = vld [vmem:[%s2 + $0x428] sm:$0xff]
    %v155 = vld [vmem:[%s2 + $0x430] sm:$0xff]
    %v156 = vld [vmem:[%s2 + $0x438] sm:$0xff]
    %v157 = vld [vmem:[%s2 + $0x440] sm:$0xff]
    %v158 = vld [vmem:[%s2 + $0x448] sm:$0xff]
    %v159 = vld [vmem:[%s2 + $0x450] sm:$0xff]
    %v160 = vld [vmem:[%s2 + $0x458] sm:$0xff]
    %v161 = vld [vmem:[%s2 + $0x460] sm:$0xff]
    %v162 = vld [vmem:[%s2 + $0x468] sm:$0xff]
    %v163 = vld [vmem:[%s2 + $0x470] sm:$0xff]
    %v164 = vld [vmem:[%s2 + $0x478] sm:$0xff]
    %v165 = vld [vmem:[%s2 + $0x480] sm:$0xff]
    %v166 = vld [vmem:[%s2 + $0x488] sm:$0xff]
    %v167 = vld [vmem:[%s2 + $0x490] sm:$0xff]
    %v168 = vld [vmem:[%s2 + $0x498] sm:$0xff]
    %v169 = vld [vmem:[%s2 + $0x4a0] sm:$0xff]
    %v170 = vld [vmem:[%s2 + $0x4a8] sm:$0xff]
    %v171 = vld [vmem:[%s2 + $0x4b0] sm:$0xff]
    %v172 = vld [vmem:[%s2 + $0x4b8] sm:$0xff]
    %v173 = vld [vmem:[%s2 + $0x4c0] sm:$0xff]
    %v174 = vld [vmem:[%s2 + $0x4c8] sm:$0xff]
    %v175 = vld [vmem:[%s2 + $0x4d0] sm:$0xff]
    %v176 = vld [vmem:[%s2 + $0x4d8] sm:$0xff]
    %v177 = vld [vmem:[%s2 + $0x4e0] sm:$0xff]
    %v178 = vld [vmem:[%s2 + $0x4e8] sm:$0xff]
    %v179 = vld [vmem:[%s2 + $0x4f0] sm:$0xff]
    %v180 = vld [vmem:[%s2 + $0x4f8] sm:$0xff]
    %v181 = vld [vmem:[%s2 + $0x500] sm:$0xff]
    %v182 = vld [vmem:[%s2 + $0x508] sm:$0xff]
    %v183 = vld [vmem:[%s2 + $0x510] sm:$0xff]
    %v184 = vld [vmem:[%s2 + $0x518] sm:$0xff]
    %v185 = vld [vmem:[%s2 + $0x520] sm:$0xff]
    %v186 = vld [vmem:[%s2 + $0x528] sm:$0xff]
    %v187 = vld [vmem:[%s2 + $0x530] sm:$0xff]
    %v188 = vld [vmem:[%s2 + $0x538] sm:$0xff]
    %v189 = vld [vmem:[%s2 + $0x540] sm:$0xff]
    %v190 = vld [vmem:[%s2 + $0x548] sm:$0xff]
    %v191 = vld [vmem:[%s2 + $0x550] sm:$0xff]
    %v192 = vld [vmem:[%s2 + $0x558] sm:$0xff]
    %v193 = vld [vmem:[%s2 + $0x560] sm:$0xff]
    %v194 = vld [vmem:[%s2 + $0x568] sm:$0xff]
    %v195 = vld [vmem:[%s2 + $0x570] sm:$0xff]
    %v196 = vld [vmem:[%s2 + $0x578] sm:$0xff]
    %v197 = vld [vmem:[%s2 + $0x580] sm:$0xff]
    %v198 = vld [vmem:[%s2 + $0x588] sm:$0xff]
    %v199 = vld [vmem:[%s2 + $0x590] sm:$0xff]
    %v200 = vld [vmem:[%s2 + $0x598] sm:$0xff]
    %v201 = vld [vmem:[%s2 + $0x5a0] sm:$0xff]
    %v202 = vld [vmem:[%s2 + $0x5a8] sm:$0xff]
    %v203 = vld [vmem:[%s2 + $0x5b0] sm:$0xff]
    %v204 = vld [vmem:[%s2 + $0x5b8] sm:$0xff]
    %v205 = vld [vmem:[%s2 + $0x5c0] sm:$0xff]
    %v206 = vld [vmem:[%s2 + $0x5c8] sm:$0xff]
    %v207 = vld [vmem:[%s2 + $0x5d0] sm:$0xff]
    %v208 = vld [vmem:[%s2 + $0x5d8] sm:$0xff]
    %v209 = vld [vmem:[%s2 + $0x5e0] sm:$0xff]
    %v210 = vld [vmem:[%s2 + $0x5e8] sm:$0xff]
    %v211 = vld [vmem:[%s2 + $0x5f0] sm:$0xff]
    %v212 = vld [vmem:[%s2 + $0x5f8] sm:$0xff]
    %v213 = vld [vmem:[%s2 + $0x600] sm:$0xff]
    %v214 = vld [vmem:[%s2 + $0x608] sm:$0xff]
    %v215 = vld [vmem:[%s2 + $0x610] sm:$0xff]
    %v216 = vld [vmem:[%s2 + $0x618] sm:$0xff]
    %v217 = vld [vmem:[%s2 + $0x620] sm:$0xff]
    %v218 = vld [vmem:[%s2 + $0x628] sm:$0xff]
    %v219 = vld [vmem:[%s2 + $0x630] sm:$0xff]
    %v220 = vld [vmem:[%s2 + $0x638] sm:$0xff]
    %v221 = vld [vmem:[%s2 + $0x640] sm:$0xff]
    %v222 = vld [vmem:[%s2 + $0x648] sm:$0xff]
    %v223 = vld [vmem:[%s2 + $0x650] sm:$0xff]
    %v224 = vld [vmem:[%s2 + $0x658] sm:$0xff]
    %v225 = vld [vmem:[%s2 + $0x660] sm:$0xff]
    %v226 = vld [vmem:[%s2 + $0x668] sm:$0xff]
    %v227 = vld [vmem:[%s2 + $0x670] sm:$0xff]
    %v228 = vld [vmem:[%s2 + $0x678] sm:$0xff]
    %v229 = vld [vmem:[%s2 + $0x680] sm:$0xff]
    %v230 = vld [vmem:[%s2 + $0x688] sm:$0xff]
    %v231 = vld [vmem:[%s2 + $0x690] sm:$0xff]
    %v232 = vld [vmem:[%s2 + $0x698] sm:$0xff]
    %v233 = vld [vmem:[%s2 + $0x6a0] sm:$0xff]
    %v234 = vld [vmem:[%s2 + $0x6a8] sm:$0xff]
    %v235 = vld [vmem:[%s2 + $0x6b0] sm:$0xff]
    %v236 = vld [vmem:[%s2 + $0x6b8] sm:$0xff]
    %v237 = vld [vmem:[%s2 + $0x6c0] sm:$0xff]
    %v238 = vld [vmem:[%s2 + $0x6c8] sm:$0xff]
    %v239 = vld [vmem:[%s2 + $0x6d0] sm:$0xff]
    %v240 = vld [vmem:[%s2 + $0x6d8] sm:$0xff]
    %v241 = vld [vmem:[%s2 + $0x6e0] sm:$0xff]
    %v242 = vld [vmem:[%s2 + $0x6e8] sm:$0xff]
    %v243 = vld [vmem:[%s2 + $0x6f0] sm:$0xff]
    %v244 = vld [vmem:[%s2 + $0x6f8] sm:$0xff]
    %v245 = vld [vmem:[%s2 + $0x700] sm:$0xff]
    %v246 = vld [vmem:[%s2 + $0x708] sm:$0xff]
    %v247 = vld [vmem:[%s2 + $0x710] sm:$0xff]
    %v248 = vld [vmem:[%s2 + $0x718] sm:$0xff]
    %v249 = vld [vmem:[%s2 + $0x720] sm:$0xff]
    %v250 = vld [vmem:[%s2 + $0x728] sm:$0xff]
    %v251 = vld [vmem:[%s2 + $0x730] sm:$0xff]
    %v252 = vld [vmem:[%s2 + $0x738] sm:$0xff]
    %v253 = vld [vmem:[%s2 + $0x740] sm:$0xff]
    %v254 = vld [vmem:[%s2 + $0x748] sm:$0xff]
    %v255 = vld [vmem:[%s2 + $0x750] sm:$0xff]
    %v256 = vld [vmem:[%s2 + $0x758] sm:$0xff]
    %v257 = vld [vmem:[%s2 + $0x760] sm:$0xff]
    %v258 = vld [vmem:[%s2 + $0x768] sm:$0xff]
    %v259 = vld [vmem:[%s2 + $0x770] sm:$0xff]
    %v260 = vld [vmem:[%s2 + $0x778] sm:$0xff]
    %v261 = vld [vmem:[%s2 + $0x780] sm:$0xff]
    %v262 = vld [vmem:[%s2 + $0x788] sm:$0xff]
    %v263 = vld [vmem:[%s2 + $0x790] sm:$0xff]
    %v264 = vld [vmem:[%s2 + $0x798] sm:$0xff]
    %v265 = vld [vmem:[%s2 + $0x7a0] sm:$0xff]
    %v266 = vld [vmem:[%s2 + $0x7a8] sm:$0xff]
    %v267 = vld [vmem:[%s2 + $0x7b0] sm:$0xff]
    %v268 = vld [vmem:[%s2 + $0x7b8] sm:$0xff]
    %v269 = vld [vmem:[%s2 + $0x7c0] sm:$0xff]
    %v270 = vld [vmem:[%s2 + $0x7c8] sm:$0xff]
    %v271 = vld [vmem:[%s2 + $0x7d0] sm:$0xff]
    %v272 = vld [vmem:[%s2 + $0x7d8] sm:$0xff]
    %v273 = vld [vmem:[%s2 + $0x7e0] sm:$0xff]
    %v274 = vld [vmem:[%s2 + $0x7e8] sm:$0xff]
    %v275 = vld [vmem:[%s2 + $0x7f0] sm:$0xff]
    %v276 = vld [vmem:[%s2 + $0x7f8] sm:$0xff]
    %v277 = vld [vmem:[%s2 + $0x800] sm:$0xff]
    %v278 = vld [vmem:[%s2 + $0x808] sm:$0xff]
    %v279 = vld [vmem:[%s2 + $0x810] sm:$0xff]
    %v280 = vld [vmem:[%s2 + $0x818] sm:$0xff]
    %v281 = vld [vmem:[%s2 + $0x820] sm:$0xff]
    %v282 = vld [vmem:[%s2 + $0x828] sm:$0xff]
    %v283 = vld [vmem:[%s2 + $0x830] sm:$0xff]
    %v284 = vld [vmem:[%s2 + $0x838] sm:$0xff]
    %v285 = vld [vmem:[%s2 + $0x840] sm:$0xff]
    %v286 = vld [vmem:[%s2 + $0x848] sm:$0xff]
    %v287 = vld [vmem:[%s2 + $0x850] sm:$0xff]
    %v288 = vld [vmem:[%s2 + $0x858] sm:$0xff]
    %v289 = vld [vmem:[%s2 + $0x860] sm:$0xff]
    %v290 = vld [vmem:[%s2 + $0x868] sm:$0xff]
    %v291 = vld [vmem:[%s2 + $0x870] sm:$0xff]
    %v292 = vld [vmem:[%s2 + $0x878] sm:$0xff]
    %v293 = vld [vmem:[%s2 + $0x880] sm:$0xff]
    %v294 = vld [vmem:[%s2 + $0x888] sm:$0xff]
    %v295 = vld [vmem:[%s2 + $0x890] sm:$0xff]
    %v296 = vld [vmem:[%s2 + $0x898] sm:$0xff]
    %v297 = vld [vmem:[%s2 + $0x8a0] sm:$0xff]
    %v298 = vld [vmem:[%s2 + $0x8a8] sm:$0xff]
    %v299 = vld [vmem:[%s2 + $0x8b0] sm:$0xff]
    %v300 = vld [vmem:[%s2 + $0x8b8] sm:$0xff]
    %v301 = vld [vmem:[%s2 + $0x8c0] sm:$0xff]
    %v302 = vld [vmem:[%s2 + $0x8c8] sm:$0xff]
    %v303 = vld [vmem:[%s2 + $0x8d0] sm:$0xff]
    %v304 = vld [vmem:[%s2 + $0x8d8] sm:$0xff]
    %v305 = vld [vmem:[%s2 + $0x8e0] sm:$0xff]
    %v306 = vld [vmem:[%s2 + $0x8e8] sm:$0xff]
    %v307 = vld [vmem:[%s2 + $0x8f0] sm:$0xff]
    %v308 = vld [vmem:[%s2 + $0x8f8] sm:$0xff]
    %v309 = vld [vmem:[%s2 + $0x900] sm:$0xff]
    %v310 = vld [vmem:[%s2 + $0x908] sm:$0xff]
    %v311 = vld [vmem:[%s2 + $0x910] sm:$0xff]
    %v312 = vld [vmem:[%s2 + $0x918] sm:$0xff]
    %v313 = vld [vmem:[%s2 + $0x920] sm:$0xff]
    %v314 = vld [vmem:[%s2 + $0x928] sm:$0xff]
    %v315 = vld [vmem:[%s2 + $0x930] sm:$0xff]
    %v316 = vld [vmem:[%s2 + $0x938] sm:$0xff]
    %v317 = vld [vmem:[%s2 + $0x940] sm:$0xff]
    %v318 = vld [vmem:[%s2 + $0x948] sm:$0xff]
    %v319 = vld [vmem:[%s2 + $0x950] sm:$0xff]
    %v320 = vld [vmem:[%s2 + $0x958] sm:$0xff]
    %v321 = vld [vmem:[%s2 + $0x960] sm:$0xff]
    %v322 = vld [vmem:[%s2 + $0x968] sm:$0xff]
    %v323 = vld [vmem:[%s2 + $0x970] sm:$0xff]
    %v324 = vld [vmem:[%s2 + $0x978] sm:$0xff]
    %v325 = vld [vmem:[%s2 + $0x980] sm:$0xff]
    %v326 = vld [vmem:[%s2 + $0x988] sm:$0xff]
    %v327 = vld [vmem:[%s2 + $0x990] sm:$0xff]
    %v328 = vld [vmem:[%s2 + $0x998] sm:$0xff]
    %v329 = vld [vmem:[%s2 + $0x9a0] sm:$0xff]
    %v330 = vld [vmem:[%s2 + $0x9a8] sm:$0xff]
    %v331 = vld [vmem:[%s2 + $0x9b0] sm:$0xff]
    %v332 = vld [vmem:[%s2 + $0x9b8] sm:$0xff]
    %v333 = vld [vmem:[%s2 + $0x9c0] sm:$0xff]
    %v334 = vld [vmem:[%s2 + $0x9c8] sm:$0xff]
    %v335 = vld [vmem:[%s2 + $0x9d0] sm:$0xff]
    %v336 = vld [vmem:[%s2 + $0x9d8] sm:$0xff]
    %v337 = vld [vmem:[%s2 + $0x9e0] sm:$0xff]
    %v338 = vld [vmem:[%s2 + $0x9e8] sm:$0xff]
    %v339 = vld [vmem:[%s2 + $0x9f0] sm:$0xff]
    %v340 = vld [vmem:[%s2 + $0x9f8] sm:$0xff]
    %v341 = vld [vmem:[%s2 + $0xa00] sm:$0xff]
    %v342 = vld [vmem:[%s2 + $0xa08] sm:$0xff]
    %v343 = vld [vmem:[%s2 + $0xa10] sm:$0xff]
    %v344 = vld [vmem:[%s2 + $0xa18] sm:$0xff]
    %v345 = vld [vmem:[%s2 + $0xa20] sm:$0xff]
    %v346 = vld [vmem:[%s2 + $0xa28] sm:$0xff]
    %v347 = vld [vmem:[%s2 + $0xa30] sm:$0xff]
    %v348 = vld [vmem:[%s2 + $0xa38] sm:$0xff]
    %v349 = vld [vmem:[%s2 + $0xa40] sm:$0xff]
    %v350 = vld [vmem:[%s2 + $0xa48] sm:$0xff]
    %v351 = vld [vmem:[%s2 + $0xa50] sm:$0xff]
    %v352 = vld [vmem:[%s2 + $0xa58] sm:$0xff]
    %v353 = vld [vmem:[%s2 + $0xa60] sm:$0xff]
    %v354 = vld [vmem:[%s2 + $0xa68] sm:$0xff]
    %v355 = vld [vmem:[%s2 + $0xa70] sm:$0xff]
    %v356 = vld [vmem:[%s2 + $0xa78] sm:$0xff]
    %v357 = vld [vmem:[%s2 + $0xa80] sm:$0xff]
    %v358 = vld [vmem:[%s2 + $0xa88] sm:$0xff]
    %v359 = vld [vmem:[%s2 + $0xa90] sm:$0xff]
    %v360 = vld [vmem:[%s2 + $0xa98] sm:$0xff]
    %v361 = vld [vmem:[%s2 + $0xaa0] sm:$0xff]
    %v362 = vld [vmem:[%s2 + $0xaa8] sm:$0xff]
    %v363 = vld [vmem:[%s2 + $0xab0] sm:$0xff]
    %v364 = vld [vmem:[%s2 + $0xab8] sm:$0xff]
    %v365 = vld [vmem:[%s2 + $0xac0] sm:$0xff]
    %v366 = vld [vmem:[%s2 + $0xac8] sm:$0xff]
    %v367 = vld [vmem:[%s2 + $0xad0] sm:$0xff]
    %v368 = vld [vmem:[%s2 + $0xad8] sm:$0xff]
    %v369 = vld [vmem:[%s2 + $0xae0] sm:$0xff]
    %v370 = vld [vmem:[%s2 + $0xae8] sm:$0xff]
    %v371 = vld [vmem:[%s2 + $0xaf0] sm:$0xff]
    %v372 = vld [vmem:[%s2 + $0xaf8] sm:$0xff]
    %v373 = vld [vmem:[%s2 + $0xb00] sm:$0xff]
    %v374 = vld [vmem:[%s2 + $0xb08] sm:$0xff]
    %v375 = vld [vmem:[%s2 + $0xb10] sm:$0xff]
    %v376 = vld [vmem:[%s2 + $0xb18] sm:$0xff]
    %v377 = vld [vmem:[%s2 + $0xb20] sm:$0xff]
    %v378 = vld [vmem:[%s2 + $0xb28] sm:$0xff]
    %v379 = vld [vmem:[%s2 + $0xb30] sm:$0xff]
    %v380 = vld [vmem:[%s2 + $0xb38] sm:$0xff]
    %v381 = vld [vmem:[%s2 + $0xb40] sm:$0xff]
    %v382 = vld [vmem:[%s2 + $0xb48] sm:$0xff]
    %v383 = vld [vmem:[%s2 + $0xb50] sm:$0xff]
    %v384 = vld [vmem:[%s2 + $0xb58] sm:$0xff]
    %v385 = vld [vmem:[%s2 + $0xb60] sm:$0xff]
    %v386 = vld [vmem:[%s2 + $0xb68] sm:$0xff]
    %v387 = vld [vmem:[%s2 + $0xb70] sm:$0xff]
    %v388 = vld [vmem:[%s2 + $0xb78] sm:$0xff]
    %v389 = vld [vmem:[%s2 + $0xb80] sm:$0xff]
    %v390 = vld [vmem:[%s2 + $0xb88] sm:$0xff]
    %v391 = vld [vmem:[%s2 + $0xb90] sm:$0xff]
    %v392 = vld [vmem:[%s2 + $0xb98] sm:$0xff]
    %v393 = vld [vmem:[%s2 + $0xba0] sm:$0xff]
    %v394 = vld [vmem:[%s2 + $0xba8] sm:$0xff]
    %v395 = vld [vmem:[%s2 + $0xbb0] sm:$0xff]
    %v396 = vld [vmem:[%s2 + $0xbb8] sm:$0xff]
    %v397 = vld [vmem:[%s2 + $0xbc0] sm:$0xff]
    %v398 = vld [vmem:[%s2 + $0xbc8] sm:$0xff]
    %v399 = vld [vmem:[%s2 + $0xbd0] sm:$0xff]
    %v400 = vld [vmem:[%s2 + $0xbd8] sm:$0xff]
    %v401 = vld [vmem:[%s2 + $0xbe0] sm:$0xff]
    %v402 = vld [vmem:[%s2 + $0xbe8] sm:$0xff]
    %v403 = vld [vmem:[%s2 + $0xbf0] sm:$0xff]
    %v404 = vld [vmem:[%s2 + $0xbf8] sm:$0xff]
    %v405 = vld [vmem:[%s2 + $0xc00] sm:$0xff]
    %v406 = vld [vmem:[%s2 + $0xc08] sm:$0xff]
    %v407 = vld [vmem:[%s2 + $0xc10] sm:$0xff]
    %v408 = vld [vmem:[%s2 + $0xc18] sm:$0xff]
    %v409 = vld [vmem:[%s2 + $0xc20] sm:$0xff]
    %v410 = vld [vmem:[%s2 + $0xc28] sm:$0xff]
    %v411 = vld [vmem:[%s2 + $0xc30] sm:$0xff]
    %v412 = vld [vmem:[%s2 + $0xc38] sm:$0xff]
    %v413 = vld [vmem:[%s2 + $0xc40] sm:$0xff]
    %v414 = vld [vmem:[%s2 + $0xc48] sm:$0xff]
    %v415 = vld [vmem:[%s2 + $0xc50] sm:$0xff]
    %v416 = vld [vmem:[%s2 + $0xc58] sm:$0xff]
    %v417 = vld [vmem:[%s2 + $0xc60] sm:$0xff]
    %v418 = vld [vmem:[%s2 + $0xc68] sm:$0xff]
    %v419 = vld [vmem:[%s2 + $0xc70] sm:$0xff]
    %v420 = vld [vmem:[%s2 + $0xc78] sm:$0xff]
    %v421 = vld [vmem:[%s2 + $0xc80] sm:$0xff]
    %v422 = vld [vmem:[%s2 + $0xc88] sm:$0xff]
    %v423 = vld [vmem:[%s2 + $0xc90] sm:$0xff]
    %v424 = vld [vmem:[%s2 + $0xc98] sm:$0xff]
    %v425 = vld [vmem:[%s2 + $0xca0] sm:$0xff]
    %v426 = vld [vmem:[%s2 + $0xca8] sm:$0xff]
    %v427 = vld [vmem:[%s2 + $0xcb0] sm:$0xff]
    %v428 = vld [vmem:[%s2 + $0xcb8] sm:$0xff]
    %v429 = vld [vmem:[%s2 + $0xcc0] sm:$0xff]
    %v430 = vld [vmem:[%s2 + $0xcc8] sm:$0xff]
    %v431 = vld [vmem:[%s2 + $0xcd0] sm:$0xff]
    %v432 = vld [vmem:[%s2 + $0xcd8] sm:$0xff]
    %v433 = vld [vmem:[%s2 + $0xce0] sm:$0xff]
    %v434 = vld [vmem:[%s2 + $0xce8] sm:$0xff]
    %v435 = vld [vmem:[%s2 + $0xcf0] sm:$0xff]
    %v436 = vld [vmem:[%s2 + $0xcf8] sm:$0xff]
    %438 = vset.pattern.permute.xlu0 0
    %439 = vperm.xlu0 %438, %v20
    %v440 = vpop.permute.xlu0 %439
    %442 = vmatprep.subr.mxu0 %v22
    %443 = vmatpush1.msra.mxu0 %v21
    %444 = vmatprep.subr.mxu0 %v35
    %445 = vmatpush1.msra.mxu0 %v34
    %446 = vmatprep.subr.mxu0 %v48
    %447 = vmatpush1.msra.mxu0 %v47
    %448 = vmatprep.subr.mxu0 %v61
    %449 = vmatpush1.msra.mxu0 %v60
    %450 = vmatprep.subr.mxu0 %v74
    %451 = vmatpush1.msra.mxu0 %v73
    %452 = vmatprep.subr.mxu0 %v87
    %453 = vmatpush1.msra.mxu0 %v86
    %454 = vmatprep.subr.mxu0 %v100
    %455 = vmatpush1.msra.mxu0 %v99
    %456 = vmatprep.subr.mxu0 %v113
    %457 = vmatpush1.msra.mxu0 %v112
    %458 = vmatprep.subr.mxu0 %v126
    %459 = vmatpush1.msra.mxu0 %v125
    %460 = vmatprep.subr.mxu0 %v139
    %461 = vmatpush1.msra.mxu0 %v138
    %462 = vmatprep.subr.mxu0 %v152
    %463 = vmatpush1.msra.mxu0 %v151
    %464 = vmatprep.subr.mxu0 %v165
    %465 = vmatpush1.msra.mxu0 %v164
    %466 = vmatprep.subr.mxu0 %v178
    %467 = vmatpush1.msra.mxu0 %v177
    %468 = vmatprep.subr.mxu0 %v191
    %469 = vmatpush1.msra.mxu0 %v190
    %470 = vmatprep.subr.mxu0 %v204
    %471 = vmatpush1.msra.mxu0 %v203
    %472 = vmatprep.subr.mxu0 %v217
    %473 = vmatpush1.msra.mxu0 %v216
    %474 = vmatprep.subr.mxu0 %v230
    %475 = vmatpush1.msra.mxu0 %v229
    %476 = vmatprep.subr.mxu0 %v243
    %477 = vmatpush1.msra.mxu0 %v242
    %478 = vmatprep.subr.mxu0 %v256
    %479 = vmatpush1.msra.mxu0 %v255
    %480 = vmatprep.subr.mxu0 %v269
    %481 = vmatpush1.msra.mxu0 %v268
    %482 = vmatprep.subr.mxu0 %v282
    %483 = vmatpush1.msra.mxu0 %v281
    %484 = vmatprep.subr.mxu0 %v295
    %485 = vmatpush1.msra.mxu0 %v294
    %486 = vmatprep.subr.mxu0 %v308
    %487 = vmatpush1.msra.mxu0 %v307
    %488 = vmatprep.subr.mxu0 %v321
    %489 = vmatpush1.msra.mxu0 %v320
    %490 = vmatprep.subr.mxu0 %v334
    %491 = vmatpush1.msra.mxu0 %v333
    %492 = vmatprep.subr.mxu0 %v347
    %493 = vmatpush1.msra.mxu0 %v346
    %494 = vmatprep.subr.mxu0 %v360
    %495 = vmatpush1.msra.mxu0 %v359
    %496 = vmatprep.subr.mxu0 %v373
    %497 = vmatpush1.msra.mxu0 %v372
    %498 = vmatprep.subr.mxu0 %v386
    %499 = vmatpush1.msra.mxu0 %v385
    %500 = vmatprep.subr.mxu0 %v399
    %501 = vmatpush1.msra.mxu0 %v398
    %502 = vmatprep.subr.mxu0 %v412
    %503 = vmatpush1.msra.mxu0 %v411
    %504 = vmatprep.subr.mxu0 %v425
    %505 = vmatpush1.msra.mxu0 %v424
    %506 = vmatprep.mubr.f32.mxu0 %v19
    %507 = vmatmul.mubr.f32.gmra.mrb[0].mxu0 %v18
    %v508 = vpop.f32.mrb[0].mxu0
    %v509 = vadd.f32 %v440, %v508
    %v510 = vpop.f32.mrb[0].mxu0
    %v511 = vadd.f32 %v440, %v510
    %512 = vdwg.mxu0
    %513 = vmatprep.subr.mxu0 %v24
    %514 = vmatpush1.msra.mxu0 %v23
    %515 = vmatprep.subr.mxu0 %v37
    %516 = vmatpush1.msra.mxu0 %v36
    %517 = vmatprep.subr.mxu0 %v50
    %518 = vmatpush1.msra.mxu0 %v49
    %519 = vmatprep.subr.mxu0 %v63
    %520 = vmatpush1.msra.mxu0 %v62
    %521 = vmatprep.subr.mxu0 %v76
    %522 = vmatpush1.msra.mxu0 %v75
    %523 = vmatprep.subr.mxu0 %v89
    %524 = vmatpush1.msra.mxu0 %v88
    %525 = vmatprep.subr.mxu0 %v102
    %526 = vmatpush1.msra.mxu0 %v101
    %527 = vmatprep.subr.mxu0 %v115
    %528 = vmatpush1.msra.mxu0 %v114
    %529 = vmatprep.subr.mxu0 %v128
    %530 = vmatpush1.msra.mxu0 %v127
    %531 = vmatprep.subr.mxu0 %v141
    %532 = vmatpush1.msra.mxu0 %v140
    %533 = vmatprep.subr.mxu0 %v154
    %534 = vmatpush1.msra.mxu0 %v153
    %535 = vmatprep.subr.mxu0 %v167
    %536 = vmatpush1.msra.mxu0 %v166
    %537 = vmatprep.subr.mxu0 %v180
    %538 = vmatpush1.msra.mxu0 %v179
    %539 = vmatprep.subr.mxu0 %v193
    %540 = vmatpush1.msra.mxu0 %v192
    %541 = vmatprep.subr.mxu0 %v206
    %542 = vmatpush1.msra.mxu0 %v205
    %543 = vmatprep.subr.mxu0 %v219
    %544 = vmatpush1.msra.mxu0 %v218
    %545 = vmatprep.subr.mxu0 %v232
    %546 = vmatpush1.msra.mxu0 %v231
    %547 = vmatprep.subr.mxu0 %v245
    %548 = vmatpush1.msra.mxu0 %v244
    %549 = vmatprep.subr.mxu0 %v258
    %550 = vmatpush1.msra.mxu0 %v257
    %551 = vmatprep.subr.mxu0 %v271
    %552 = vmatpush1.msra.mxu0 %v270
    %553 = vmatprep.subr.mxu0 %v284
    %554 = vmatpush1.msra.mxu0 %v283
    %555 = vmatprep.subr.mxu0 %v297
    %556 = vmatpush1.msra.mxu0 %v296
    %557 = vmatprep.subr.mxu0 %v310
    %558 = vmatpush1.msra.mxu0 %v309
    %559 = vmatprep.subr.mxu0 %v323
    %560 = vmatpush1.msra.mxu0 %v322
    %561 = vmatprep.subr.mxu0 %v336
    %562 = vmatpush1.msra.mxu0 %v335
    %563 = vmatprep.subr.mxu0 %v349
    %564 = vmatpush1.msra.mxu0 %v348
    %565 = vmatprep.subr.mxu0 %v362
    %566 = vmatpush1.msra.mxu0 %v361
    %567 = vmatprep.subr.mxu0 %v375
    %568 = vmatpush1.msra.mxu0 %v374
    %569 = vmatprep.subr.mxu0 %v388
    %570 = vmatpush1.msra.mxu0 %v387
    %571 = vmatprep.subr.mxu0 %v401
    %572 = vmatpush1.msra.mxu0 %v400
    %573 = vmatprep.subr.mxu0 %v414
    %574 = vmatpush1.msra.mxu0 %v413
    %575 = vmatprep.subr.mxu0 %v427
    %576 = vmatpush1.msra.mxu0 %v426
    %577 = vmatprep.mubr.f32.mxu0 %v19
    %578 = vmatmul.mubr.f32.gmra.mrb[0].mxu0 %v18
    %v579 = vpop.f32.mrb[0].mxu0
    %v580 = vadd.f32 %v440, %v579
    %v581 = vpop.f32.mrb[0].mxu0
    %v582 = vadd.f32 %v440, %v581
    %583 = vdwg.mxu0
    %584 = vmatprep.subr.mxu0 %v26
    %585 = vmatpush1.msra.mxu0 %v25
    %586 = vmatprep.subr.mxu0 %v39
    %587 = vmatpush1.msra.mxu0 %v38
    %588 = vmatprep.subr.mxu0 %v52
    %589 = vmatpush1.msra.mxu0 %v51
    %590 = vmatprep.subr.mxu0 %v65
    %591 = vmatpush1.msra.mxu0 %v64
    %592 = vmatprep.subr.mxu0 %v78
    %593 = vmatpush1.msra.mxu0 %v77
    %594 = vmatprep.subr.mxu0 %v91
    %595 = vmatpush1.msra.mxu0 %v90
    %596 = vmatprep.subr.mxu0 %v104
    %597 = vmatpush1.msra.mxu0 %v103
    %598 = vmatprep.subr.mxu0 %v117
    %599 = vmatpush1.msra.mxu0 %v116
    %600 = vmatprep.subr.mxu0 %v130
    %601 = vmatpush1.msra.mxu0 %v129
    %602 = vmatprep.subr.mxu0 %v143
    %603 = vmatpush1.msra.mxu0 %v142
    %604 = vmatprep.subr.mxu0 %v156
    %605 = vmatpush1.msra.mxu0 %v155
    %606 = vmatprep.subr.mxu0 %v169
    %607 = vmatpush1.msra.mxu0 %v168
    %608 = vmatprep.subr.mxu0 %v182
    %609 = vmatpush1.msra.mxu0 %v181
    %610 = vmatprep.subr.mxu0 %v195
    %611 = vmatpush1.msra.mxu0 %v194
    %612 = vmatprep.subr.mxu0 %v208
    %613 = vmatpush1.msra.mxu0 %v207
    %614 = vmatprep.subr.mxu0 %v221
    %615 = vmatpush1.msra.mxu0 %v220
    %616 = vmatprep.subr.mxu0 %v234
    %617 = vmatpush1.msra.mxu0 %v233
    %618 = vmatprep.subr.mxu0 %v247
    %619 = vmatpush1.msra.mxu0 %v246
    %620 = vmatprep.subr.mxu0 %v260
    %621 = vmatpush1.msra.mxu0 %v259
    %622 = vmatprep.subr.mxu0 %v273
    %623 = vmatpush1.msra.mxu0 %v272
    %624 = vmatprep.subr.mxu0 %v286
    %625 = vmatpush1.msra.mxu0 %v285
    %626 = vmatprep.subr.mxu0 %v299
    %627 = vmatpush1.msra.mxu0 %v298
    %628 = vmatprep.subr.mxu0 %v312
    %629 = vmatpush1.msra.mxu0 %v311
    %630 = vmatprep.subr.mxu0 %v325
    %631 = vmatpush1.msra.mxu0 %v324
    %632 = vmatprep.subr.mxu0 %v338
    %633 = vmatpush1.msra.mxu0 %v337
    %634 = vmatprep.subr.mxu0 %v351
    %635 = vmatpush1.msra.mxu0 %v350
    %636 = vmatprep.subr.mxu0 %v364
    %637 = vmatpush1.msra.mxu0 %v363
    %638 = vmatprep.subr.mxu0 %v377
    %639 = vmatpush1.msra.mxu0 %v376
    %640 = vmatprep.subr.mxu0 %v390
    %641 = vmatpush1.msra.mxu0 %v389
    %642 = vmatprep.subr.mxu0 %v403
    %643 = vmatpush1.msra.mxu0 %v402
    %644 = vmatprep.subr.mxu0 %v416
    %645 = vmatpush1.msra.mxu0 %v415
    %646 = vmatprep.subr.mxu0 %v429
    %647 = vmatpush1.msra.mxu0 %v428
    %648 = vmatprep.mubr.f32.mxu0 %v19
    %649 = vmatmul.mubr.f32.gmra.mrb[0].mxu0 %v18
    %v650 = vpop.f32.mrb[0].mxu0
    %v651 = vadd.f32 %v440, %v650
    %v652 = vpop.f32.mrb[0].mxu0
    %v653 = vadd.f32 %v440, %v652
    %654 = vdwg.mxu0
    %655 = vmatprep.subr.mxu0 %v28
    %656 = vmatpush1.msra.mxu0 %v27
    %657 = vmatprep.subr.mxu0 %v41
    %658 = vmatpush1.msra.mxu0 %v40
    %659 = vmatprep.subr.mxu0 %v54
    %660 = vmatpush1.msra.mxu0 %v53
    %661 = vmatprep.subr.mxu0 %v67
    %662 = vmatpush1.msra.mxu0 %v66
    %663 = vmatprep.subr.mxu0 %v80
    %664 = vmatpush1.msra.mxu0 %v79
    %665 = vmatprep.subr.mxu0 %v93
    %666 = vmatpush1.msra.mxu0 %v92
    %667 = vmatprep.subr.mxu0 %v106
    %668 = vmatpush1.msra.mxu0 %v105
    %669 = vmatprep.subr.mxu0 %v119
    %670 = vmatpush1.msra.mxu0 %v118
    %671 = vmatprep.subr.mxu0 %v132
    %672 = vmatpush1.msra.mxu0 %v131
    %673 = vmatprep.subr.mxu0 %v145
    %674 = vmatpush1.msra.mxu0 %v144
    %675 = vmatprep.subr.mxu0 %v158
    %676 = vmatpush1.msra.mxu0 %v157
    %677 = vmatprep.subr.mxu0 %v171
    %678 = vmatpush1.msra.mxu0 %v170
    %679 = vmatprep.subr.mxu0 %v184
    %680 = vmatpush1.msra.mxu0 %v183
    %681 = vmatprep.subr.mxu0 %v197
    %682 = vmatpush1.msra.mxu0 %v196
    %683 = vmatprep.subr.mxu0 %v210
    %684 = vmatpush1.msra.mxu0 %v209
    %685 = vmatprep.subr.mxu0 %v223
    %686 = vmatpush1.msra.mxu0 %v222
    %687 = vmatprep.subr.mxu0 %v236
    %688 = vmatpush1.msra.mxu0 %v235
    %689 = vmatprep.subr.mxu0 %v249
    %690 = vmatpush1.msra.mxu0 %v248
    %691 = vmatprep.subr.mxu0 %v262
    %692 = vmatpush1.msra.mxu0 %v261
    %693 = vmatprep.subr.mxu0 %v275
    %694 = vmatpush1.msra.mxu0 %v274
    %695 = vmatprep.subr.mxu0 %v288
    %696 = vmatpush1.msra.mxu0 %v287
    %697 = vmatprep.subr.mxu0 %v301
    %698 = vmatpush1.msra.mxu0 %v300
    %699 = vmatprep.subr.mxu0 %v314
    %700 = vmatpush1.msra.mxu0 %v313
    %701 = vmatprep.subr.mxu0 %v327
    %702 = vmatpush1.msra.mxu0 %v326
    %703 = vmatprep.subr.mxu0 %v340
    %704 = vmatpush1.msra.mxu0 %v339
    %705 = vmatprep.subr.mxu0 %v353
    %706 = vmatpush1.msra.mxu0 %v352
    %707 = vmatprep.subr.mxu0 %v366
    %708 = vmatpush1.msra.mxu0 %v365
    %709 = vmatprep.subr.mxu0 %v379
    %710 = vmatpush1.msra.mxu0 %v378
    %711 = vmatprep.subr.mxu0 %v392
    %712 = vmatpush1.msra.mxu0 %v391
    %713 = vmatprep.subr.mxu0 %v405
    %714 = vmatpush1.msra.mxu0 %v404
    %715 = vmatprep.subr.mxu0 %v418
    %716 = vmatpush1.msra.mxu0 %v417
    %717 = vmatprep.subr.mxu0 %v431
    %718 = vmatpush1.msra.mxu0 %v430
    %719 = vmatprep.mubr.f32.mxu0 %v19
    %720 = vmatmul.mubr.f32.gmra.mrb[0].mxu0 %v18
    %v721 = vpop.f32.mrb[0].mxu0
    %v722 = vadd.f32 %v440, %v721
    %v723 = vpop.f32.mrb[0].mxu0
    %v724 = vadd.f32 %v440, %v723
    %725 = vdwg.mxu0
    %726 = vmatprep.subr.mxu0 %v30
    %727 = vmatpush1.msra.mxu0 %v29
    %728 = vmatprep.subr.mxu0 %v43
    %729 = vmatpush1.msra.mxu0 %v42
    %730 = vmatprep.subr.mxu0 %v56
    %731 = vmatpush1.msra.mxu0 %v55
    %732 = vmatprep.subr.mxu0 %v69
    %733 = vmatpush1.msra.mxu0 %v68
    %734 = vmatprep.subr.mxu0 %v82
    %735 = vmatpush1.msra.mxu0 %v81
    %736 = vmatprep.subr.mxu0 %v95
    %737 = vmatpush1.msra.mxu0 %v94
    %738 = vmatprep.subr.mxu0 %v108
    %739 = vmatpush1.msra.mxu0 %v107
    %740 = vmatprep.subr.mxu0 %v121
    %741 = vmatpush1.msra.mxu0 %v120
    %742 = vmatprep.subr.mxu0 %v134
    %743 = vmatpush1.msra.mxu0 %v133
    %744 = vmatprep.subr.mxu0 %v147
    %745 = vmatpush1.msra.mxu0 %v146
    %746 = vmatprep.subr.mxu0 %v160
    %747 = vmatpush1.msra.mxu0 %v159
    %748 = vmatprep.subr.mxu0 %v173
    %749 = vmatpush1.msra.mxu0 %v172
    %750 = vmatprep.subr.mxu0 %v186
    %751 = vmatpush1.msra.mxu0 %v185
    %752 = vmatprep.subr.mxu0 %v199
    %753 = vmatpush1.msra.mxu0 %v198
    %754 = vmatprep.subr.mxu0 %v212
    %755 = vmatpush1.msra.mxu0 %v211
    %756 = vmatprep.subr.mxu0 %v225
    %757 = vmatpush1.msra.mxu0 %v224
    %758 = vmatprep.subr.mxu0 %v238
    %759 = vmatpush1.msra.mxu0 %v237
    %760 = vmatprep.subr.mxu0 %v251
    %761 = vmatpush1.msra.mxu0 %v250
    %762 = vmatprep.subr.mxu0 %v264
    %763 = vmatpush1.msra.mxu0 %v263
    %764 = vmatprep.subr.mxu0 %v277
    %765 = vmatpush1.msra.mxu0 %v276
    %766 = vmatprep.subr.mxu0 %v290
    %767 = vmatpush1.msra.mxu0 %v289
    %768 = vmatprep.subr.mxu0 %v303
    %769 = vmatpush1.msra.mxu0 %v302
    %770 = vmatprep.subr.mxu0 %v316
    %771 = vmatpush1.msra.mxu0 %v315
    %772 = vmatprep.subr.mxu0 %v329
    %773 = vmatpush1.msra.mxu0 %v328
    %774 = vmatprep.subr.mxu0 %v342
    %775 = vmatpush1.msra.mxu0 %v341
    %776 = vmatprep.subr.mxu0 %v355
    %777 = vmatpush1.msra.mxu0 %v354
    %778 = vmatprep.subr.mxu0 %v368
    %779 = vmatpush1.msra.mxu0 %v367
    %780 = vmatprep.subr.mxu0 %v381
    %781 = vmatpush1.msra.mxu0 %v380
    %782 = vmatprep.subr.mxu0 %v394
    %783 = vmatpush1.msra.mxu0 %v393
    %784 = vmatprep.subr.mxu0 %v407
    %785 = vmatpush1.msra.mxu0 %v406
    %786 = vmatprep.subr.mxu0 %v420
    %787 = vmatpush1.msra.mxu0 %v419
    %788 = vmatprep.subr.mxu0 %v433
    %789 = vmatpush1.msra.mxu0 %v432
    %790 = vmatprep.mubr.f32.mxu0 %v19
    %791 = vmatmul.mubr.f32.gmra.mrb[0].mxu0 %v18
    %v792 = vpop.f32.mrb[0].mxu0
    %v793 = vadd.f32 %v440, %v792
    %v794 = vpop.f32.mrb[0].mxu0
    %v795 = vadd.f32 %v440, %v794
    %796 = vdwg.mxu0
    %797 = vmatprep.subr.mxu0 %v32
    %798 = vmatpush1.msra.mxu0 %v31
    %799 = vmatprep.subr.mxu0 %v45
    %800 = vmatpush1.msra.mxu0 %v44
    %801 = vmatprep.subr.mxu0 %v58
    %802 = vmatpush1.msra.mxu0 %v57
    %803 = vmatprep.subr.mxu0 %v71
    %804 = vmatpush1.msra.mxu0 %v70
    %805 = vmatprep.subr.mxu0 %v84
    %806 = vmatpush1.msra.mxu0 %v83
    %807 = vmatprep.subr.mxu0 %v97
    %808 = vmatpush1.msra.mxu0 %v96
    %809 = vmatprep.subr.mxu0 %v110
    %810 = vmatpush1.msra.mxu0 %v109
    %811 = vmatprep.subr.mxu0 %v123
    %812 = vmatpush1.msra.mxu0 %v122
    %813 = vmatprep.subr.mxu0 %v136
    %814 = vmatpush1.msra.mxu0 %v135
    %815 = vmatprep.subr.mxu0 %v149
    %816 = vmatpush1.msra.mxu0 %v148
    %817 = vmatprep.subr.mxu0 %v162
    %818 = vmatpush1.msra.mxu0 %v161
    %819 = vmatprep.subr.mxu0 %v175
    %820 = vmatpush1.msra.mxu0 %v174
    %821 = vmatprep.subr.mxu0 %v188
    %822 = vmatpush1.msra.mxu0 %v187
    %823 = vmatprep.subr.mxu0 %v201
    %824 = vmatpush1.msra.mxu0 %v200
    %825 = vmatprep.subr.mxu0 %v214
    %826 = vmatpush1.msra.mxu0 %v213
    %827 = vmatprep.subr.mxu0 %v227
    %828 = vmatpush1.msra.mxu0 %v226
    %829 = vmatprep.subr.mxu0 %v240
    %830 = vmatpush1.msra.mxu0 %v239
    %831 = vmatprep.subr.mxu0 %v253
    %832 = vmatpush1.msra.mxu0 %v252
    %833 = vmatprep.subr.mxu0 %v266
    %834 = vmatpush1.msra.mxu0 %v265
    %835 = vmatprep.subr.mxu0 %v279
    %836 = vmatpush1.msra.mxu0 %v278
    %837 = vmatprep.subr.mxu0 %v292
    %838 = vmatpush1.msra.mxu0 %v291
    %839 = vmatprep.subr.mxu0 %v305
    %840 = vmatpush1.msra.mxu0 %v304
    %841 = vmatprep.subr.mxu0 %v318
    %842 = vmatpush1.msra.mxu0 %v317
    %843 = vmatprep.subr.mxu0 %v331
    %844 = vmatpush1.msra.mxu0 %v330
    %845 = vmatprep.subr.mxu0 %v344
    %846 = vmatpush1.msra.mxu0 %v343
    %847 = vmatprep.subr.mxu0 %v357
    %848 = vmatpush1.msra.mxu0 %v356
    %849 = vmatprep.subr.mxu0 %v370
    %850 = vmatpush1.msra.mxu0 %v369
    %851 = vmatprep.subr.mxu0 %v383
    %852 = vmatpush1.msra.mxu0 %v382
    %853 = vmatprep.subr.mxu0 %v396
    %854 = vmatpush1.msra.mxu0 %v395
    %855 = vmatprep.subr.mxu0 %v409
    %856 = vmatpush1.msra.mxu0 %v408
    %857 = vmatprep.subr.mxu0 %v422
    %858 = vmatpush1.msra.mxu0 %v421
    %859 = vmatprep.subr.mxu0 %v435
    %860 = vmatpush1.msra.mxu0 %v434
    %861 = vmatprep.mubr.f32.mxu0 %v19
    %862 = vmatmul.mubr.f32.gmra.mrb[0].mxu0 %v18
    %v863 = vpop.f32.mrb[0].mxu0
    %v864 = vadd.f32 %v440, %v863
    %v865 = vpop.f32.mrb[0].mxu0
    %v866 = vadd.f32 %v440, %v865
    %867 = vdwg.mxu0
    %868 = vmatprep.subr.mxu0 0.0
    %869 = vmatpush1.msra.mxu0 %v33
    %870 = vmatprep.subr.mxu0 0.0
    %871 = vmatpush1.msra.mxu0 %v46
    %872 = vmatprep.subr.mxu0 0.0
    %873 = vmatpush1.msra.mxu0 %v59
    %874 = vmatprep.subr.mxu0 0.0
    %875 = vmatpush1.msra.mxu0 %v72
    %876 = vmatprep.subr.mxu0 0.0
    %877 = vmatpush1.msra.mxu0 %v85
    %878 = vmatprep.subr.mxu0 0.0
    %879 = vmatpush1.msra.mxu0 %v98
    %880 = vmatprep.subr.mxu0 0.0
    %881 = vmatpush1.msra.mxu0 %v111
    %882 = vmatprep.subr.mxu0 0.0
    %883 = vmatpush1.msra.mxu0 %v124
    %884 = vmatprep.subr.mxu0 0.0
    %885 = vmatpush1.msra.mxu0 %v137
    %886 = vmatprep.subr.mxu0 0.0
    %887 = vmatpush1.msra.mxu0 %v150
    %888 = vmatprep.subr.mxu0 0.0
    %889 = vmatpush1.msra.mxu0 %v163
    %890 = vmatprep.subr.mxu0 0.0
    %891 = vmatpush1.msra.mxu0 %v176
    %892 = vmatprep.subr.mxu0 0.0
    %893 = vmatpush1.msra.mxu0 %v189
    %894 = vmatprep.subr.mxu0 0.0
    %895 = vmatpush1.msra.mxu0 %v202
    %896 = vmatprep.subr.mxu0 0.0
    %897 = vmatpush1.msra.mxu0 %v215
    %898 = vmatprep.subr.mxu0 0.0
    %899 = vmatpush1.msra.mxu0 %v228
    %900 = vmatprep.subr.mxu0 0.0
    %901 = vmatpush1.msra.mxu0 %v241
    %902 = vmatprep.subr.mxu0 0.0
    %903 = vmatpush1.msra.mxu0 %v254
    %904 = vmatprep.subr.mxu0 0.0
    %905 = vmatpush1.msra.mxu0 %v267
    %906 = vmatprep.subr.mxu0 0.0
    %907 = vmatpush1.msra.mxu0 %v280
    %908 = vmatprep.subr.mxu0 0.0
    %909 = vmatpush1.msra.mxu0 %v293
    %910 = vmatprep.subr.mxu0 0.0
    %911 = vmatpush1.msra.mxu0 %v306
    %912 = vmatprep.subr.mxu0 0.0
    %913 = vmatpush1.msra.mxu0 %v319
    %914 = vmatprep.subr.mxu0 0.0
    %915 = vmatpush1.msra.mxu0 %v332
    %916 = vmatprep.subr.mxu0 0.0
    %917 = vmatpush1.msra.mxu0 %v345
    %918 = vmatprep.subr.mxu0 0.0
    %919 = vmatpush1.msra.mxu0 %v358
    %920 = vmatprep.subr.mxu0 0.0
    %921 = vmatpush1.msra.mxu0 %v371
    %922 = vmatprep.subr.mxu0 0.0
    %923 = vmatpush1.msra.mxu0 %v384
    %924 = vmatprep.subr.mxu0 0.0
    %925 = vmatpush1.msra.mxu0 %v397
    %926 = vmatprep.subr.mxu0 0.0
    %927 = vmatpush1.msra.mxu0 %v410
    %928 = vmatprep.subr.mxu0 0.0
    %929 = vmatpush1.msra.mxu0 %v423
    %930 = vmatprep.subr.mxu0 0.0
    %931 = vmatpush1.msra.mxu0 %v436
    %932 = vmatprep.mubr.f32.mxu0 %v19
    %933 = vmatmul.mubr.f32.gmra.mrb[0].mxu0 %v18
    %v934 = vpop.f32.mrb[0].mxu0
    %v935 = vadd.f32 %v440, %v934
    %v936 = vpop.f32.mrb[0].mxu0
    %937 = vdwg.mxu0
    %v938 = vadd.f32 %v509, %v511
    %v939 = vadd.f32 %v938, %v580
    %v940 = vadd.f32 %v939, %v582
    %v941 = vadd.f32 %v940, %v651
    %v942 = vadd.f32 %v941, %v653
    %v943 = vadd.f32 %v942, %v722
    %v944 = vadd.f32 %v943, %v724
    %v945 = vadd.f32 %v944, %v793
    %v946 = vadd.f32 %v945, %v795
    %v947 = vadd.f32 %v946, %v864
    %v948 = vadd.f32 %v947, %v866
    %vm949 = vcmask 523264
    %v950 = vsel %vm949, %v935, 0.0
    %v951 = vadd.f32 %v948, %v950
    %952 = vadd.xlane.f32.xlu0 %v951
    %v953 = vpop.xlane.xlu0 %952
    %v954 = vrcp.pop 1600.0
    %v955 = vmul.f32 %v953, %v954
    %v956 = vsub.f32 %v509, %v955
    %v957 = vsub.f32 %v511, %v955
    %v958 = vsub.f32 %v580, %v955
    %v959 = vsub.f32 %v582, %v955
    %v960 = vsub.f32 %v651, %v955
    %v961 = vsub.f32 %v653, %v955
    %v962 = vsub.f32 %v722, %v955
    %v963 = vsub.f32 %v724, %v955
    %v964 = vsub.f32 %v793, %v955
    %v965 = vsub.f32 %v795, %v955
    %v966 = vsub.f32 %v864, %v955
    %v967 = vsub.f32 %v866, %v955
    %v968 = vsub.f32 %v935, %v955
    %v969 = vmul.f32 %v956, %v956
    %v970 = vmul.f32 %v957, %v957
    %v971 = vmul.f32 %v958, %v958
    %v972 = vmul.f32 %v959, %v959
    %v973 = vmul.f32 %v960, %v960
    %v974 = vmul.f32 %v961, %v961
    %v975 = vmul.f32 %v962, %v962
    %v976 = vmul.f32 %v963, %v963
    %v977 = vmul.f32 %v964, %v964
    %v978 = vmul.f32 %v965, %v965
    %v979 = vmul.f32 %v966, %v966
    %v980 = vmul.f32 %v967, %v967
    %v981 = vmul.f32 %v968, %v968
    %v982 = vadd.f32 %v969, %v970
    %v983 = vadd.f32 %v982, %v971
    %v984 = vadd.f32 %v983, %v972
    %v985 = vadd.f32 %v984, %v973
    %v986 = vadd.f32 %v985, %v974
    %v987 = vadd.f32 %v986, %v975
    %v988 = vadd.f32 %v987, %v976
    %v989 = vadd.f32 %v988, %v977
    %v990 = vadd.f32 %v989, %v978
    %v991 = vadd.f32 %v990, %v979
    %v992 = vadd.f32 %v991, %v980
    %v993 = vsel %vm949, %v981, 0.0
    %v994 = vadd.f32 %v992, %v993
    %995 = vadd.xlane.f32.xlu0 %v994
    %v996 = vpop.xlane.xlu0 %995
    %v997 = vmul.f32 %v996, %v954
    %v998 = vadd.f32 %v997, 1e-05
    %v999 = vrsqrt.pop %v998
    %v1000 = vmul.f32 %v20, %v999
    %1002 = vset.pattern.permute.xlu0 1
    %1003 = vperm.xlu0 %1002, %v1000
    %v1004 = vpop.permute.xlu0 %1003
    %v1006 = vmul.f32 %v956, %v1004
    %v1007 = vmul.f32 %v957, %v1004
    %v1008 = vmul.f32 %v958, %v1004
    %v1009 = vmul.f32 %v959, %v1004
    %v1010 = vmul.f32 %v960, %v1004
    %v1011 = vmul.f32 %v961, %v1004
    %v1012 = vmul.f32 %v962, %v1004
    %v1013 = vmul.f32 %v963, %v1004
    %v1014 = vmul.f32 %v964, %v1004
    %v1015 = vmul.f32 %v965, %v1004
    %v1016 = vmul.f32 %v966, %v1004
    %v1017 = vmul.f32 %v967, %v1004
    %v1018 = vmul.f32 %v968, %v1004
    %1019 = vset.pattern.permute.xlu0 2
    %1020 = vperm.xlu0 %1019, %v20
    %v1021 = vpop.permute.xlu0 %1020
    %v1023 = vadd.f32 %v1006, %v1021
    %v1024 = vadd.f32 %v1007, %v1021
    %v1025 = vadd.f32 %v1008, %v1021
    %v1026 = vadd.f32 %v1009, %v1021
    %v1027 = vadd.f32 %v1010, %v1021
    %v1028 = vadd.f32 %v1011, %v1021
    %v1029 = vadd.f32 %v1012, %v1021
    %v1030 = vadd.f32 %v1013, %v1021
    %v1031 = vadd.f32 %v1014, %v1021
    %v1032 = vadd.f32 %v1015, %v1021
    %v1033 = vadd.f32 %v1016, %v1021
    %v1034 = vadd.f32 %v1017, %v1021
    %v1035 = vadd.f32 %v1018, %v1021
    %vm1036 = vcmask 818176
    %v1037 = vsel %vm1036, %v1023, -inf
    %1038 = vmax.xlane.f32.xlu0 %v1037
    %v1039 = vpop.xlane.xlu0 %1038
    %vm1040 = vcmask 7168
    %1041 = vst.msk [vmem:[#allocation2] sm:$0xff] %vm1040, %v1039
    %vm1042 = vcmask 1048352
    %v1043 = vsel %vm1042, %v1023, -inf
    %vm1044 = vcmask 588800
    %v1045 = vsel %vm1044, %v1024, -inf
    %v1046 = vmax.f32 %v1043, %v1045
    %1047 = vmax.xlane.f32.xlu0 %v1046
    %v1048 = vpop.xlane.xlu0 %1047
    %vm1049 = vcmask 15368
    %1050 = vst.msk [vmem:[#allocation2] sm:$0xff] %vm1049, %v1048
    %vm1051 = vcmask 1048128
    %v1052 = vsel %vm1051, %v1024, -inf
    %vm1053 = vcmask 359424
    %v1054 = vsel %vm1053, %v1025, -inf
    %v1055 = vmax.f32 %v1052, %v1054
    %1056 = vmax.xlane.f32.xlu0 %v1055
    %v1057 = vpop.xlane.xlu0 %1056
    %vm1058 = vcmask 23568
    %1059 = vst.msk [vmem:[#allocation2] sm:$0xff] %vm1058, %v1057
    %vm1060 = vcmask 1047904
    %v1061 = vsel %vm1060, %v1025, -inf
    %vm1062 = vcmask 130048
    %v1063 = vsel %vm1062, %v1026, -inf
    %v1064 = vmax.f32 %v1061, %v1063
    %1065 = vmax.xlane.f32.xlu0 %v1064
    %v1066 = vpop.xlane.xlu0 %1065
    %vm1067 = vcmask 31768
    %1068 = vst.msk [vmem:[#allocation2] sm:$0xff] %vm1067, %v1066
    %vm1069 = vcmask 949376
    %v1070 = vsel %vm1069, %v1026, -inf
    %1071 = vmax.xlane.f32.xlu0 %v1070
    %v1072 = vpop.xlane.xlu0 %1071
    %vm1073 = vcmask 39968
    %1074 = vst.msk [vmem:[#allocation2] sm:$0xff] %vm1073, %v1072
    %vm1075 = vcmask 1048480
    %v1076 = vsel %vm1075, %v1026, -inf
    %vm1077 = vcmask 719872
    %v1078 = vsel %vm1077, %v1027, -inf
    %v1079 = vmax.f32 %v1076, %v1078
    %1080 = vmax.xlane.f32.xlu0 %v1079
    %v1081 = vpop.xlane.xlu0 %1080
    %vm1082 = vcmask 48168
    %1083 = vst.msk [vmem:[#allocation2] sm:$0xff] %vm1082, %v1081
    %vm1084 = vcmask 1048256
    %v1085 = vsel %vm1084, %v1027, -inf
    %vm1086 = vcmask 490496
    %v1087 = vsel %vm1086, %v1028, -inf
    %v1088 = vmax.f32 %v1085, %v1087
    %1089 = vmax.xlane.f32.xlu0 %v1088
    %v1090 = vpop.xlane.xlu0 %1089
    %vm1091 = vcmask 56368
    %1092 = vst.msk [vmem:[#allocation2] sm:$0xff] %vm1091, %v1090
    %vm1093 = vcmask 1048032
    %v1094 = vsel %vm1093, %v1028, -inf
    %vm1095 = vcmask 261120
    %v1096 = vsel %vm1095, %v1029, -inf
    %v1097 = vmax.f32 %v1094, %v1096
    %1098 = vmax.xlane.f32.xlu0 %v1097
    %v1099 = vpop.xlane.xlu0 %1098
    %vm1100 = vcmask 64568
    %1101 = vst.msk [vmem:[#allocation2] sm:$0xff] %vm1100, %v1099
    %vm1102 = vcmask 1047808
    %v1103 = vsel %vm1102, %v1029, -inf
    %vm1104 = vcmask 31744
    %v1105 = vsel %vm1104, %v1030, -inf
    %v1106 = vmax.f32 %v1103, %v1105
    %1107 = vmax.xlane.f32.xlu0 %v1106
    %v1108 = vpop.xlane.xlu0 %1107
    %vm1109 = vcmask 72768
    %1110 = vst.msk [vmem:[#allocation2] sm:$0xff] %vm1109, %v1108
    %vm1111 = vcmask 850976
    %v1112 = vsel %vm1111, %v1030, -inf
    %1113 = vmax.xlane.f32.xlu0 %v1112
    %v1114 = vpop.xlane.xlu0 %1113
    %vm1115 = vcmask 80968
    %1116 = vst.msk [vmem:[#allocation2] sm:$0xff] %vm1115, %v1114
    %vm1117 = vcmask 1048384
    %v1118 = vsel %vm1117, %v1030, -inf
    %vm1119 = vcmask 621568
    %v1120 = vsel %vm1119, %v1031, -inf
    %v1121 = vmax.f32 %v1118, %v1120
    %1122 = vmax.xlane.f32.xlu0 %v1121
    %v1123 = vpop.xlane.xlu0 %1122
    %vm1124 = vcmask 89168
    %1125 = vst.msk [vmem:[#allocation2] sm:$0xff] %vm1124, %v1123
    %vm1126 = vcmask 1048160
    %v1127 = vsel %vm1126, %v1031, -inf
    %vm1128 = vcmask 392192
    %v1129 = vsel %vm1128, %v1032, -inf
    %v1130 = vmax.f32 %v1127, %v1129
    %1131 = vmax.xlane.f32.xlu0 %v1130
    %v1132 = vpop.xlane.xlu0 %1131
    %vm1133 = vcmask 97368
    %1134 = vst.msk [vmem:[#allocation2] sm:$0xff] %vm1133, %v1132
    %vm1135 = vcmask 1047936
    %v1136 = vsel %vm1135, %v1032, -inf
    %vm1137 = vcmask 162816
    %v1138 = vsel %vm1137, %v1033, -inf
    %v1139 = vmax.f32 %v1136, %v1138
    %1140 = vmax.xlane.f32.xlu0 %v1139
    %v1141 = vpop.xlane.xlu0 %1140
    %vm1142 = vcmask 105568
    %1143 = vst.msk [vmem:[#allocation2] sm:$0xff] %vm1142, %v1141
    %vm1144 = vcmask 982176
    %v1145 = vsel %vm1144, %v1033, -inf
    %1146 = vmax.xlane.f32.xlu0 %v1145
    %v1147 = vpop.xlane.xlu0 %1146
    %vm1148 = vcmask 113768
    %1149 = vst.msk [vmem:[#allocation2] sm:$0xff] %vm1148, %v1147
    %vm1150 = vcmask 1048512
    %v1151 = vsel %vm1150, %v1033, -inf
    %vm1152 = vcmask 752640
    %v1153 = vsel %vm1152, %v1034, -inf
    %v1154 = vmax.f32 %v1151, %v1153
    %1155 = vmax.xlane.f32.xlu0 %v1154
    %v1156 = vpop.xlane.xlu0 %1155
    %vm1157 = vcmask 121968
    %1158 = vst.msk [vmem:[#allocation2] sm:$0xff] %vm1157, %v1156
    %vm1159 = vcmask 1048288
    %v1160 = vsel %vm1159, %v1034, -inf
    %v1161 = vsel %vm949, %v1035, -inf
    %v1162 = vmax.f32 %v1160, %v1161
    %1163 = vmax.xlane.f32.xlu0 %v1162
    %v1164 = vpop.xlane.xlu0 %1163
    %vm1165 = vcmask 130168
    %1166 = vst.msk [vmem:[#allocation2] sm:$0xff] %vm1165, %v1164
    %v1167 = vld [vmem:[%s3] sm:$0xff]
    %v1168 = vld [vmem:[%s3 + $0x8] sm:$0xff]
    %v1169 = vld [vmem:[%s3 + $0x10] sm:$0xff]
    %v1170 = vld [vmem:[%s3 + $0x18] sm:$0xff]
    %v1171 = vld [vmem:[%s3 + $0x20] sm:$0xff]
    %v1172 = vld [vmem:[%s3 + $0x28] sm:$0xff]
    %v1173 = vld [vmem:[%s3 + $0x30] sm:$0xff]
    %v1174 = vld [vmem:[%s3 + $0x38] sm:$0xff]
    %v1175 = vld [vmem:[%s3 + $0x40] sm:$0xff]
    %v1176 = vld [vmem:[%s3 + $0x48] sm:$0xff]
    %v1177 = vld [vmem:[%s3 + $0x50] sm:$0xff]
    %v1178 = vld [vmem:[%s3 + $0x58] sm:$0xff]
    %v1179 = vld [vmem:[%s3 + $0x60] sm:$0xff]
    %v1180 = vld [vmem:[%s3 + $0x68] sm:$0xff]
    %v1181 = vld [vmem:[%s3 + $0x70] sm:$0xff]
    %v1182 = vld [vmem:[%s3 + $0x78] sm:$0xff]
    %v1183 = vld [vmem:[%s3 + $0x80] sm:$0xff]
    %v1184 = vld [vmem:[%s3 + $0x88] sm:$0xff]
    %v1185 = vld [vmem:[%s3 + $0x90] sm:$0xff]
    %v1186 = vld [vmem:[%s3 + $0x98] sm:$0xff]
    %v1187 = vld [vmem:[%s3 + $0xa0] sm:$0xff]
    %v1188 = vld [vmem:[%s3 + $0xa8] sm:$0xff]
    %v1189 = vld [vmem:[%s3 + $0xb0] sm:$0xff]
    %v1190 = vld [vmem:[%s3 + $0xb8] sm:$0xff]
    %v1191 = vld [vmem:[%s3 + $0xc0] sm:$0xff]
    %v1192 = vld [vmem:[%s3 + $0xc8] sm:$0xff]
    %v1193 = vld [vmem:[%s3 + $0xd0] sm:$0xff]
    %v1194 = vld [vmem:[%s3 + $0xd8] sm:$0xff]
    %v1195 = vld [vmem:[%s3 + $0xe0] sm:$0xff]
    %v1196 = vld [vmem:[%s3 + $0xe8] sm:$0xff]
    %v1197 = vld [vmem:[%s3 + $0xf0] sm:$0xff]
    %v1198 = vld [vmem:[%s3 + $0xf8] sm:$0xff]
    %v1199 = vld [vmem:[%s3 + $0x100] sm:$0xff]
    %v1200 = vld [vmem:[%s3 + $0x108] sm:$0xff]
    %v1201 = vld [vmem:[%s3 + $0x110] sm:$0xff]
    %v1202 = vld [vmem:[%s3 + $0x118] sm:$0xff]
    %v1203 = vld [vmem:[%s3 + $0x120] sm:$0xff]
    %v1204 = vld [vmem:[%s3 + $0x128] sm:$0xff]
    %v1205 = vld [vmem:[%s3 + $0x130] sm:$0xff]
    %v1206 = vld [vmem:[%s3 + $0x138] sm:$0xff]
    %v1207 = vld [vmem:[%s3 + $0x140] sm:$0xff]
    %v1208 = vld [vmem:[%s3 + $0x148] sm:$0xff]
    %v1209 = vld [vmem:[%s3 + $0x150] sm:$0xff]
    %v1210 = vld [vmem:[%s3 + $0x158] sm:$0xff]
    %v1211 = vld [vmem:[%s3 + $0x160] sm:$0xff]
    %v1212 = vld [vmem:[%s3 + $0x168] sm:$0xff]
    %v1213 = vld [vmem:[%s3 + $0x170] sm:$0xff]
    %v1214 = vld [vmem:[%s3 + $0x178] sm:$0xff]
    %v1215 = vld [vmem:[%s3 + $0x180] sm:$0xff]
    %v1216 = vld [vmem:[%s3 + $0x188] sm:$0xff]
    %v1217 = vld [vmem:[%s3 + $0x190] sm:$0xff]
    %v1218 = vld [vmem:[%s3 + $0x198] sm:$0xff]
    %v1219 = vld [vmem:[%s3 + $0x1a0] sm:$0xff]
    %v1220 = vld [vmem:[%s3 + $0x1a8] sm:$0xff]
    %v1221 = vld [vmem:[%s3 + $0x1b0] sm:$0xff]
    %v1222 = vld [vmem:[%s3 + $0x1b8] sm:$0xff]
    %v1223 = vld [vmem:[%s3 + $0x1c0] sm:$0xff]
    %v1224 = vld [vmem:[%s3 + $0x1c8] sm:$0xff]
    %v1225 = vld [vmem:[%s3 + $0x1d0] sm:$0xff]
    %v1226 = vld [vmem:[%s3 + $0x1d8] sm:$0xff]
    %v1227 = vld [vmem:[%s3 + $0x1e0] sm:$0xff]
    %v1228 = vld [vmem:[%s3 + $0x1e8] sm:$0xff]
    %v1229 = vld [vmem:[%s3 + $0x1f0] sm:$0xff]
    %v1230 = vld [vmem:[%s3 + $0x1f8] sm:$0xff]
    %v1231 = vld [vmem:[%s3 + $0x200] sm:$0xff]
    %v1232 = vld [vmem:[%s3 + $0x208] sm:$0xff]
    %v1233 = vld [vmem:[%s3 + $0x210] sm:$0xff]
    %v1234 = vld [vmem:[%s3 + $0x218] sm:$0xff]
    %v1235 = vld [vmem:[%s3 + $0x220] sm:$0xff]
    %v1236 = vld [vmem:[%s3 + $0x228] sm:$0xff]
    %v1237 = vld [vmem:[%s3 + $0x230] sm:$0xff]
    %v1238 = vld [vmem:[%s3 + $0x238] sm:$0xff]
    %v1239 = vld [vmem:[%s3 + $0x240] sm:$0xff]
    %v1240 = vld [vmem:[%s3 + $0x248] sm:$0xff]
    %v1241 = vld [vmem:[%s3 + $0x250] sm:$0xff]
    %v1242 = vld [vmem:[%s3 + $0x258] sm:$0xff]
    %v1243 = vld [vmem:[%s3 + $0x260] sm:$0xff]
    %v1244 = vld [vmem:[%s3 + $0x268] sm:$0xff]
    %v1245 = vld [vmem:[%s3 + $0x270] sm:$0xff]
    %v1246 = vld [vmem:[%s3 + $0x278] sm:$0xff]
    %v1247 = vld [vmem:[%s3 + $0x280] sm:$0xff]
    %v1248 = vld [vmem:[%s3 + $0x288] sm:$0xff]
    %v1249 = vld [vmem:[%s3 + $0x290] sm:$0xff]
    %v1250 = vld [vmem:[%s3 + $0x298] sm:$0xff]
    %v1251 = vld [vmem:[%s3 + $0x2a0] sm:$0xff]
    %v1252 = vld [vmem:[%s3 + $0x2a8] sm:$0xff]
    %v1253 = vld [vmem:[%s3 + $0x2b0] sm:$0xff]
    %v1254 = vld [vmem:[%s3 + $0x2b8] sm:$0xff]
    %v1255 = vld [vmem:[%s3 + $0x2c0] sm:$0xff]
    %v1256 = vld [vmem:[%s3 + $0x2c8] sm:$0xff]
    %v1257 = vld [vmem:[%s3 + $0x2d0] sm:$0xff]
    %v1258 = vld [vmem:[%s3 + $0x2d8] sm:$0xff]
    %v1259 = vld [vmem:[%s3 + $0x2e0] sm:$0xff]
    %v1260 = vld [vmem:[%s3 + $0x2e8] sm:$0xff]
    %v1261 = vld [vmem:[%s3 + $0x2f0] sm:$0xff]
    %v1262 = vld [vmem:[%s3 + $0x2f8] sm:$0xff]
    %v1263 = vld [vmem:[%s3 + $0x300] sm:$0xff]
    %v1264 = vld [vmem:[%s3 + $0x308] sm:$0xff]
    %v1265 = vld [vmem:[%s3 + $0x310] sm:$0xff]
    %v1266 = vld [vmem:[%s3 + $0x318] sm:$0xff]
    %v1267 = vld [vmem:[%s3 + $0x320] sm:$0xff]
    %v1268 = vld [vmem:[%s3 + $0x328] sm:$0xff]
    %v1269 = vld [vmem:[%s3 + $0x330] sm:$0xff]
    %v1270 = vld [vmem:[%s3 + $0x338] sm:$0xff]
    %v1271 = vld [vmem:[%s3 + $0x340] sm:$0xff]
    %v1272 = vld [vmem:[%s3 + $0x348] sm:$0xff]
    %v1273 = vld [vmem:[%s3 + $0x350] sm:$0xff]
    %v1274 = vld [vmem:[%s3 + $0x358] sm:$0xff]
    %v1275 = vld [vmem:[%s3 + $0x360] sm:$0xff]
    %v1276 = vld [vmem:[%s3 + $0x368] sm:$0xff]
    %v1277 = vld [vmem:[%s3 + $0x370] sm:$0xff]
    %v1278 = vld [vmem:[%s3 + $0x378] sm:$0xff]
    %v1279 = vld [vmem:[%s3 + $0x380] sm:$0xff]
    %v1280 = vld [vmem:[%s3 + $0x388] sm:$0xff]
    %v1281 = vld [vmem:[%s3 + $0x390] sm:$0xff]
    %v1282 = vld [vmem:[%s3 + $0x398] sm:$0xff]
    %v1283 = vld [vmem:[%s3 + $0x3a0] sm:$0xff]
    %v1284 = vld [vmem:[%s3 + $0x3a8] sm:$0xff]
    %v1285 = vld [vmem:[%s3 + $0x3b0] sm:$0xff]
    %v1286 = vld [vmem:[%s3 + $0x3b8] sm:$0xff]
    %v1287 = vld [vmem:[%s3 + $0x3c0] sm:$0xff]
    %v1288 = vld [vmem:[%s3 + $0x3c8] sm:$0xff]
    %v1289 = vld [vmem:[%s3 + $0x3d0] sm:$0xff]
    %v1290 = vld [vmem:[%s3 + $0x3d8] sm:$0xff]
    %v1291 = vld [vmem:[%s3 + $0x3e0] sm:$0xff]
    %v1292 = vld [vmem:[%s3 + $0x3e8] sm:$0xff]
    %v1293 = vld [vmem:[%s3 + $0x3f0] sm:$0xff]
    %v1294 = vld [vmem:[%s3 + $0x3f8] sm:$0xff]
    %v1295 = vld [vmem:[%s3 + $0x400] sm:$0xff]
    %v1296 = vld [vmem:[%s3 + $0x408] sm:$0xff]
    %v1297 = vld [vmem:[%s3 + $0x410] sm:$0xff]
    %v1298 = vld [vmem:[%s3 + $0x418] sm:$0xff]
    %v1299 = vld [vmem:[%s3 + $0x420] sm:$0xff]
    %v1300 = vld [vmem:[%s3 + $0x428] sm:$0xff]
    %v1301 = vld [vmem:[%s3 + $0x430] sm:$0xff]
    %v1302 = vld [vmem:[%s3 + $0x438] sm:$0xff]
    %v1303 = vld [vmem:[%s3 + $0x440] sm:$0xff]
    %v1304 = vld [vmem:[%s3 + $0x448] sm:$0xff]
    %v1305 = vld [vmem:[%s3 + $0x450] sm:$0xff]
    %v1306 = vld [vmem:[%s3 + $0x458] sm:$0xff]
    %v1307 = vld [vmem:[%s3 + $0x460] sm:$0xff]
    %v1308 = vld [vmem:[%s3 + $0x468] sm:$0xff]
    %v1309 = vld [vmem:[%s3 + $0x470] sm:$0xff]
    %v1310 = vld [vmem:[%s3 + $0x478] sm:$0xff]
    %v1311 = vld [vmem:[%s3 + $0x480] sm:$0xff]
    %v1312 = vld [vmem:[%s3 + $0x488] sm:$0xff]
    %v1313 = vld [vmem:[%s3 + $0x490] sm:$0xff]
    %v1314 = vld [vmem:[%s3 + $0x498] sm:$0xff]
    %v1315 = vld [vmem:[%s3 + $0x4a0] sm:$0xff]
    %v1316 = vld [vmem:[%s3 + $0x4a8] sm:$0xff]
    %v1317 = vld [vmem:[%s3 + $0x4b0] sm:$0xff]
    %v1318 = vld [vmem:[%s3 + $0x4b8] sm:$0xff]
    %v1319 = vld [vmem:[%s3 + $0x4c0] sm:$0xff]
    %v1320 = vld [vmem:[%s3 + $0x4c8] sm:$0xff]
    %v1321 = vld [vmem:[%s3 + $0x4d0] sm:$0xff]
    %v1322 = vld [vmem:[%s3 + $0x4d8] sm:$0xff]
    %v1323 = vld [vmem:[%s3 + $0x4e0] sm:$0xff]
    %v1324 = vld [vmem:[%s3 + $0x4e8] sm:$0xff]
    %v1325 = vld [vmem:[%s3 + $0x4f0] sm:$0xff]
    %v1326 = vld [vmem:[%s3 + $0x4f8] sm:$0xff]
    %v1327 = vld [vmem:[%s3 + $0x500] sm:$0xff]
    %v1328 = vld [vmem:[%s3 + $0x508] sm:$0xff]
    %v1329 = vld [vmem:[%s3 + $0x510] sm:$0xff]
    %v1330 = vld [vmem:[%s3 + $0x518] sm:$0xff]
    %v1331 = vld [vmem:[%s3 + $0x520] sm:$0xff]
    %v1332 = vld [vmem:[%s3 + $0x528] sm:$0xff]
    %v1333 = vld [vmem:[%s3 + $0x530] sm:$0xff]
    %v1334 = vld [vmem:[%s3 + $0x538] sm:$0xff]
    %v1335 = vld [vmem:[%s3 + $0x540] sm:$0xff]
    %v1336 = vld [vmem:[%s3 + $0x548] sm:$0xff]
    %v1337 = vld [vmem:[%s3 + $0x550] sm:$0xff]
    %v1338 = vld [vmem:[%s3 + $0x558] sm:$0xff]
    %v1339 = vld [vmem:[%s3 + $0x560] sm:$0xff]
    %v1340 = vld [vmem:[%s3 + $0x568] sm:$0xff]
    %v1341 = vld [vmem:[%s3 + $0x570] sm:$0xff]
    %v1342 = vld [vmem:[%s3 + $0x578] sm:$0xff]
    %v1343 = vld [vmem:[%s3 + $0x580] sm:$0xff]
    %v1344 = vld [vmem:[%s3 + $0x588] sm:$0xff]
    %v1345 = vld [vmem:[%s3 + $0x590] sm:$0xff]
    %v1346 = vld [vmem:[%s3 + $0x598] sm:$0xff]
    %v1347 = vld [vmem:[%s3 + $0x5a0] sm:$0xff]
    %v1348 = vld [vmem:[%s3 + $0x5a8] sm:$0xff]
    %v1349 = vld [vmem:[%s3 + $0x5b0] sm:$0xff]
    %v1350 = vld [vmem:[%s3 + $0x5b8] sm:$0xff]
    %v1351 = vld [vmem:[%s3 + $0x5c0] sm:$0xff]
    %v1352 = vld [vmem:[%s3 + $0x5c8] sm:$0xff]
    %v1353 = vld [vmem:[%s3 + $0x5d0] sm:$0xff]
    %v1354 = vld [vmem:[%s3 + $0x5d8] sm:$0xff]
    %v1355 = vld [vmem:[%s3 + $0x5e0] sm:$0xff]
    %v1356 = vld [vmem:[%s3 + $0x5e8] sm:$0xff]
    %v1357 = vld [vmem:[%s3 + $0x5f0] sm:$0xff]
    %v1358 = vld [vmem:[%s3 + $0x5f8] sm:$0xff]
    %v1359 = vld [vmem:[%s3 + $0x600] sm:$0xff]
    %v1360 = vld [vmem:[%s3 + $0x608] sm:$0xff]
    %v1361 = vld [vmem:[%s3 + $0x610] sm:$0xff]
    %v1362 = vld [vmem:[%s3 + $0x618] sm:$0xff]
    %v1363 = vld [vmem:[%s3 + $0x620] sm:$0xff]
    %v1364 = vld [vmem:[%s3 + $0x628] sm:$0xff]
    %v1365 = vld [vmem:[%s3 + $0x630] sm:$0xff]
    %v1366 = vld [vmem:[%s3 + $0x638] sm:$0xff]
    %v1367 = vld [vmem:[%s3 + $0x640] sm:$0xff]
    %v1368 = vld [vmem:[%s3 + $0x648] sm:$0xff]
    %v1369 = vld [vmem:[%s3 + $0x650] sm:$0xff]
    %v1370 = vld [vmem:[%s3 + $0x658] sm:$0xff]
    %v1371 = vld [vmem:[%s3 + $0x660] sm:$0xff]
    %v1372 = vld [vmem:[%s3 + $0x668] sm:$0xff]
    %v1373 = vld [vmem:[%s3 + $0x670] sm:$0xff]
    %v1374 = vld [vmem:[%s3 + $0x678] sm:$0xff]
    %v1375 = vld [vmem:[%s3 + $0x680] sm:$0xff]
    %v1376 = vld [vmem:[%s3 + $0x688] sm:$0xff]
    %v1377 = vld [vmem:[%s3 + $0x690] sm:$0xff]
    %v1378 = vld [vmem:[%s3 + $0x698] sm:$0xff]
    %v1379 = vld [vmem:[%s3 + $0x6a0] sm:$0xff]
    %v1380 = vld [vmem:[%s3 + $0x6a8] sm:$0xff]
    %v1381 = vld [vmem:[%s3 + $0x6b0] sm:$0xff]
    %v1382 = vld [vmem:[%s3 + $0x6b8] sm:$0xff]
    %v1383 = vld [vmem:[%s3 + $0x6c0] sm:$0xff]
    %v1384 = vld [vmem:[%s3 + $0x6c8] sm:$0xff]
    %v1385 = vld [vmem:[%s3 + $0x6d0] sm:$0xff]
    %v1386 = vld [vmem:[%s3 + $0x6d8] sm:$0xff]
    %v1387 = vld [vmem:[%s3 + $0x6e0] sm:$0xff]
    %v1388 = vld [vmem:[%s3 + $0x6e8] sm:$0xff]
    %v1389 = vld [vmem:[%s3 + $0x6f0] sm:$0xff]
    %v1390 = vld [vmem:[%s3 + $0x6f8] sm:$0xff]
    %v1391 = vld [vmem:[%s3 + $0x700] sm:$0xff]
    %v1392 = vld [vmem:[%s3 + $0x708] sm:$0xff]
    %v1393 = vld [vmem:[%s3 + $0x710] sm:$0xff]
    %v1394 = vld [vmem:[%s3 + $0x718] sm:$0xff]
    %v1395 = vld [vmem:[%s3 + $0x720] sm:$0xff]
    %v1396 = vld [vmem:[%s3 + $0x728] sm:$0xff]
    %v1397 = vld [vmem:[%s3 + $0x730] sm:$0xff]
    %v1398 = vld [vmem:[%s3 + $0x738] sm:$0xff]
    %v1399 = vld [vmem:[%s3 + $0x740] sm:$0xff]
    %v1400 = vld [vmem:[%s3 + $0x748] sm:$0xff]
    %v1401 = vld [vmem:[%s3 + $0x750] sm:$0xff]
    %v1402 = vld [vmem:[%s3 + $0x758] sm:$0xff]
    %v1403 = vld [vmem:[%s3 + $0x760] sm:$0xff]
    %v1404 = vld [vmem:[%s3 + $0x768] sm:$0xff]
    %v1405 = vld [vmem:[%s3 + $0x770] sm:$0xff]
    %v1406 = vld [vmem:[%s3 + $0x778] sm:$0xff]
    %v1407 = vld [vmem:[%s3 + $0x780] sm:$0xff]
    %v1408 = vld [vmem:[%s3 + $0x788] sm:$0xff]
    %v1409 = vld [vmem:[%s3 + $0x790] sm:$0xff]
    %v1410 = vld [vmem:[%s3 + $0x798] sm:$0xff]
    %v1411 = vld [vmem:[%s3 + $0x7a0] sm:$0xff]
    %v1412 = vld [vmem:[%s3 + $0x7a8] sm:$0xff]
    %v1413 = vld [vmem:[%s3 + $0x7b0] sm:$0xff]
    %v1414 = vld [vmem:[%s3 + $0x7b8] sm:$0xff]
    %v1415 = vld [vmem:[%s3 + $0x7c0] sm:$0xff]
    %v1416 = vld [vmem:[%s3 + $0x7c8] sm:$0xff]
    %v1417 = vld [vmem:[%s3 + $0x7d0] sm:$0xff]
    %v1418 = vld [vmem:[%s3 + $0x7d8] sm:$0xff]
    %v1419 = vld [vmem:[%s3 + $0x7e0] sm:$0xff]
    %v1420 = vld [vmem:[%s3 + $0x7e8] sm:$0xff]
    %v1421 = vld [vmem:[%s3 + $0x7f0] sm:$0xff]
    %v1422 = vld [vmem:[%s3 + $0x7f8] sm:$0xff]
    %v1423 = vld [vmem:[%s3 + $0x800] sm:$0xff]
    %v1424 = vld [vmem:[%s3 + $0x808] sm:$0xff]
    %v1425 = vld [vmem:[%s3 + $0x810] sm:$0xff]
    %v1426 = vld [vmem:[%s3 + $0x818] sm:$0xff]
    %v1427 = vld [vmem:[%s3 + $0x820] sm:$0xff]
    %v1428 = vld [vmem:[%s3 + $0x828] sm:$0xff]
    %v1429 = vld [vmem:[%s3 + $0x830] sm:$0xff]
    %v1430 = vld [vmem:[%s3 + $0x838] sm:$0xff]
    %v1431 = vld [vmem:[%s3 + $0x840] sm:$0xff]
    %v1432 = vld [vmem:[%s3 + $0x848] sm:$0xff]
    %v1433 = vld [vmem:[%s3 + $0x850] sm:$0xff]
    %v1434 = vld [vmem:[%s3 + $0x858] sm:$0xff]
    %v1435 = vld [vmem:[%s3 + $0x860] sm:$0xff]
    %v1436 = vld [vmem:[%s3 + $0x868] sm:$0xff]
    %v1437 = vld [vmem:[%s3 + $0x870] sm:$0xff]
    %v1438 = vld [vmem:[%s3 + $0x878] sm:$0xff]
    %v1439 = vld [vmem:[%s3 + $0x880] sm:$0xff]
    %v1440 = vld [vmem:[%s3 + $0x888] sm:$0xff]
    %v1441 = vld [vmem:[%s3 + $0x890] sm:$0xff]
    %v1442 = vld [vmem:[%s3 + $0x898] sm:$0xff]
    %v1443 = vld [vmem:[%s3 + $0x8a0] sm:$0xff]
    %v1444 = vld [vmem:[%s3 + $0x8a8] sm:$0xff]
    %v1445 = vld [vmem:[%s3 + $0x8b0] sm:$0xff]
    %v1446 = vld [vmem:[%s3 + $0x8b8] sm:$0xff]
    %v1447 = vld [vmem:[%s3 + $0x8c0] sm:$0xff]
    %v1448 = vld [vmem:[%s3 + $0x8c8] sm:$0xff]
    %v1449 = vld [vmem:[%s3 + $0x8d0] sm:$0xff]
    %v1450 = vld [vmem:[%s3 + $0x8d8] sm:$0xff]
    %v1451 = vld [vmem:[%s3 + $0x8e0] sm:$0xff]
    %v1452 = vld [vmem:[%s3 + $0x8e8] sm:$0xff]
    %v1453 = vld [vmem:[%s3 + $0x8f0] sm:$0xff]
    %v1454 = vld [vmem:[%s3 + $0x8f8] sm:$0xff]
    %v1455 = vld [vmem:[%s3 + $0x900] sm:$0xff]
    %v1456 = vld [vmem:[%s3 + $0x908] sm:$0xff]
    %v1457 = vld [vmem:[%s3 + $0x910] sm:$0xff]
    %v1458 = vld [vmem:[%s3 + $0x918] sm:$0xff]
    %v1459 = vld [vmem:[%s3 + $0x920] sm:$0xff]
    %v1460 = vld [vmem:[%s3 + $0x928] sm:$0xff]
    %v1461 = vld [vmem:[%s3 + $0x930] sm:$0xff]
    %v1462 = vld [vmem:[%s3 + $0x938] sm:$0xff]
    %v1463 = vld [vmem:[%s3 + $0x940] sm:$0xff]
    %v1464 = vld [vmem:[%s3 + $0x948] sm:$0xff]
    %v1465 = vld [vmem:[%s3 + $0x950] sm:$0xff]
    %v1466 = vld [vmem:[%s3 + $0x958] sm:$0xff]
    %v1467 = vld [vmem:[%s3 + $0x960] sm:$0xff]
    %v1468 = vld [vmem:[%s3 + $0x968] sm:$0xff]
    %v1469 = vld [vmem:[%s3 + $0x970] sm:$0xff]
    %v1470 = vld [vmem:[%s3 + $0x978] sm:$0xff]
    %v1471 = vld [vmem:[%s3 + $0x980] sm:$0xff]
    %v1472 = vld [vmem:[%s3 + $0x988] sm:$0xff]
    %v1473 = vld [vmem:[%s3 + $0x990] sm:$0xff]
    %v1474 = vld [vmem:[%s3 + $0x998] sm:$0xff]
    %v1475 = vld [vmem:[%s3 + $0x9a0] sm:$0xff]
    %v1476 = vld [vmem:[%s3 + $0x9a8] sm:$0xff]
    %v1477 = vld [vmem:[%s3 + $0x9b0] sm:$0xff]
    %v1478 = vld [vmem:[%s3 + $0x9b8] sm:$0xff]
    %v1479 = vld [vmem:[%s3 + $0x9c0] sm:$0xff]
    %v1480 = vld [vmem:[%s3 + $0x9c8] sm:$0xff]
    %v1481 = vld [vmem:[%s3 + $0x9d0] sm:$0xff]
    %v1482 = vld [vmem:[%s3 + $0x9d8] sm:$0xff]
    %v1483 = vld [vmem:[%s3 + $0x9e0] sm:$0xff]
    %v1484 = vld [vmem:[%s3 + $0x9e8] sm:$0xff]
    %v1485 = vld [vmem:[%s3 + $0x9f0] sm:$0xff]
    %v1486 = vld [vmem:[%s3 + $0x9f8] sm:$0xff]
    %v1487 = vld [vmem:[%s3 + $0xa00] sm:$0xff]
    %v1488 = vld [vmem:[%s3 + $0xa08] sm:$0xff]
    %v1489 = vld [vmem:[%s3 + $0xa10] sm:$0xff]
    %v1490 = vld [vmem:[%s3 + $0xa18] sm:$0xff]
    %v1491 = vld [vmem:[%s3 + $0xa20] sm:$0xff]
    %v1492 = vld [vmem:[%s3 + $0xa28] sm:$0xff]
    %v1493 = vld [vmem:[%s3 + $0xa30] sm:$0xff]
    %v1494 = vld [vmem:[%s3 + $0xa38] sm:$0xff]
    %v1495 = vld [vmem:[%s3 + $0xa40] sm:$0xff]
    %v1496 = vld [vmem:[%s3 + $0xa48] sm:$0xff]
    %v1497 = vld [vmem:[%s3 + $0xa50] sm:$0xff]
    %v1498 = vld [vmem:[%s3 + $0xa58] sm:$0xff]
    %v1499 = vld [vmem:[%s3 + $0xa60] sm:$0xff]
    %v1500 = vld [vmem:[%s3 + $0xa68] sm:$0xff]
    %v1501 = vld [vmem:[%s3 + $0xa70] sm:$0xff]
    %v1502 = vld [vmem:[%s3 + $0xa78] sm:$0xff]
    %v1503 = vld [vmem:[%s3 + $0xa80] sm:$0xff]
    %v1504 = vld [vmem:[%s3 + $0xa88] sm:$0xff]
    %v1505 = vld [vmem:[%s3 + $0xa90] sm:$0xff]
    %v1506 = vld [vmem:[%s3 + $0xa98] sm:$0xff]
    %v1507 = vld [vmem:[%s3 + $0xaa0] sm:$0xff]
    %v1508 = vld [vmem:[%s3 + $0xaa8] sm:$0xff]
    %v1509 = vld [vmem:[%s3 + $0xab0] sm:$0xff]
    %v1510 = vld [vmem:[%s3 + $0xab8] sm:$0xff]
    %v1511 = vld [vmem:[%s3 + $0xac0] sm:$0xff]
    %v1512 = vld [vmem:[%s3 + $0xac8] sm:$0xff]
    %v1513 = vld [vmem:[%s3 + $0xad0] sm:$0xff]
    %v1514 = vld [vmem:[%s3 + $0xad8] sm:$0xff]
    %v1515 = vld [vmem:[%s3 + $0xae0] sm:$0xff]
    %v1516 = vld [vmem:[%s3 + $0xae8] sm:$0xff]
    %v1517 = vld [vmem:[%s3 + $0xaf0] sm:$0xff]
    %v1518 = vld [vmem:[%s3 + $0xaf8] sm:$0xff]
    %v1519 = vld [vmem:[%s3 + $0xb00] sm:$0xff]
    %v1520 = vld [vmem:[%s3 + $0xb08] sm:$0xff]
    %v1521 = vld [vmem:[%s3 + $0xb10] sm:$0xff]
    %v1522 = vld [vmem:[%s3 + $0xb18] sm:$0xff]
    %v1523 = vld [vmem:[%s3 + $0xb20] sm:$0xff]
    %v1524 = vld [vmem:[%s3 + $0xb28] sm:$0xff]
    %v1525 = vld [vmem:[%s3 + $0xb30] sm:$0xff]
    %v1526 = vld [vmem:[%s3 + $0xb38] sm:$0xff]
    %v1527 = vld [vmem:[%s3 + $0xb40] sm:$0xff]
    %v1528 = vld [vmem:[%s3 + $0xb48] sm:$0xff]
    %v1529 = vld [vmem:[%s3 + $0xb50] sm:$0xff]
    %v1530 = vld [vmem:[%s3 + $0xb58] sm:$0xff]
    %v1531 = vld [vmem:[%s3 + $0xb60] sm:$0xff]
    %v1532 = vld [vmem:[%s3 + $0xb68] sm:$0xff]
    %v1533 = vld [vmem:[%s3 + $0xb70] sm:$0xff]
    %v1534 = vld [vmem:[%s3 + $0xb78] sm:$0xff]
    %v1535 = vld [vmem:[%s3 + $0xb80] sm:$0xff]
    %v1536 = vld [vmem:[%s3 + $0xb88] sm:$0xff]
    %v1537 = vld [vmem:[%s3 + $0xb90] sm:$0xff]
    %v1538 = vld [vmem:[%s3 + $0xb98] sm:$0xff]
    %v1539 = vld [vmem:[%s3 + $0xba0] sm:$0xff]
    %v1540 = vld [vmem:[%s3 + $0xba8] sm:$0xff]
    %v1541 = vld [vmem:[%s3 + $0xbb0] sm:$0xff]
    %v1542 = vld [vmem:[%s3 + $0xbb8] sm:$0xff]
    %v1543 = vld [vmem:[%s3 + $0xbc0] sm:$0xff]
    %v1544 = vld [vmem:[%s3 + $0xbc8] sm:$0xff]
    %v1545 = vld [vmem:[%s3 + $0xbd0] sm:$0xff]
    %v1546 = vld [vmem:[%s3 + $0xbd8] sm:$0xff]
    %v1547 = vld [vmem:[%s3 + $0xbe0] sm:$0xff]
    %v1548 = vld [vmem:[%s3 + $0xbe8] sm:$0xff]
    %v1549 = vld [vmem:[%s3 + $0xbf0] sm:$0xff]
    %v1550 = vld [vmem:[%s3 + $0xbf8] sm:$0xff]
    %v1551 = vld [vmem:[%s3 + $0xc00] sm:$0xff]
    %v1552 = vld [vmem:[%s3 + $0xc08] sm:$0xff]
    %v1553 = vld [vmem:[%s3 + $0xc10] sm:$0xff]
    %v1554 = vld [vmem:[%s3 + $0xc18] sm:$0xff]
    %v1555 = vld [vmem:[%s3 + $0xc20] sm:$0xff]
    %v1556 = vld [vmem:[%s3 + $0xc28] sm:$0xff]
    %v1557 = vld [vmem:[%s3 + $0xc30] sm:$0xff]
    %v1558 = vld [vmem:[%s3 + $0xc38] sm:$0xff]
    %v1559 = vld [vmem:[%s3 + $0xc40] sm:$0xff]
    %v1560 = vld [vmem:[%s3 + $0xc48] sm:$0xff]
    %v1561 = vld [vmem:[%s3 + $0xc50] sm:$0xff]
    %v1562 = vld [vmem:[%s3 + $0xc58] sm:$0xff]
    %v1563 = vld [vmem:[%s3 + $0xc60] sm:$0xff]
    %v1564 = vld [vmem:[%s3 + $0xc68] sm:$0xff]
    %v1565 = vld [vmem:[%s3 + $0xc70] sm:$0xff]
    %v1566 = vld [vmem:[%s3 + $0xc78] sm:$0xff]
    %v1567 = vld [vmem:[%s3 + $0xc80] sm:$0xff]
    %v1568 = vld [vmem:[%s3 + $0xc88] sm:$0xff]
    %v1569 = vld [vmem:[%s3 + $0xc90] sm:$0xff]
    %v1570 = vld [vmem:[%s3 + $0xc98] sm:$0xff]
    %v1571 = vld [vmem:[%s3 + $0xca0] sm:$0xff]
    %v1572 = vld [vmem:[%s3 + $0xca8] sm:$0xff]
    %v1573 = vld [vmem:[%s3 + $0xcb0] sm:$0xff]
    %v1574 = vld [vmem:[%s3 + $0xcb8] sm:$0xff]
    %v1575 = vld [vmem:[%s3 + $0xcc0] sm:$0xff]
    %v1576 = vld [vmem:[%s3 + $0xcc8] sm:$0xff]
    %v1577 = vld [vmem:[%s3 + $0xcd0] sm:$0xff]
    %v1578 = vld [vmem:[%s3 + $0xcd8] sm:$0xff]
    %v1579 = vld [vmem:[%s3 + $0xce0] sm:$0xff]
    %v1580 = vld [vmem:[%s3 + $0xce8] sm:$0xff]
    %v1581 = vld [vmem:[%s3 + $0xcf0] sm:$0xff]
    %v1582 = vld [vmem:[%s3 + $0xcf8] sm:$0xff]
    %1583 = vmatprep.subr.mxu0 %v1168
    %1584 = vmatpush1.msra.mxu0 %v1167
    %1585 = vmatprep.subr.mxu0 %v1181
    %1586 = vmatpush1.msra.mxu0 %v1180
    %1587 = vmatprep.subr.mxu0 %v1194
    %1588 = vmatpush1.msra.mxu0 %v1193
    %1589 = vmatprep.subr.mxu0 %v1207
    %1590 = vmatpush1.msra.mxu0 %v1206
    %1591 = vmatprep.subr.mxu0 %v1220
    %1592 = vmatpush1.msra.mxu0 %v1219
    %1593 = vmatprep.subr.mxu0 %v1233
    %1594 = vmatpush1.msra.mxu0 %v1232
    %1595 = vmatprep.subr.mxu0 %v1246
    %1596 = vmatpush1.msra.mxu0 %v1245
    %1597 = vmatprep.subr.mxu0 %v1259
    %1598 = vmatpush1.msra.mxu0 %v1258
    %1599 = vmatprep.subr.mxu0 %v1272
    %1600 = vmatpush1.msra.mxu0 %v1271
    %1601 = vmatprep.subr.mxu0 %v1285
    %1602 = vmatpush1.msra.mxu0 %v1284
    %1603 = vmatprep.subr.mxu0 %v1298
    %1604 = vmatpush1.msra.mxu0 %v1297
    %1605 = vmatprep.subr.mxu0 %v1311
    %1606 = vmatpush1.msra.mxu0 %v1310
    %1607 = vmatprep.subr.mxu0 %v1324
    %1608 = vmatpush1.msra.mxu0 %v1323
    %1609 = vmatprep.subr.mxu0 %v1337
    %1610 = vmatpush1.msra.mxu0 %v1336
    %1611 = vmatprep.subr.mxu0 %v1350
    %1612 = vmatpush1.msra.mxu0 %v1349
    %1613 = vmatprep.subr.mxu0 %v1363
    %1614 = vmatpush1.msra.mxu0 %v1362
    %1615 = vmatprep.subr.mxu0 %v1376
    %1616 = vmatpush1.msra.mxu0 %v1375
    %1617 = vmatprep.subr.mxu0 %v1389
    %1618 = vmatpush1.msra.mxu0 %v1388
    %1619 = vmatprep.subr.mxu0 %v1402
    %1620 = vmatpush1.msra.mxu0 %v1401
    %1621 = vmatprep.subr.mxu0 %v1415
    %1622 = vmatpush1.msra.mxu0 %v1414
    %1623 = vmatprep.subr.mxu0 %v1428
    %1624 = vmatpush1.msra.mxu0 %v1427
    %1625 = vmatprep.subr.mxu0 %v1441
    %1626 = vmatpush1.msra.mxu0 %v1440
    %1627 = vmatprep.subr.mxu0 %v1454
    %1628 = vmatpush1.msra.mxu0 %v1453
    %1629 = vmatprep.subr.mxu0 %v1467
    %1630 = vmatpush1.msra.mxu0 %v1466
    %1631 = vmatprep.subr.mxu0 %v1480
    %1632 = vmatpush1.msra.mxu0 %v1479
    %1633 = vmatprep.subr.mxu0 %v1493
    %1634 = vmatpush1.msra.mxu0 %v1492
    %1635 = vmatprep.subr.mxu0 %v1506
    %1636 = vmatpush1.msra.mxu0 %v1505
    %1637 = vmatprep.subr.mxu0 %v1519
    %1638 = vmatpush1.msra.mxu0 %v1518
    %1639 = vmatprep.subr.mxu0 %v1532
    %1640 = vmatpush1.msra.mxu0 %v1531
    %1641 = vmatprep.subr.mxu0 %v1545
    %1642 = vmatpush1.msra.mxu0 %v1544
    %1643 = vmatprep.subr.mxu0 %v1558
    %1644 = vmatpush1.msra.mxu0 %v1557
    %1645 = vmatprep.subr.mxu0 %v1571
    %1646 = vmatpush1.msra.mxu0 %v1570
    %1647 = vmatprep.mubr.f32.mxu0 %v19
    %1648 = vmatmul.mubr.f32.gmra.mrb[0].mxu0 %v18
    %v1649 = vpop.f32.mrb[0].mxu0
    %v1650 = vadd.f32 %v440, %v1649
    %v1651 = vpop.f32.mrb[0].mxu0
    %v1652 = vadd.f32 %v440, %v1651
    %1653 = vdwg.mxu0
    %1654 = vmatprep.subr.mxu0 %v1170
    %1655 = vmatpush1.msra.mxu0 %v1169
    %1656 = vmatprep.subr.mxu0 %v1183
    %1657 = vmatpush1.msra.mxu0 %v1182
    %1658 = vmatprep.subr.mxu0 %v1196
    %1659 = vmatpush1.msra.mxu0 %v1195
    %1660 = vmatprep.subr.mxu0 %v1209
    %1661 = vmatpush1.msra.mxu0 %v1208
    %1662 = vmatprep.subr.mxu0 %v1222
    %1663 = vmatpush1.msra.mxu0 %v1221
    %1664 = vmatprep.subr.mxu0 %v1235
    %1665 = vmatpush1.msra.mxu0 %v1234
    %1666 = vmatprep.subr.mxu0 %v1248
    %1667 = vmatpush1.msra.mxu0 %v1247
    %1668 = vmatprep.subr.mxu0 %v1261
    %1669 = vmatpush1.msra.mxu0 %v1260
    %1670 = vmatprep.subr.mxu0 %v1274
    %1671 = vmatpush1.msra.mxu0 %v1273
    %1672 = vmatprep.subr.mxu0 %v1287
    %1673 = vmatpush1.msra.mxu0 %v1286
    %1674 = vmatprep.subr.mxu0 %v1300
    %1675 = vmatpush1.msra.mxu0 %v1299
    %1676 = vmatprep.subr.mxu0 %v1313
    %1677 = vmatpush1.msra.mxu0 %v1312
    %1678 = vmatprep.subr.mxu0 %v1326
    %1679 = vmatpush1.msra.mxu0 %v1325
    %1680 = vmatprep.subr.mxu0 %v1339
    %1681 = vmatpush1.msra.mxu0 %v1338
    %1682 = vmatprep.subr.mxu0 %v1352
    %1683 = vmatpush1.msra.mxu0 %v1351
    %1684 = vmatprep.subr.mxu0 %v1365
    %1685 = vmatpush1.msra.mxu0 %v1364
    %1686 = vmatprep.subr.mxu0 %v1378
    %1687 = vmatpush1.msra.mxu0 %v1377
    %1688 = vmatprep.subr.mxu0 %v1391
    %1689 = vmatpush1.msra.mxu0 %v1390
    %1690 = vmatprep.subr.mxu0 %v1404
    %1691 = vmatpush1.msra.mxu0 %v1403
    %1692 = vmatprep.subr.mxu0 %v1417
    %1693 = vmatpush1.msra.mxu0 %v1416
    %1694 = vmatprep.subr.mxu0 %v1430
    %1695 = vmatpush1.msra.mxu0 %v1429
    %1696 = vmatprep.subr.mxu0 %v1443
    %1697 = vmatpush1.msra.mxu0 %v1442
    %1698 = vmatprep.subr.mxu0 %v1456
    %1699 = vmatpush1.msra.mxu0 %v1455
    %1700 = vmatprep.subr.mxu0 %v1469
    %1701 = vmatpush1.msra.mxu0 %v1468
    %1702 = vmatprep.subr.mxu0 %v1482
    %1703 = vmatpush1.msra.mxu0 %v1481
    %1704 = vmatprep.subr.mxu0 %v1495
    %1705 = vmatpush1.msra.mxu0 %v1494
    %1706 = vmatprep.subr.mxu0 %v1508
    %1707 = vmatpush1.msra.mxu0 %v1507
    %1708 = vmatprep.subr.mxu0 %v1521
    %1709 = vmatpush1.msra.mxu0 %v1520
    %1710 = vmatprep.subr.mxu0 %v1534
    %1711 = vmatpush1.msra.mxu0 %v1533
    %1712 = vmatprep.subr.mxu0 %v1547
    %1713 = vmatpush1.msra.mxu0 %v1546
    %1714 = vmatprep.subr.mxu0 %v1560
    %1715 = vmatpush1.msra.mxu0 %v1559
    %1716 = vmatprep.subr.mxu0 %v1573
    %1717 = vmatpush1.msra.mxu0 %v1572
    %1718 = vmatprep.mubr.f32.mxu0 %v19
    %1719 = vmatmul.mubr.f32.gmra.mrb[0].mxu0 %v18
    %v1720 = vpop.f32.mrb[0].mxu0
    %v1721 = vadd.f32 %v440, %v1720
    %v1722 = vpop.f32.mrb[0].mxu0
    %v1723 = vadd.f32 %v440, %v1722
    %1724 = vdwg.mxu0
    %1725 = vmatprep.subr.mxu0 %v1172
    %1726 = vmatpush1.msra.mxu0 %v1171
    %1727 = vmatprep.subr.mxu0 %v1185
    %1728 = vmatpush1.msra.mxu0 %v1184
    %1729 = vmatprep.subr.mxu0 %v1198
    %1730 = vmatpush1.msra.mxu0 %v1197
    %1731 = vmatprep.subr.mxu0 %v1211
    %1732 = vmatpush1.msra.mxu0 %v1210
    %1733 = vmatprep.subr.mxu0 %v1224
    %1734 = vmatpush1.msra.mxu0 %v1223
    %1735 = vmatprep.subr.mxu0 %v1237
    %1736 = vmatpush1.msra.mxu0 %v1236
    %1737 = vmatprep.subr.mxu0 %v1250
    %1738 = vmatpush1.msra.mxu0 %v1249
    %1739 = vmatprep.subr.mxu0 %v1263
    %1740 = vmatpush1.msra.mxu0 %v1262
    %1741 = vmatprep.subr.mxu0 %v1276
    %1742 = vmatpush1.msra.mxu0 %v1275
    %1743 = vmatprep.subr.mxu0 %v1289
    %1744 = vmatpush1.msra.mxu0 %v1288
    %1745 = vmatprep.subr.mxu0 %v1302
    %1746 = vmatpush1.msra.mxu0 %v1301
    %1747 = vmatprep.subr.mxu0 %v1315
    %1748 = vmatpush1.msra.mxu0 %v1314
    %1749 = vmatprep.subr.mxu0 %v1328
    %1750 = vmatpush1.msra.mxu0 %v1327
    %1751 = vmatprep.subr.mxu0 %v1341
    %1752 = vmatpush1.msra.mxu0 %v1340
    %1753 = vmatprep.subr.mxu0 %v1354
    %1754 = vmatpush1.msra.mxu0 %v1353
    %1755 = vmatprep.subr.mxu0 %v1367
    %1756 = vmatpush1.msra.mxu0 %v1366
    %1757 = vmatprep.subr.mxu0 %v1380
    %1758 = vmatpush1.msra.mxu0 %v1379
    %1759 = vmatprep.subr.mxu0 %v1393
    %1760 = vmatpush1.msra.mxu0 %v1392
    %1761 = vmatprep.subr.mxu0 %v1406
    %1762 = vmatpush1.msra.mxu0 %v1405
    %1763 = vmatprep.subr.mxu0 %v1419
    %1764 = vmatpush1.msra.mxu0 %v1418
    %1765 = vmatprep.subr.mxu0 %v1432
    %1766 = vmatpush1.msra.mxu0 %v1431
    %1767 = vmatprep.subr.mxu0 %v1445
    %1768 = vmatpush1.msra.mxu0 %v1444
    %1769 = vmatprep.subr.mxu0 %v1458
    %1770 = vmatpush1.msra.mxu0 %v1457
    %1771 = vmatprep.subr.mxu0 %v1471
    %1772 = vmatpush1.msra.mxu0 %v1470
    %1773 = vmatprep.subr.mxu0 %v1484
    %1774 = vmatpush1.msra.mxu0 %v1483
    %1775 = vmatprep.subr.mxu0 %v1497
    %1776 = vmatpush1.msra.mxu0 %v1496
    %1777 = vmatprep.subr.mxu0 %v1510
    %1778 = vmatpush1.msra.mxu0 %v1509
    %1779 = vmatprep.subr.mxu0 %v1523
    %1780 = vmatpush1.msra.mxu0 %v1522
    %1781 = vmatprep.subr.mxu0 %v1536
    %1782 = vmatpush1.msra.mxu0 %v1535
    %1783 = vmatprep.subr.mxu0 %v1549
    %1784 = vmatpush1.msra.mxu0 %v1548
    %1785 = vmatprep.subr.mxu0 %v1562
    %1786 = vmatpush1.msra.mxu0 %v1561
    %1787 = vmatprep.subr.mxu0 %v1575
    %1788 = vmatpush1.msra.mxu0 %v1574
    %1789 = vmatprep.mubr.f32.mxu0 %v19
    %1790 = vmatmul.mubr.f32.gmra.mrb[0].mxu0 %v18
    %v1791 = vpop.f32.mrb[0].mxu0
    %v1792 = vadd.f32 %v440, %v1791
    %v1793 = vpop.f32.mrb[0].mxu0
    %v1794 = vadd.f32 %v440, %v1793
    %1795 = vdwg.mxu0
    %1796 = vmatprep.subr.mxu0 %v1174
    %1797 = vmatpush1.msra.mxu0 %v1173
    %1798 = vmatprep.subr.mxu0 %v1187
    %1799 = vmatpush1.msra.mxu0 %v1186
    %1800 = vmatprep.subr.mxu0 %v1200
    %1801 = vmatpush1.msra.mxu0 %v1199
    %1802 = vmatprep.subr.mxu0 %v1213
    %1803 = vmatpush1.msra.mxu0 %v1212
    %1804 = vmatprep.subr.mxu0 %v1226
    %1805 = vmatpush1.msra.mxu0 %v1225
    %1806 = vmatprep.subr.mxu0 %v1239
    %1807 = vmatpush1.msra.mxu0 %v1238
    %1808 = vmatprep.subr.mxu0 %v1252
    %1809 = vmatpush1.msra.mxu0 %v1251
    %1810 = vmatprep.subr.mxu0 %v1265
    %1811 = vmatpush1.msra.mxu0 %v1264
    %1812 = vmatprep.subr.mxu0 %v1278
    %1813 = vmatpush1.msra.mxu0 %v1277
    %1814 = vmatprep.subr.mxu0 %v1291
    %1815 = vmatpush1.msra.mxu0 %v1290
    %1816 = vmatprep.subr.mxu0 %v1304
    %1817 = vmatpush1.msra.mxu0 %v1303
    %1818 = vmatprep.subr.mxu0 %v1317
    %1819 = vmatpush1.msra.mxu0 %v1316
    %1820 = vmatprep.subr.mxu0 %v1330
    %1821 = vmatpush1.msra.mxu0 %v1329
    %1822 = vmatprep.subr.mxu0 %v1343
    %1823 = vmatpush1.msra.mxu0 %v1342
    %1824 = vmatprep.subr.mxu0 %v1356
    %1825 = vmatpush1.msra.mxu0 %v1355
    %1826 = vmatprep.subr.mxu0 %v1369
    %1827 = vmatpush1.msra.mxu0 %v1368
    %1828 = vmatprep.subr.mxu0 %v1382
    %1829 = vmatpush1.msra.mxu0 %v1381
    %1830 = vmatprep.subr.mxu0 %v1395
    %1831 = vmatpush1.msra.mxu0 %v1394
    %1832 = vmatprep.subr.mxu0 %v1408
    %1833 = vmatpush1.msra.mxu0 %v1407
    %1834 = vmatprep.subr.mxu0 %v1421
    %1835 = vmatpush1.msra.mxu0 %v1420
    %1836 = vmatprep.subr.mxu0 %v1434
    %1837 = vmatpush1.msra.mxu0 %v1433
    %1838 = vmatprep.subr.mxu0 %v1447
    %1839 = vmatpush1.msra.mxu0 %v1446
    %1840 = vmatprep.subr.mxu0 %v1460
    %1841 = vmatpush1.msra.mxu0 %v1459
    %1842 = vmatprep.subr.mxu0 %v1473
    %1843 = vmatpush1.msra.mxu0 %v1472
    %1844 = vmatprep.subr.mxu0 %v1486
    %1845 = vmatpush1.msra.mxu0 %v1485
    %1846 = vmatprep.subr.mxu0 %v1499
    %1847 = vmatpush1.msra.mxu0 %v1498
    %1848 = vmatprep.subr.mxu0 %v1512
    %1849 = vmatpush1.msra.mxu0 %v1511
    %1850 = vmatprep.subr.mxu0 %v1525
    %1851 = vmatpush1.msra.mxu0 %v1524
    %1852 = vmatprep.subr.mxu0 %v1538
    %1853 = vmatpush1.msra.mxu0 %v1537
    %1854 = vmatprep.subr.mxu0 %v1551
    %1855 = vmatpush1.msra.mxu0 %v1550
    %1856 = vmatprep.subr.mxu0 %v1564
    %1857 = vmatpush1.msra.mxu0 %v1563
    %1858 = vmatprep.subr.mxu0 %v1577
    %1859 = vmatpush1.msra.mxu0 %v1576
    %1860 = vmatprep.mubr.f32.mxu0 %v19
    %1861 = vmatmul.mubr.f32.gmra.mrb[0].mxu0 %v18
    %v1862 = vpop.f32.mrb[0].mxu0
    %v1863 = vadd.f32 %v440, %v1862
    %v1864 = vpop.f32.mrb[0].mxu0
    %v1865 = vadd.f32 %v440, %v1864
    %1866 = vdwg.mxu0
    %1867 = vmatprep.subr.mxu0 %v1176
    %1868 = vmatpush1.msra.mxu0 %v1175
    %1869 = vmatprep.subr.mxu0 %v1189
    %1870 = vmatpush1.msra.mxu0 %v1188
    %1871 = vmatprep.subr.mxu0 %v1202
    %1872 = vmatpush1.msra.mxu0 %v1201
    %1873 = vmatprep.subr.mxu0 %v1215
    %1874 = vmatpush1.msra.mxu0 %v1214
    %1875 = vmatprep.subr.mxu0 %v1228
    %1876 = vmatpush1.msra.mxu0 %v1227
    %1877 = vmatprep.subr.mxu0 %v1241
    %1878 = vmatpush1.msra.mxu0 %v1240
    %1879 = vmatprep.subr.mxu0 %v1254
    %1880 = vmatpush1.msra.mxu0 %v1253
    %1881 = vmatprep.subr.mxu0 %v1267
    %1882 = vmatpush1.msra.mxu0 %v1266
    %1883 = vmatprep.subr.mxu0 %v1280
    %1884 = vmatpush1.msra.mxu0 %v1279
    %1885 = vmatprep.subr.mxu0 %v1293
    %1886 = vmatpush1.msra.mxu0 %v1292
    %1887 = vmatprep.subr.mxu0 %v1306
    %1888 = vmatpush1.msra.mxu0 %v1305
    %1889 = vmatprep.subr.mxu0 %v1319
    %1890 = vmatpush1.msra.mxu0 %v1318
    %1891 = vmatprep.subr.mxu0 %v1332
    %1892 = vmatpush1.msra.mxu0 %v1331
    %1893 = vmatprep.subr.mxu0 %v1345
    %1894 = vmatpush1.msra.mxu0 %v1344
    %1895 = vmatprep.subr.mxu0 %v1358
    %1896 = vmatpush1.msra.mxu0 %v1357
    %1897 = vmatprep.subr.mxu0 %v1371
    %1898 = vmatpush1.msra.mxu0 %v1370
    %1899 = vmatprep.subr.mxu0 %v1384
    %1900 = vmatpush1.msra.mxu0 %v1383
    %1901 = vmatprep.subr.mxu0 %v1397
    %1902 = vmatpush1.msra.mxu0 %v1396
    %1903 = vmatprep.subr.mxu0 %v1410
    %1904 = vmatpush1.msra.mxu0 %v1409
    %1905 = vmatprep.subr.mxu0 %v1423
    %1906 = vmatpush1.msra.mxu0 %v1422
    %1907 = vmatprep.subr.mxu0 %v1436
    %1908 = vmatpush1.msra.mxu0 %v1435
    %1909 = vmatprep.subr.mxu0 %v1449
    %1910 = vmatpush1.msra.mxu0 %v1448
    %1911 = vmatprep.subr.mxu0 %v1462
    %1912 = vmatpush1.msra.mxu0 %v1461
    %1913 = vmatprep.subr.mxu0 %v1475
    %1914 = vmatpush1.msra.mxu0 %v1474
    %1915 = vmatprep.subr.mxu0 %v1488
    %1916 = vmatpush1.msra.mxu0 %v1487
    %1917 = vmatprep.subr.mxu0 %v1501
    %1918 = vmatpush1.msra.mxu0 %v1500
    %1919 = vmatprep.subr.mxu0 %v1514
    %1920 = vmatpush1.msra.mxu0 %v1513
    %1921 = vmatprep.subr.mxu0 %v1527
    %1922 = vmatpush1.msra.mxu0 %v1526
    %1923 = vmatprep.subr.mxu0 %v1540
    %1924 = vmatpush1.msra.mxu0 %v1539
    %1925 = vmatprep.subr.mxu0 %v1553
    %1926 = vmatpush1.msra.mxu0 %v1552
    %1927 = vmatprep.subr.mxu0 %v1566
    %1928 = vmatpush1.msra.mxu0 %v1565
    %1929 = vmatprep.subr.mxu0 %v1579
    %1930 = vmatpush1.msra.mxu0 %v1578
    %1931 = vmatprep.mubr.f32.mxu0 %v19
    %1932 = vmatmul.mubr.f32.gmra.mrb[0].mxu0 %v18
    %v1933 = vpop.f32.mrb[0].mxu0
    %v1934 = vadd.f32 %v440, %v1933
    %v1935 = vpop.f32.mrb[0].mxu0
    %v1936 = vadd.f32 %v440, %v1935
    %1937 = vdwg.mxu0
    %1938 = vmatprep.subr.mxu0 %v1178
    %1939 = vmatpush1.msra.mxu0 %v1177
    %1940 = vmatprep.subr.mxu0 %v1191
    %1941 = vmatpush1.msra.mxu0 %v1190
    %1942 = vmatprep.subr.mxu0 %v1204
    %1943 = vmatpush1.msra.mxu0 %v1203
    %1944 = vmatprep.subr.mxu0 %v1217
    %1945 = vmatpush1.msra.mxu0 %v1216
    %1946 = vmatprep.subr.mxu0 %v1230
    %1947 = vmatpush1.msra.mxu0 %v1229
    %1948 = vmatprep.subr.mxu0 %v1243
    %1949 = vmatpush1.msra.mxu0 %v1242
    %1950 = vmatprep.subr.mxu0 %v1256
    %1951 = vmatpush1.msra.mxu0 %v1255
    %1952 = vmatprep.subr.mxu0 %v1269
    %1953 = vmatpush1.msra.mxu0 %v1268
    %1954 = vmatprep.subr.mxu0 %v1282
    %1955 = vmatpush1.msra.mxu0 %v1281
    %1956 = vmatprep.subr.mxu0 %v1295
    %1957 = vmatpush1.msra.mxu0 %v1294
    %1958 = vmatprep.subr.mxu0 %v1308
    %1959 = vmatpush1.msra.mxu0 %v1307
    %1960 = vmatprep.subr.mxu0 %v1321
    %1961 = vmatpush1.msra.mxu0 %v1320
    %1962 = vmatprep.subr.mxu0 %v1334
    %1963 = vmatpush1.msra.mxu0 %v1333
    %1964 = vmatprep.subr.mxu0 %v1347
    %1965 = vmatpush1.msra.mxu0 %v1346
    %1966 = vmatprep.subr.mxu0 %v1360
    %1967 = vmatpush1.msra.mxu0 %v1359
    %1968 = vmatprep.subr.mxu0 %v1373
    %1969 = vmatpush1.msra.mxu0 %v1372
    %1970 = vmatprep.subr.mxu0 %v1386
    %1971 = vmatpush1.msra.mxu0 %v1385
    %1972 = vmatprep.subr.mxu0 %v1399
    %1973 = vmatpush1.msra.mxu0 %v1398
    %1974 = vmatprep.subr.mxu0 %v1412
    %1975 = vmatpush1.msra.mxu0 %v1411
    %1976 = vmatprep.subr.mxu0 %v1425
    %1977 = vmatpush1.msra.mxu0 %v1424
    %1978 = vmatprep.subr.mxu0 %v1438
    %1979 = vmatpush1.msra.mxu0 %v1437
    %1980 = vmatprep.subr.mxu0 %v1451
    %1981 = vmatpush1.msra.mxu0 %v1450
    %1982 = vmatprep.subr.mxu0 %v1464
    %1983 = vmatpush1.msra.mxu0 %v1463
    %1984 = vmatprep.subr.mxu0 %v1477
    %1985 = vmatpush1.msra.mxu0 %v1476
    %1986 = vmatprep.subr.mxu0 %v1490
    %1987 = vmatpush1.msra.mxu0 %v1489
    %1988 = vmatprep.subr.mxu0 %v1503
    %1989 = vmatpush1.msra.mxu0 %v1502
    %1990 = vmatprep.subr.mxu0 %v1516
    %1991 = vmatpush1.msra.mxu0 %v1515
    %1992 = vmatprep.subr.mxu0 %v1529
    %1993 = vmatpush1.msra.mxu0 %v1528
    %1994 = vmatprep.subr.mxu0 %v1542
    %1995 = vmatpush1.msra.mxu0 %v1541
    %1996 = vmatprep.subr.mxu0 %v1555
    %1997 = vmatpush1.msra.mxu0 %v1554
    %1998 = vmatprep.subr.mxu0 %v1568
    %1999 = vmatpush1.msra.mxu0 %v1567
    %2000 = vmatprep.subr.mxu0 %v1581
    %2001 = vmatpush1.msra.mxu0 %v1580
    %2002 = vmatprep.mubr.f32.mxu0 %v19
    %2003 = vmatmul.mubr.f32.gmra.mrb[0].mxu0 %v18
    %v2004 = vpop.f32.mrb[0].mxu0
    %v2005 = vadd.f32 %v440, %v2004
    %v2006 = vpop.f32.mrb[0].mxu0
    %v2007 = vadd.f32 %v440, %v2006
    %2008 = vdwg.mxu0
    %2009 = vmatprep.subr.mxu0 0.0
    %2010 = vmatpush1.msra.mxu0 %v1179
    %2011 = vmatprep.subr.mxu0 0.0
    %2012 = vmatpush1.msra.mxu0 %v1192
    %2013 = vmatprep.subr.mxu0 0.0
    %2014 = vmatpush1.msra.mxu0 %v1205
    %2015 = vmatprep.subr.mxu0 0.0
    %2016 = vmatpush1.msra.mxu0 %v1218
    %2017 = vmatprep.subr.mxu0 0.0
    %2018 = vmatpush1.msra.mxu0 %v1231
    %2019 = vmatprep.subr.mxu0 0.0
    %2020 = vmatpush1.msra.mxu0 %v1244
    %2021 = vmatprep.subr.mxu0 0.0
    %2022 = vmatpush1.msra.mxu0 %v1257
    %2023 = vmatprep.subr.mxu0 0.0
    %2024 = vmatpush1.msra.mxu0 %v1270
    %2025 = vmatprep.subr.mxu0 0.0
    %2026 = vmatpush1.msra.mxu0 %v1283
    %2027 = vmatprep.subr.mxu0 0.0
    %2028 = vmatpush1.msra.mxu0 %v1296
    %2029 = vmatprep.subr.mxu0 0.0
    %2030 = vmatpush1.msra.mxu0 %v1309
    %2031 = vmatprep.subr.mxu0 0.0
    %2032 = vmatpush1.msra.mxu0 %v1322
    %2033 = vmatprep.subr.mxu0 0.0
    %2034 = vmatpush1.msra.mxu0 %v1335
    %2035 = vmatprep.subr.mxu0 0.0
    %2036 = vmatpush1.msra.mxu0 %v1348
    %2037 = vmatprep.subr.mxu0 0.0
    %2038 = vmatpush1.msra.mxu0 %v1361
    %2039 = vmatprep.subr.mxu0 0.0
    %2040 = vmatpush1.msra.mxu0 %v1374
    %2041 = vmatprep.subr.mxu0 0.0
    %2042 = vmatpush1.msra.mxu0 %v1387
    %2043 = vmatprep.subr.mxu0 0.0
    %2044 = vmatpush1.msra.mxu0 %v1400
    %2045 = vmatprep.subr.mxu0 0.0
    %2046 = vmatpush1.msra.mxu0 %v1413
    %2047 = vmatprep.subr.mxu0 0.0
    %2048 = vmatpush1.msra.mxu0 %v1426
    %2049 = vmatprep.subr.mxu0 0.0
    %2050 = vmatpush1.msra.mxu0 %v1439
    %2051 = vmatprep.subr.mxu0 0.0
    %2052 = vmatpush1.msra.mxu0 %v1452
    %2053 = vmatprep.subr.mxu0 0.0
    %2054 = vmatpush1.msra.mxu0 %v1465
    %2055 = vmatprep.subr.mxu0 0.0
    %2056 = vmatpush1.msra.mxu0 %v1478
    %2057 = vmatprep.subr.mxu0 0.0
    %2058 = vmatpush1.msra.mxu0 %v1491
    %2059 = vmatprep.subr.mxu0 0.0
    %2060 = vmatpush1.msra.mxu0 %v1504
    %2061 = vmatprep.subr.mxu0 0.0
    %2062 = vmatpush1.msra.mxu0 %v1517
    %2063 = vmatprep.subr.mxu0 0.0
    %2064 = vmatpush1.msra.mxu0 %v1530
    %2065 = vmatprep.subr.mxu0 0.0
    %2066 = vmatpush1.msra.mxu0 %v1543
    %2067 = vmatprep.subr.mxu0 0.0
    %2068 = vmatpush1.msra.mxu0 %v1556
    %2069 = vmatprep.subr.mxu0 0.0
    %2070 = vmatpush1.msra.mxu0 %v1569
    %2071 = vmatprep.subr.mxu0 0.0
    %2072 = vmatpush1.msra.mxu0 %v1582
    %2073 = vmatprep.mubr.f32.mxu0 %v19
    %2074 = vmatmul.mubr.f32.gmra.mrb[0].mxu0 %v18
    %v2075 = vpop.f32.mrb[0].mxu0
    %v2076 = vadd.f32 %v440, %v2075
    %v2077 = vpop.f32.mrb[0].mxu0
    %2078 = vdwg.mxu0
    %v2079 = vadd.f32 %v1650, %v1652
    %v2080 = vadd.f32 %v2079, %v1721
    %v2081 = vadd.f32 %v2080, %v1723
    %v2082 = vadd.f32 %v2081, %v1792
    %v2083 = vadd.f32 %v2082, %v1794
    %v2084 = vadd.f32 %v2083, %v1863
    %v2085 = vadd.f32 %v2084, %v1865
    %v2086 = vadd.f32 %v2085, %v1934
    %v2087 = vadd.f32 %v2086, %v1936
    %v2088 = vadd.f32 %v2087, %v2005
    %v2089 = vadd.f32 %v2088, %v2007
    %v2090 = vsel %vm949, %v2076, 0.0
    %v2091 = vadd.f32 %v2089, %v2090
    %2092 = vadd.xlane.f32.xlu0 %v2091
    %v2093 = vpop.xlane.xlu0 %2092
    %v2094 = vmul.f32 %v2093, %v954
    %v2095 = vsub.f32 %v1650, %v2094
    %v2096 = vsub.f32 %v1652, %v2094
    %v2097 = vsub.f32 %v1721, %v2094
    %v2098 = vsub.f32 %v1723, %v2094
    %v2099 = vsub.f32 %v1792, %v2094
    %v2100 = vsub.f32 %v1794, %v2094
    %v2101 = vsub.f32 %v1863, %v2094
    %v2102 = vsub.f32 %v1865, %v2094
    %v2103 = vsub.f32 %v1934, %v2094
    %v2104 = vsub.f32 %v1936, %v2094
    %v2105 = vsub.f32 %v2005, %v2094
    %v2106 = vsub.f32 %v2007, %v2094
    %v2107 = vsub.f32 %v2076, %v2094
    %v2108 = vmul.f32 %v2095, %v2095
    %v2109 = vmul.f32 %v2096, %v2096
    %v2110 = vmul.f32 %v2097, %v2097
    %v2111 = vmul.f32 %v2098, %v2098
    %v2112 = vmul.f32 %v2099, %v2099
    %v2113 = vmul.f32 %v2100, %v2100
    %v2114 = vmul.f32 %v2101, %v2101
    %v2115 = vmul.f32 %v2102, %v2102
    %v2116 = vmul.f32 %v2103, %v2103
    %v2117 = vmul.f32 %v2104, %v2104
    %v2118 = vmul.f32 %v2105, %v2105
    %v2119 = vmul.f32 %v2106, %v2106
    %v2120 = vmul.f32 %v2107, %v2107
    %v2121 = vadd.f32 %v2108, %v2109
    %v2122 = vadd.f32 %v2121, %v2110
    %v2123 = vadd.f32 %v2122, %v2111
    %v2124 = vadd.f32 %v2123, %v2112
    %v2125 = vadd.f32 %v2124, %v2113
    %v2126 = vadd.f32 %v2125, %v2114
    %v2127 = vadd.f32 %v2126, %v2115
    %v2128 = vadd.f32 %v2127, %v2116
    %v2129 = vadd.f32 %v2128, %v2117
    %v2130 = vadd.f32 %v2129, %v2118
    %v2131 = vadd.f32 %v2130, %v2119
    %v2132 = vsel %vm949, %v2120, 0.0
    %v2133 = vadd.f32 %v2131, %v2132
    %2134 = vadd.xlane.f32.xlu0 %v2133
    %v2135 = vpop.xlane.xlu0 %2134
    %v2136 = vmul.f32 %v2135, %v954
    %v2137 = vadd.f32 %v2136, 1e-05
    %v2138 = vrsqrt.pop %v2137
    %v2139 = vmul.f32 %v20, %v2138
    %2141 = vset.pattern.permute.xlu0 1
    %2142 = vperm.xlu0 %2141, %v2139
    %v2143 = vpop.permute.xlu0 %2142
    %v2145 = vmul.f32 %v2095, %v2143
    %v2146 = vmul.f32 %v2096, %v2143
    %v2147 = vmul.f32 %v2097, %v2143
    %v2148 = vmul.f32 %v2098, %v2143
    %v2149 = vmul.f32 %v2099, %v2143
    %v2150 = vmul.f32 %v2100, %v2143
    %v2151 = vmul.f32 %v2101, %v2143
    %v2152 = vmul.f32 %v2102, %v2143
    %v2153 = vmul.f32 %v2103, %v2143
    %v2154 = vmul.f32 %v2104, %v2143
    %v2155 = vmul.f32 %v2105, %v2143
    %v2156 = vmul.f32 %v2106, %v2143
    %v2157 = vmul.f32 %v2107, %v2143
    %v2158 = vadd.f32 %v2145, %v1021
    %v2159 = vadd.f32 %v2146, %v1021
    %v2160 = vadd.f32 %v2147, %v1021
    %v2161 = vadd.f32 %v2148, %v1021
    %v2162 = vadd.f32 %v2149, %v1021
    %v2163 = vadd.f32 %v2150, %v1021
    %v2164 = vadd.f32 %v2151, %v1021
    %v2165 = vadd.f32 %v2152, %v1021
    %v2166 = vadd.f32 %v2153, %v1021
    %v2167 = vadd.f32 %v2154, %v1021
    %v2168 = vadd.f32 %v2155, %v1021
    %v2169 = vadd.f32 %v2156, %v1021
    %v2170 = vadd.f32 %v2157, %v1021
    %v2171 = vsel %vm1036, %v2158, -inf
    %2172 = vmax.xlane.f32.xlu0 %v2171
    %v2173 = vpop.xlane.xlu0 %2172
    %2174 = vst.msk [vmem:[#allocation3] sm:$0xff] %vm1040, %v2173
    %v2175 = vsel %vm1042, %v2158, -inf
    %v2176 = vsel %vm1044, %v2159, -inf
    %v2177 = vmax.f32 %v2175, %v2176
    %2178 = vmax.xlane.f32.xlu0 %v2177
    %v2179 = vpop.xlane.xlu0 %2178
    %2180 = vst.msk [vmem:[#allocation3] sm:$0xff] %vm1049, %v2179
    %v2181 = vsel %vm1051, %v2159, -inf
    %v2182 = vsel %vm1053, %v2160, -inf
    %v2183 = vmax.f32 %v2181, %v2182
    %2184 = vmax.xlane.f32.xlu0 %v2183
    %v2185 = vpop.xlane.xlu0 %2184
    %2186 = vst.msk [vmem:[#allocation3] sm:$0xff] %vm1058, %v2185
    %v2187 = vsel %vm1060, %v2160, -inf
    %v2188 = vsel %vm1062, %v2161, -inf
    %v2189 = vmax.f32 %v2187, %v2188
    %2190 = vmax.xlane.f32.xlu0 %v2189
    %v2191 = vpop.xlane.xlu0 %2190
    %2192 = vst.msk [vmem:[#allocation3] sm:$0xff] %vm1067, %v2191
    %v2193 = vsel %vm1069, %v2161, -inf
    %2194 = vmax.xlane.f32.xlu0 %v2193
    %v2195 = vpop.xlane.xlu0 %2194
    %2196 = vst.msk [vmem:[#allocation3] sm:$0xff] %vm1073, %v2195
    %v2197 = vsel %vm1075, %v2161, -inf
    %v2198 = vsel %vm1077, %v2162, -inf
    %v2199 = vmax.f32 %v2197, %v2198
    %2200 = vmax.xlane.f32.xlu0 %v2199
    %v2201 = vpop.xlane.xlu0 %2200
    %2202 = vst.msk [vmem:[#allocation3] sm:$0xff] %vm1082, %v2201
    %v2203 = vsel %vm1084, %v2162, -inf
    %v2204 = vsel %vm1086, %v2163, -inf
    %v2205 = vmax.f32 %v2203, %v2204
    %2206 = vmax.xlane.f32.xlu0 %v2205
    %v2207 = vpop.xlane.xlu0 %2206
    %2208 = vst.msk [vmem:[#allocation3] sm:$0xff] %vm1091, %v2207
    %v2209 = vsel %vm1093, %v2163, -inf
    %v2210 = vsel %vm1095, %v2164, -inf
    %v2211 = vmax.f32 %v2209, %v2210
    %2212 = vmax.xlane.f32.xlu0 %v2211
    %v2213 = vpop.xlane.xlu0 %2212
    %2214 = vst.msk [vmem:[#allocation3] sm:$0xff] %vm1100, %v2213
    %v2215 = vsel %vm1102, %v2164, -inf
    %v2216 = vsel %vm1104, %v2165, -inf
    %v2217 = vmax.f32 %v2215, %v2216
    %2218 = vmax.xlane.f32.xlu0 %v2217
    %v2219 = vpop.xlane.xlu0 %2218
    %2220 = vst.msk [vmem:[#allocation3] sm:$0xff] %vm1109, %v2219
    %v2221 = vsel %vm1111, %v2165, -inf
    %2222 = vmax.xlane.f32.xlu0 %v2221
    %v2223 = vpop.xlane.xlu0 %2222
    %2224 = vst.msk [vmem:[#allocation3] sm:$0xff] %vm1115, %v2223
    %v2225 = vsel %vm1117, %v2165, -inf
    %v2226 = vsel %vm1119, %v2166, -inf
    %v2227 = vmax.f32 %v2225, %v2226
    %2228 = vmax.xlane.f32.xlu0 %v2227
    %v2229 = vpop.xlane.xlu0 %2228
    %2230 = vst.msk [vmem:[#allocation3] sm:$0xff] %vm1124, %v2229
    %v2231 = vsel %vm1126, %v2166, -inf
    %v2232 = vsel %vm1128, %v2167, -inf
    %v2233 = vmax.f32 %v2231, %v2232
    %2234 = vmax.xlane.f32.xlu0 %v2233
    %v2235 = vpop.xlane.xlu0 %2234
    %2236 = vst.msk [vmem:[#allocation3] sm:$0xff] %vm1133, %v2235
    %v2237 = vsel %vm1135, %v2167, -inf
    %v2238 = vsel %vm1137, %v2168, -inf
    %v2239 = vmax.f32 %v2237, %v2238
    %2240 = vmax.xlane.f32.xlu0 %v2239
    %v2241 = vpop.xlane.xlu0 %2240
    %2242 = vst.msk [vmem:[#allocation3] sm:$0xff] %vm1142, %v2241
    %v2243 = vsel %vm1144, %v2168, -inf
    %2244 = vmax.xlane.f32.xlu0 %v2243
    %v2245 = vpop.xlane.xlu0 %2244
    %2246 = vst.msk [vmem:[#allocation3] sm:$0xff] %vm1148, %v2245
    %v2247 = vsel %vm1150, %v2168, -inf
    %v2248 = vsel %vm1152, %v2169, -inf
    %v2249 = vmax.f32 %v2247, %v2248
    %2250 = vmax.xlane.f32.xlu0 %v2249
    %v2251 = vpop.xlane.xlu0 %2250
    %2252 = vst.msk [vmem:[#allocation3] sm:$0xff] %vm1157, %v2251
    %v2253 = vsel %vm1159, %v2169, -inf
    %v2254 = vsel %vm949, %v2170, -inf
    %v2255 = vmax.f32 %v2253, %v2254
    %2256 = vmax.xlane.f32.xlu0 %v2255
    %v2257 = vpop.xlane.xlu0 %2256
    %2258 = vst.msk [vmem:[#allocation3] sm:$0xff] %vm1165, %v2257
    %v2259 = vld [vmem:[#allocation2] sm:$0xff]
    %v2260 = vld [vmem:[#allocation3] sm:$0xff]
    %v2261 = vlaneseq
    %v2262 = vshrl.u32 %v2261, 7
    %v2263 = vsub.s32 0, %v2262
    %v2264 = vrot.slane %v2259, %v2263
    %2266 = vbcast.lane.b32.xlu0 %v2264, 256
    %v2267 = vpop.permute.xlu0 %2266
    %v2268 = vlaneseq
    %v2269 = vshrl.u32 %v2268, 7
    %v2270 = vsub.s32 1, %v2269
    %v2271 = vrot.slane %v2259, %v2270
    %2273 = vbcast.lane.b32.xlu0 %v2271, 256
    %v2274 = vpop.permute.xlu0 %2273
    %v2275 = vlaneseq
    %v2276 = vshrl.u32 %v2275, 7
    %v2277 = vsub.s32 2, %v2276
    %v2278 = vrot.slane %v2259, %v2277
    %2280 = vbcast.lane.b32.xlu0 %v2278, 256
    %v2281 = vpop.permute.xlu0 %2280
    %v2282 = vlaneseq
    %v2283 = vshrl.u32 %v2282, 7
    %v2284 = vsub.s32 3, %v2283
    %v2285 = vrot.slane %v2259, %v2284
    %2287 = vbcast.lane.b32.xlu0 %v2285, 256
    %v2288 = vpop.permute.xlu0 %2287
    %v2289 = vlaneseq
    %v2290 = vshrl.u32 %v2289, 7
    %v2291 = vsub.s32 4, %v2290
    %v2292 = vrot.slane %v2259, %v2291
    %2294 = vbcast.lane.b32.xlu0 %v2292, 256
    %v2295 = vpop.permute.xlu0 %2294
    %v2296 = vlaneseq
    %v2297 = vshrl.u32 %v2296, 7
    %v2298 = vsub.s32 5, %v2297
    %v2299 = vrot.slane %v2259, %v2298
    %2301 = vbcast.lane.b32.xlu0 %v2299, 256
    %v2302 = vpop.permute.xlu0 %2301
    %v2303 = vlaneseq
    %v2304 = vshrl.u32 %v2303, 7
    %v2305 = vsub.s32 6, %v2304
    %v2306 = vrot.slane %v2259, %v2305
    %2308 = vbcast.lane.b32.xlu0 %v2306, 256
    %v2309 = vpop.permute.xlu0 %2308
    %v2310 = vlaneseq
    %v2311 = vshrl.u32 %v2310, 7
    %v2312 = vsub.s32 7, %v2311
    %v2313 = vrot.slane %v2259, %v2312
    %2315 = vbcast.lane.b32.xlu0 %v2313, 256
    %v2316 = vpop.permute.xlu0 %2315
    %v2318 = vcombine.high %v2260, %v2260
    %v2320 = vunpack.c.l.s4 1966171168
    %v2321 = vunpack.c.0.s8 %v2320
    %v2322 = vlaneseq
    %v2323 = vshrl.u32 %v2322, 7
    %v2324 = vsub.s32 %v2321, %v2323
    %v2325 = vrot.slane %v2260, %v2324
    %v2327 = vunpack.c.l.s4 1966171168
    %v2328 = vunpack.c.0.s8 %v2327
    %v2329 = vlaneseq
    %v2330 = vshrl.u32 %v2329, 7
    %v2331 = vsub.s32 %v2328, %v2330
    %v2332 = vrot.slane %v2318, %v2331
    %v2333 = vcombine.high %v2325, %v2325
    %v2334 = vcombine.high %v2332, %v2332
    %v2336 = vunpack.c.l.s4 1966171168
    %v2337 = vunpack.c.0.s8 %v2336
    %v2338 = vlaneseq
    %v2339 = vshrl.u32 %v2338, 7
    %v2340 = vsub.s32 %v2337, %v2339
    %v2341 = vrot.slane %v2325, %v2340
    %v2343 = vunpack.c.l.s4 1966171168
    %v2344 = vunpack.c.0.s8 %v2343
    %v2345 = vlaneseq
    %v2346 = vshrl.u32 %v2345, 7
    %v2347 = vsub.s32 %v2344, %v2346
    %v2348 = vrot.slane %v2332, %v2347
    %v2350 = vunpack.c.l.s4 1966171168
    %v2351 = vunpack.c.0.s8 %v2350
    %v2352 = vlaneseq
    %v2353 = vshrl.u32 %v2352, 7
    %v2354 = vsub.s32 %v2351, %v2353
    %v2355 = vrot.slane %v2333, %v2354
    %v2357 = vunpack.c.l.s4 1966171168
    %v2358 = vunpack.c.0.s8 %v2357
    %v2359 = vlaneseq
    %v2360 = vshrl.u32 %v2359, 7
    %v2361 = vsub.s32 %v2358, %v2360
    %v2362 = vrot.slane %v2334, %v2361
    %v2363 = vcombine.high %v2341, %v2341
    %v2364 = vcombine.high %v2348, %v2348
    %v2365 = vcombine.high %v2355, %v2355
    %v2366 = vcombine.high %v2362, %v2362
    %v2367 = vlaneseq
    %v2368 = vshrl.u32 %v2367, 7
    %v2369 = vsub.s32 0, %v2368
    %v2370 = vrot.slane %v2341, %v2369
    %v2371 = vlaneseq
    %v2372 = vshrl.u32 %v2371, 7
    %v2373 = vsub.s32 0, %v2372
    %v2374 = vrot.slane %v2355, %v2373
    %v2375 = vlaneseq
    %v2376 = vshrl.u32 %v2375, 7
    %v2377 = vsub.s32 0, %v2376
    %v2378 = vrot.slane %v2363, %v2377
    %v2379 = vlaneseq
    %v2380 = vshrl.u32 %v2379, 7
    %v2381 = vsub.s32 0, %v2380
    %v2382 = vrot.slane %v2365, %v2381
    %v2383 = vlaneseq
    %v2384 = vshrl.u32 %v2383, 7
    %v2385 = vsub.s32 0, %v2384
    %v2386 = vrot.slane %v2348, %v2385
    %v2387 = vlaneseq
    %v2388 = vshrl.u32 %v2387, 7
    %v2389 = vsub.s32 0, %v2388
    %v2390 = vrot.slane %v2362, %v2389
    %v2391 = vlaneseq
    %v2392 = vshrl.u32 %v2391, 7
    %v2393 = vsub.s32 0, %v2392
    %v2394 = vrot.slane %v2364, %v2393
    %v2395 = vlaneseq
    %v2396 = vshrl.u32 %v2395, 7
    %v2397 = vsub.s32 0, %v2396
    %v2398 = vrot.slane %v2366, %v2397
    %v2407 = vmul.f32 %v2267, %v2370
    %v2408 = vmul.f32 %v2274, %v2374
    %v2409 = vmul.f32 %v2281, %v2378
    %v2410 = vmul.f32 %v2288, %v2382
    %v2411 = vmul.f32 %v2295, %v2386
    %v2412 = vmul.f32 %v2302, %v2390
    %v2413 = vmul.f32 %v2309, %v2394
    %v2414 = vmul.f32 %v2316, %v2398
    %vm2415 = vcmask 64512
    %2416 = vst.msk [vmem:[#allocation4] sm:$0xff] %vm2415, %v2407
    %2417 = vst.msk [vmem:[#allocation4 + $0x8] sm:$0xff] %vm2415, %v2408
    %2418 = vst.msk [vmem:[#allocation4 + $0x10] sm:$0xff] %vm2415, %v2409
    %2419 = vst.msk [vmem:[#allocation4 + $0x18] sm:$0xff] %vm2415, %v2410
    %2420 = vst.msk [vmem:[#allocation4 + $0x20] sm:$0xff] %vm2415, %v2411
    %2421 = vst.msk [vmem:[#allocation4 + $0x28] sm:$0xff] %vm2415, %v2412
    %2422 = vst.msk [vmem:[#allocation4 + $0x30] sm:$0xff] %vm2415, %v2413
    %2423 = vst.msk [vmem:[#allocation4 + $0x38] sm:$0xff] %vm2415, %v2414
    %v2424 = vld [vmem:[#allocation2] sm:$0xff]
    %v2425 = vld [vmem:[#allocation3] sm:$0xff]
    %v2426 = vlaneseq
    %v2427 = vshrl.u32 %v2426, 7
    %v2428 = vsub.s32 0, %v2427
    %v2429 = vrot.slane %v2424, %v2428
    %s2431 = sor.u32 256, 8
    %2432 = vbcast.lane.b32.xlu0 %v2429, %s2431
    %v2433 = vpop.permute.xlu0 %2432
    %v2434 = vlaneseq
    %v2435 = vshrl.u32 %v2434, 7
    %v2436 = vsub.s32 1, %v2435
    %v2437 = vrot.slane %v2424, %v2436
    %s2439 = sor.u32 256, 8
    %2440 = vbcast.lane.b32.xlu0 %v2437, %s2439
    %v2441 = vpop.permute.xlu0 %2440
    %v2442 = vlaneseq
    %v2443 = vshrl.u32 %v2442, 7
    %v2444 = vsub.s32 2, %v2443
    %v2445 = vrot.slane %v2424, %v2444
    %s2447 = sor.u32 256, 8
    %2448 = vbcast.lane.b32.xlu0 %v2445, %s2447
    %v2449 = vpop.permute.xlu0 %2448
    %v2450 = vlaneseq
    %v2451 = vshrl.u32 %v2450, 7
    %v2452 = vsub.s32 3, %v2451
    %v2453 = vrot.slane %v2424, %v2452
    %s2455 = sor.u32 256, 8
    %2456 = vbcast.lane.b32.xlu0 %v2453, %s2455
    %v2457 = vpop.permute.xlu0 %2456
    %v2458 = vlaneseq
    %v2459 = vshrl.u32 %v2458, 7
    %v2460 = vsub.s32 4, %v2459
    %v2461 = vrot.slane %v2424, %v2460
    %s2463 = sor.u32 256, 8
    %2464 = vbcast.lane.b32.xlu0 %v2461, %s2463
    %v2465 = vpop.permute.xlu0 %2464
    %v2466 = vlaneseq
    %v2467 = vshrl.u32 %v2466, 7
    %v2468 = vsub.s32 5, %v2467
    %v2469 = vrot.slane %v2424, %v2468
    %s2471 = sor.u32 256, 8
    %2472 = vbcast.lane.b32.xlu0 %v2469, %s2471
    %v2473 = vpop.permute.xlu0 %2472
    %v2474 = vlaneseq
    %v2475 = vshrl.u32 %v2474, 7
    %v2476 = vsub.s32 6, %v2475
    %v2477 = vrot.slane %v2424, %v2476
    %s2479 = sor.u32 256, 8
    %2480 = vbcast.lane.b32.xlu0 %v2477, %s2479
    %v2481 = vpop.permute.xlu0 %2480
    %v2482 = vlaneseq
    %v2483 = vshrl.u32 %v2482, 7
    %v2484 = vsub.s32 7, %v2483
    %v2485 = vrot.slane %v2424, %v2484
    %s2487 = sor.u32 256, 8
    %2488 = vbcast.lane.b32.xlu0 %v2485, %s2487
    %v2489 = vpop.permute.xlu0 %2488
    %v2491 = vcombine.high %v2425, %v2425
    %v2493 = vunpack.c.l.s4 1966171168
    %v2494 = vunpack.c.0.s8 %v2493
    %v2495 = vlaneseq
    %v2496 = vshrl.u32 %v2495, 7
    %v2497 = vsub.s32 %v2494, %v2496
    %v2498 = vrot.slane %v2425, %v2497
    %v2500 = vunpack.c.l.s4 1966171168
    %v2501 = vunpack.c.0.s8 %v2500
    %v2502 = vlaneseq
    %v2503 = vshrl.u32 %v2502, 7
    %v2504 = vsub.s32 %v2501, %v2503
    %v2505 = vrot.slane %v2491, %v2504
    %v2506 = vcombine.high %v2498, %v2498
    %v2507 = vcombine.high %v2505, %v2505
    %v2509 = vunpack.c.l.s4 1966171168
    %v2510 = vunpack.c.0.s8 %v2509
    %v2511 = vlaneseq
    %v2512 = vshrl.u32 %v2511, 7
    %v2513 = vsub.s32 %v2510, %v2512
    %v2514 = vrot.slane %v2498, %v2513
    %v2516 = vunpack.c.l.s4 1966171168
    %v2517 = vunpack.c.0.s8 %v2516
    %v2518 = vlaneseq
    %v2519 = vshrl.u32 %v2518, 7
    %v2520 = vsub.s32 %v2517, %v2519
    %v2521 = vrot.slane %v2505, %v2520
    %v2523 = vunpack.c.l.s4 1966171168
    %v2524 = vunpack.c.0.s8 %v2523
    %v2525 = vlaneseq
    %v2526 = vshrl.u32 %v2525, 7
    %v2527 = vsub.s32 %v2524, %v2526
    %v2528 = vrot.slane %v2506, %v2527
    %v2530 = vunpack.c.l.s4 1966171168
    %v2531 = vunpack.c.0.s8 %v2530
    %v2532 = vlaneseq
    %v2533 = vshrl.u32 %v2532, 7
    %v2534 = vsub.s32 %v2531, %v2533
    %v2535 = vrot.slane %v2507, %v2534
    %v2536 = vcombine.high %v2514, %v2514
    %v2537 = vcombine.high %v2521, %v2521
    %v2538 = vcombine.high %v2528, %v2528
    %v2539 = vcombine.high %v2535, %v2535
    %v2540 = vlaneseq
    %v2541 = vshrl.u32 %v2540, 7
    %v2542 = vsub.s32 0, %v2541
    %v2543 = vrot.slane %v2514, %v2542
    %v2544 = vlaneseq
    %v2545 = vshrl.u32 %v2544, 7
    %v2546 = vsub.s32 0, %v2545
    %v2547 = vrot.slane %v2528, %v2546
    %v2548 = vlaneseq
    %v2549 = vshrl.u32 %v2548, 7
    %v2550 = vsub.s32 0, %v2549
    %v2551 = vrot.slane %v2536, %v2550
    %v2552 = vlaneseq
    %v2553 = vshrl.u32 %v2552, 7
    %v2554 = vsub.s32 0, %v2553
    %v2555 = vrot.slane %v2538, %v2554
    %v2556 = vlaneseq
    %v2557 = vshrl.u32 %v2556, 7
    %v2558 = vsub.s32 0, %v2557
    %v2559 = vrot.slane %v2521, %v2558
    %v2560 = vlaneseq
    %v2561 = vshrl.u32 %v2560, 7
    %v2562 = vsub.s32 0, %v2561
    %v2563 = vrot.slane %v2535, %v2562
    %v2564 = vlaneseq
    %v2565 = vshrl.u32 %v2564, 7
    %v2566 = vsub.s32 0, %v2565
    %v2567 = vrot.slane %v2537, %v2566
    %v2568 = vlaneseq
    %v2569 = vshrl.u32 %v2568, 7
    %v2570 = vsub.s32 0, %v2569
    %v2571 = vrot.slane %v2539, %v2570
    %v2580 = vmul.f32 %v2433, %v2543
    %v2581 = vmul.f32 %v2441, %v2547
    %v2582 = vmul.f32 %v2449, %v2551
    %v2583 = vmul.f32 %v2457, %v2555
    %v2584 = vmul.f32 %v2465, %v2559
    %v2585 = vmul.f32 %v2473, %v2563
    %v2586 = vmul.f32 %v2481, %v2567
    %v2587 = vmul.f32 %v2489, %v2571
    %2596 = vrot.lane.b32.xlu0 %v2580, 120
    %v2597 = vpop.permute.xlu0 %2596
    %2598 = vrot.lane.b32.xlu0 %v2581, 120
    %v2599 = vpop.permute.xlu0 %2598
    %2600 = vrot.lane.b32.xlu0 %v2582, 120
    %v2601 = vpop.permute.xlu0 %2600
    %2602 = vrot.lane.b32.xlu0 %v2583, 120
    %v2603 = vpop.permute.xlu0 %2602
    %2604 = vrot.lane.b32.xlu0 %v2584, 120
    %v2605 = vpop.permute.xlu0 %2604
    %2606 = vrot.lane.b32.xlu0 %v2585, 120
    %v2607 = vpop.permute.xlu0 %2606
    %2608 = vrot.lane.b32.xlu0 %v2586, 120
    %v2609 = vpop.permute.xlu0 %2608
    %2610 = vrot.lane.b32.xlu0 %v2587, 120
    %v2611 = vpop.permute.xlu0 %2610
    %s2620 = scalar_lea.vmem [#allocation4], 64
    %2621 = vst.msk [vmem:[%s2620] sm:$0xff] %vm2415, %v2597
    %2622 = vst.msk [vmem:[%s2620 + $0x8] sm:$0xff] %vm2415, %v2599
    %2623 = vst.msk [vmem:[%s2620 + $0x10] sm:$0xff] %vm2415, %v2601
    %2624 = vst.msk [vmem:[%s2620 + $0x18] sm:$0xff] %vm2415, %v2603
    %2625 = vst.msk [vmem:[%s2620 + $0x20] sm:$0xff] %vm2415, %v2605
    %2626 = vst.msk [vmem:[%s2620 + $0x28] sm:$0xff] %vm2415, %v2607
    %2627 = vst.msk [vmem:[%s2620 + $0x30] sm:$0xff] %vm2415, %v2609
    %2628 = vst.msk [vmem:[%s2620 + $0x38] sm:$0xff] %vm2415, %v2611
    // Predicated region
    $region18: #{input_conv_forward.1} parent=1 // pred_check
      _
    $region19: #{input_conv_forward.1} parent=1 // pred_check_branch
      %2630 = sbr.rel (0) target = $region21
    $region20: #{input_conv_forward.1} parent=1 // pred_region
      %s2632 = ssub.s32 2048, 2048
      %2633 = vsyncadd [#allocation5], %s2632
      %s2634 = sshll.u32 [#allocation4], 4
      %s2635 = int_to_ptr.vmem [resolvable:$true] %s2634
      %2640 = dma.vmem_to_hbm [thread:$0]  %s2635, 2048, %s4, [#allocation5], 128, 128, 8
    $region21: #{input_conv_forward.1} parent=1 // pred_fallthru
      _
    // Predicated region
    $region22: #{input_conv_forward.1} parent=1 // pred_check
      _
    $region23: #{input_conv_forward.1} parent=1 // pred_check_branch
      %2642 = sbr.rel (0) target = $region25
    $region24: #{input_conv_forward.1} parent=1 // pred_region
      %2643 = dma.done [#allocation5], 2048
    $region25: #{input_conv_forward.1} parent=1 // pred_fallthru
      _
    %2644 = vsyncpa [#allocation5], 1

</llo_original>
